<compile_context>
chip_gen: v6e
topology: v6e:2x2x1
jax: 0.10.0
libtpu: 0.0.40
codegen_flags: <defaults>
</compile_context>

<pallas_src>
import functools

import jax
import jax.numpy as jnp
from jax.experimental import pallas as pl
from jax.experimental.pallas import tpu as pltpu


# ---------------------------------------------------------------------------
# Kernel 1: Conv2d(Cin -> Cout, 3x3, padding=1) + ReLU + MaxPool2d(2), fused.
# ---------------------------------------------------------------------------
def _conv3x3_relu_pool_kernel(x_ref, w_ref, b_ref, o_ref):
    """grid = (batch, row_blocks)

    x_ref : (1, H+2, W+2, Cin)      bf16  halo-padded image (resident per sample)
    w_ref : (Kpad, Cout)            bf16  im2col weight, rows (kh, kw, ci) [+ zero pad]
    b_ref : (1, Cout)               f32
    o_ref : (1, BR//2, W//2, Cout)  bf16  pooled rows for this row block
    """
    _, _, wp, cin = x_ref.shape
    w_out = wp - 2
    k_patch = 9 * cin
    k_w = w_ref.shape[0]
    br = 2 * o_ref.shape[1]                         # conv rows handled per grid step

    r0 = pl.multiple_of(pl.program_id(1) * br, br)
    xs = x_ref[0, pl.ds(r0, br + 2), :, :]          # (br+2, W+2, Cin)

    # In-VMEM im2col: 9 shifted taps (channels innermost), zero-pad K to k_w.
    taps = [xs[dy:dy + br, dx:dx + w_out, :] for dy in range(3) for dx in range(3)]
    if k_w > k_patch:
        taps.append(jnp.zeros((br, w_out, k_w - k_patch), xs.dtype))
    patches = jnp.concatenate(taps, axis=-1).reshape(br * w_out, k_w)

    acc = jnp.dot(patches, w_ref[...], preferred_element_type=jnp.float32)
    acc = jnp.maximum(acc + b_ref[...], 0.0)        # bias + ReLU in f32

    # Fused 2x2 / stride-2 max pool on the row block (stays in VMEM).
    cout = acc.shape[1]
    y = acc.reshape(br // 2, 2, w_out, cout)
    y = jnp.maximum(y[:, 0], y[:, 1])               # pool along rows
    y = y.reshape(br // 2, w_out // 2, 2, cout)
    y = jnp.maximum(y[:, :, 0], y[:, :, 1])         # pool along cols
    o_ref[0] = y.astype(o_ref.dtype)


def conv3x3_relu_pool(xp, w, b, *, block_rows):
    n, hp, wp, cin = xp.shape
    h, w_sp = hp - 2, wp - 2
    cout = w.shape[1]
    return pl.pallas_call(
        _conv3x3_relu_pool_kernel,
        out_shape=jax.ShapeDtypeStruct((n, h // 2, w_sp // 2, cout), jnp.bfloat16),
        grid=(n, h // block_rows),
        in_specs=[
            pl.BlockSpec((1, hp, wp, cin), lambda i, r: (i, 0, 0, 0)),
            pl.BlockSpec(w.shape, lambda i, r: (0, 0)),     # weight resident
            pl.BlockSpec(b.shape, lambda i, r: (0, 0)),
        ],
        out_specs=pl.BlockSpec((1, block_rows // 2, w_sp // 2, cout),
                               lambda i, r: (i, r, 0, 0)),
        compiler_params=pltpu.CompilerParams(
            dimension_semantics=("parallel", "parallel")),
    )(xp, w, b)


# ---------------------------------------------------------------------------
# Kernel 2: Conv2d(64,128,3,p=1)+ReLU -> ConvT(128,64,2,s=2)+ReLU -> Conv2d(64,1,1)
# fused; the 1x1 conv is a per-(di,dj) channel reduction, so the kernel emits
# the four (di, dj) planes of the final single-channel output.
# ---------------------------------------------------------------------------
def _conv2_decoder_kernel(x_ref, w2_ref, b2_ref, wt_ref, bt_ref, w3_ref, b3_ref,
                          o_ref):
    """grid = (batch, row_blocks) at the pooled (H/2, W/2) resolution.

    x_ref  : (1, H2+2, W2+2, 64) bf16  halo-padded pooled activation (resident)
    w2_ref : (576, 128)          bf16  conv2 im2col weight, rows (kh, kw, ci)
    b2_ref : (1, 128)            f32
    wt_ref : (128, 256)          bf16  convT weight, cols ordered (di, dj, co)
    bt_ref : (1, 256)            f32   convT bias tiled over (di, dj)
    w3_ref : (1, 64)             f32   1x1-conv weight
    b3_ref : (1, 1)              f32   1x1-conv bias
    o_ref  : (1, 4, BR, W2)      f32   plane g = 2*di + dj of the final output
    """
    _, _, wp, cin = x_ref.shape
    w_sp = wp - 2
    cdec = w3_ref.shape[1]                           # 64 decoder channels
    br = o_ref.shape[2]

    r0 = pl.multiple_of(pl.program_id(1) * br, br)
    xs = x_ref[0, pl.ds(r0, br + 2), :, :]           # (br+2, W2+2, 64)

    # In-VMEM im2col for conv2.
    taps = [xs[dy:dy + br, dx:dx + w_sp, :] for dy in range(3) for dx in range(3)]
    patches = jnp.concatenate(taps, axis=-1).reshape(br * w_sp, 9 * cin)

    # Conv2d(64, 128, 3, padding=1) + ReLU.
    y2 = jnp.dot(patches, w2_ref[...], preferred_element_type=jnp.float32)
    y2 = jnp.maximum(y2 + b2_ref[...], 0.0)          # (br*W2, 128)

    # ConvTranspose2d(128, 64, 2, stride=2) + ReLU: per-pixel GEMM into the
    # four (di, dj) column groups (pixel shuffle resolved below).
    y3 = jnp.dot(y2.astype(jnp.bfloat16), wt_ref[...],
                 preferred_element_type=jnp.float32)
    y3 = jnp.maximum(y3 + bt_ref[...], 0.0)          # (br*W2, 4*64)
    y3 = y3.reshape(br, w_sp, 4 * cdec)

    # Conv2d(64, 1, 1): channel reduction per (di, dj) group (no lane-1 GEMM).
    w3 = w3_ref[...].reshape(1, 1, cdec)
    b3 = b3_ref[0, 0]
    for g in range(4):
        seg = y3[:, :, g * cdec:(g + 1) * cdec]      # (br, W2, 64)
        o_ref[0, g] = jnp.sum(seg * w3, axis=-1) + b3


def conv2_decoder(xp, w2, b2, wt, bt, w3, b3, *, block_rows):
    n, hp, wp, cin = xp.shape
    h2, w_sp = hp - 2, wp - 2
    return pl.pallas_call(
        _conv2_decoder_kernel,
        out_shape=jax.ShapeDtypeStruct((n, 4, h2, w_sp), jnp.float32),
        grid=(n, h2 // block_rows),
        in_specs=[
            pl.BlockSpec((1, hp, wp, cin), lambda i, r: (i, 0, 0, 0)),
            pl.BlockSpec(w2.shape, lambda i, r: (0, 0)),    # weights resident
            pl.BlockSpec(b2.shape, lambda i, r: (0, 0)),
            pl.BlockSpec(wt.shape, lambda i, r: (0, 0)),
            pl.BlockSpec(bt.shape, lambda i, r: (0, 0)),
            pl.BlockSpec(w3.shape, lambda i, r: (0, 0)),
            pl.BlockSpec(b3.shape, lambda i, r: (0, 0)),
        ],
        out_specs=pl.BlockSpec((1, 4, block_rows, w_sp),
                               lambda i, r: (i, 0, r, 0)),
        compiler_params=pltpu.CompilerParams(
            dimension_semantics=("parallel", "parallel")),
    )(xp, w2, b2, wt, bt, w3, b3)


# ---------------------------------------------------------------------------
# Host-side plumbing
# ---------------------------------------------------------------------------
def _pick_row_block(h, w, *, multiple=1, align=8, max_pixels=2048):
    """Largest divisor of h (obeying `multiple`) whose row block covers at most
    `max_pixels` output pixels; partial blocks are kept 8-row aligned so blocked
    output tiles stay (8,128)-friendly. Falls back to the full height."""
    cands = [d for d in range(1, h + 1)
             if h % d == 0 and d % multiple == 0 and d * w <= max_pixels
             and (d == h or d % align == 0)]
    return max(cands) if cands else h


def init_params(key):
    """Deterministic synthetic parameters with the same shapes as the PyTorch module."""
    ks = jax.random.split(key, 8)

    def w(k, shape, fan_in):
        return jax.random.normal(k, shape, jnp.float32) / jnp.sqrt(float(fan_in))

    return {
        # nn.Conv2d(3, 64, 3, padding=1): weight (Cout, Cin, kH, kW)
        "conv1_w": w(ks[0], (64, 3, 3, 3), 3 * 9),
        "conv1_b": 0.01 * jax.random.normal(ks[1], (64,), jnp.float32),
        # nn.Conv2d(64, 128, 3, padding=1)
        "conv2_w": w(ks[2], (128, 64, 3, 3), 64 * 9),
        "conv2_b": 0.01 * jax.random.normal(ks[3], (128,), jnp.float32),
        # nn.ConvTranspose2d(128, 64, 2, stride=2): weight (Cin, Cout, kH, kW)
        "convt_w": w(ks[4], (128, 64, 2, 2), 128 * 4),
        "convt_b": 0.01 * jax.random.normal(ks[5], (64,), jnp.float32),
        # nn.Conv2d(64, 1, 1)
        "conv3_w": w(ks[6], (1, 64, 1, 1), 64),
        "conv3_b": 0.01 * jax.random.normal(ks[7], (1,), jnp.float32),
    }


def simple_unet_forward(x_nchw, params, *, max_block_pixels=2048):
    n, c, h, w = x_nchw.shape
    assert c == 3 and h % 2 == 0 and w % 2 == 0, (n, c, h, w)
    h2, w2 = h // 2, w // 2

    # NCHW -> NHWC, bf16 MXU operands, halo pad for the 3x3 convs.
    x = jnp.transpose(x_nchw, (0, 2, 3, 1)).astype(jnp.bfloat16)
    xp = jnp.pad(x, ((0, 0), (1, 1), (1, 1), (0, 0)))

    # Weight plumbing (tiny, host side).
    w1 = jnp.transpose(params["conv1_w"], (2, 3, 1, 0)).reshape(9 * c, 64)
    w1 = jnp.pad(w1, ((0, (-w1.shape[0]) % 16), (0, 0))).astype(jnp.bfloat16)  # K 27->32
    b1 = params["conv1_b"].reshape(1, 64).astype(jnp.float32)
    w2m = jnp.transpose(params["conv2_w"], (2, 3, 1, 0)).reshape(9 * 64, 128)
    w2m = w2m.astype(jnp.bfloat16)
    b2 = params["conv2_b"].reshape(1, 128).astype(jnp.float32)
    wt = jnp.transpose(params["convt_w"], (0, 2, 3, 1)).reshape(128, 4 * 64)
    wt = wt.astype(jnp.bfloat16)                        # columns ordered (di, dj, co)
    bt = jnp.tile(params["convt_b"], 4).reshape(1, 4 * 64).astype(jnp.float32)
    w3 = params["conv3_w"].reshape(1, 64).astype(jnp.float32)
    b3 = params["conv3_b"].reshape(1, 1).astype(jnp.float32)

    # Stage 1: Conv2d(3,64,3,p=1) + ReLU + MaxPool2d(2), fused in one kernel.
    br1 = _pick_row_block(h, w, multiple=2, align=8, max_pixels=max_block_pixels)
    y1p = conv3x3_relu_pool(xp, w1, b1, block_rows=br1)          # (N, H2, W2, 64) bf16

    # Stage 2: Conv2d(64,128,3)+ReLU -> ConvT(128,64,2,s2)+ReLU -> Conv2d(64,1,1), fused.
    # (For very large images the per-sample resident input block could be replaced
    #  by halo'd row-block DMAs and a raised vmem_limit_bytes.)
    y1pp = jnp.pad(y1p, ((0, 0), (1, 1), (1, 1), (0, 0)))
    br2 = _pick_row_block(h2, w2, multiple=1, align=8, max_pixels=max_block_pixels)
    out4 = conv2_decoder(y1pp, w2m, b2, wt, bt, w3, b3, block_rows=br2)  # (N,4,H2,W2)

    # Pixel shuffle of the single-channel result (tiny: the 64-channel decoder
    # activation never leaves VMEM, only N*H*W floats move here).
    out = (out4.reshape(n, 2, 2, h2, w2)
               .transpose(0, 3, 1, 4, 2)
               .reshape(n, h, w))
    return out[:, None, :, :].astype(jnp.float32)


# ---------------------------------------------------------------------------
# Pure-XLA reference (f32) for a correctness check.
# ---------------------------------------------------------------------------
def _unet_reference(x_nchw, p):
    dn = ("NCHW", "OIHW", "NCHW")
    y = jax.lax.conv_general_dilated(
        x_nchw, p["conv1_w"], window_strides=(1, 1),
        padding=((1, 1), (1, 1)), dimension_numbers=dn)
    y = jax.nn.relu(y + p["conv1_b"][None, :, None, None])
    y = jax.lax.reduce_window(y, -jnp.inf, jax.lax.max,
                              (1, 1, 2, 2), (1, 1, 2, 2), "VALID")
    y = jax.lax.conv_general_dilated(
        y, p["conv2_w"], window_strides=(1, 1),
        padding=((1, 1), (1, 1)), dimension_numbers=dn)
    y = jax.nn.relu(y + p["conv2_b"][None, :, None, None])
    # ConvTranspose2d(128,64,2,stride=2) == lhs-dilated conv with flipped kernel.
    wt = jnp.transpose(p["convt_w"], (1, 0, 2, 3))[:, :, ::-1, ::-1]
    y = jax.lax.conv_general_dilated(
        y, wt, window_strides=(1, 1), padding=((1, 1), (1, 1)),
        lhs_dilation=(2, 2), dimension_numbers=dn)
    y = jax.nn.relu(y + p["convt_b"][None, :, None, None])
    y = jax.lax.conv_general_dilated(
        y, p["conv3_w"], window_strides=(1, 1),
        padding=((0, 0), (0, 0)), dimension_numbers=dn)
    return y + p["conv3_b"][None, :, None, None]


if __name__ == "__main__":
    key = jax.random.PRNGKey(0)
    kx, kp = jax.random.split(key)
    x = jax.random.normal(kx, (2, 3, 16, 16), jnp.float32)
    params = init_params(kp)

    # max_block_pixels=128 deliberately exercises the row-block tiling even at
    # this toy 16x16 size (conv1 kernel runs a (2, 2) grid).
    fwd = jax.jit(functools.partial(simple_unet_forward, max_block_pixels=128))
    out = jax.block_until_ready(fwd(x, params))

    assert out.shape == (2, 1, 16, 16), out.shape
    assert out.dtype == jnp.float32

    ref = _unet_reference(x, params)
    err = float(jnp.max(jnp.abs(out - ref)))
    assert err < 3e-1, f"max abs error vs XLA reference: {err}"
    print("KERNEL_OK")
</pallas_src>

<mosaic_0001>
module attributes {stable_mosaic.version = 11 : i64} {
  func.func @_conv3x3_relu_pool_kernel(%arg0: i32, %arg1: i32, %arg2: memref<1x18x18x3xbf16, #tpu.memory_space<vmem>>, %arg3: memref<32x64xbf16, #tpu.memory_space<vmem>>, %arg4: memref<1x64xf32, #tpu.memory_space<vmem>>, %arg5: memref<1x4x8x64xbf16, #tpu.memory_space<vmem>>) attributes {dimension_semantics = [#tpu.dimension_semantics<parallel>, #tpu.dimension_semantics<parallel>], iteration_bounds = array<i64: 2, 2>, scalar_prefetch = 0 : i64, scratch_operands = 0 : i64, tpu.core_type = #tpu.core_type<tc>, window_params = [{transform_indices = @transform_0, window_bounds = array<i64: 1, 18, 18, 3>}, {pipeline_mode = #tpu.pipeline_mode<synchronous>, transform_indices = @transform_1, window_bounds = array<i64: 32, 64>}, {pipeline_mode = #tpu.pipeline_mode<synchronous>, transform_indices = @transform_2, window_bounds = array<i64: 1, 64>}, {transform_indices = @transform_3, window_bounds = array<i64: 1, 4, 8, 64>}]} {
    %c8_i32 = arith.constant 8 : i32
    %0 = arith.muli %arg1, %c8_i32 : i32
    %1 = tpu.assume_multiple %0, 8 : i32
    %c0 = arith.constant 0 : index
    %2 = arith.index_cast %1 : i32 to index
    %c0_0 = arith.constant 0 : index
    %c0_1 = arith.constant 0 : index
    %3 = vector.load %arg2[%c0, %2, %c0_0, %c0_1] : memref<1x18x18x3xbf16, #tpu.memory_space<vmem>>, vector<1x10x18x3xbf16>
    %4 = vector.shape_cast %3 : vector<1x10x18x3xbf16> to vector<10x18x3xbf16>
    %5 = vector.extract_strided_slice %4 {offsets = [0, 0, 0], sizes = [8, 16, 3], strides = [1, 1, 1]} : vector<10x18x3xbf16> to vector<8x16x3xbf16>
    %6 = vector.extract_strided_slice %4 {offsets = [0, 1, 0], sizes = [8, 16, 3], strides = [1, 1, 1]} : vector<10x18x3xbf16> to vector<8x16x3xbf16>
    %7 = vector.extract_strided_slice %4 {offsets = [0, 2, 0], sizes = [8, 16, 3], strides = [1, 1, 1]} : vector<10x18x3xbf16> to vector<8x16x3xbf16>
    %8 = vector.extract_strided_slice %4 {offsets = [1, 0, 0], sizes = [8, 16, 3], strides = [1, 1, 1]} : vector<10x18x3xbf16> to vector<8x16x3xbf16>
    %9 = vector.extract_strided_slice %4 {offsets = [1, 1, 0], sizes = [8, 16, 3], strides = [1, 1, 1]} : vector<10x18x3xbf16> to vector<8x16x3xbf16>
    %10 = vector.extract_strided_slice %4 {offsets = [1, 2, 0], sizes = [8, 16, 3], strides = [1, 1, 1]} : vector<10x18x3xbf16> to vector<8x16x3xbf16>
    %11 = vector.extract_strided_slice %4 {offsets = [2, 0, 0], sizes = [8, 16, 3], strides = [1, 1, 1]} : vector<10x18x3xbf16> to vector<8x16x3xbf16>
    %12 = vector.extract_strided_slice %4 {offsets = [2, 1, 0], sizes = [8, 16, 3], strides = [1, 1, 1]} : vector<10x18x3xbf16> to vector<8x16x3xbf16>
    %13 = vector.extract_strided_slice %4 {offsets = [2, 2, 0], sizes = [8, 16, 3], strides = [1, 1, 1]} : vector<10x18x3xbf16> to vector<8x16x3xbf16>
    %cst = arith.constant 0.000000e+00 : bf16
    %14 = vector.broadcast %cst : bf16 to vector<8x16x5xbf16>
    %15 = tpu.concatenate %5, %6, %7, %8, %9, %10, %11, %12, %13, %14 in 2 : vector<8x16x3xbf16>, vector<8x16x3xbf16>, vector<8x16x3xbf16>, vector<8x16x3xbf16>, vector<8x16x3xbf16>, vector<8x16x3xbf16>, vector<8x16x3xbf16>, vector<8x16x3xbf16>, vector<8x16x3xbf16>, vector<8x16x5xbf16> -> vector<8x16x32xbf16>
    %16 = vector.shape_cast %15 : vector<8x16x32xbf16> to vector<128x32xbf16>
    %c0_2 = arith.constant 0 : index
    %c0_3 = arith.constant 0 : index
    %17 = vector.load %arg3[%c0_2, %c0_3] : memref<32x64xbf16, #tpu.memory_space<vmem>>, vector<32x64xbf16>
    %cst_4 = arith.constant dense<0.000000e+00> : vector<128x64xf32>
    %18 = tpu.matmul %16, %17, %cst_4 {dimension_numbers = #tpu.dot_dimension_numbers<[1], [0], [0], [1], [0, 0, 1, 1], [], []>} : vector<128x32xbf16>, vector<32x64xbf16>, vector<128x64xf32> -> vector<128x64xf32>
    %c0_5 = arith.constant 0 : index
    %c0_6 = arith.constant 0 : index
    %19 = vector.load %arg4[%c0_5, %c0_6] : memref<1x64xf32, #tpu.memory_space<vmem>>, vector<1x64xf32>
    %20 = vector.broadcast %19 : vector<1x64xf32> to vector<128x64xf32>
    %21 = arith.addf %18, %20 : vector<128x64xf32>
    %cst_7 = arith.constant 0.000000e+00 : f32
    %22 = vector.broadcast %cst_7 : f32 to vector<128x64xf32>
    %23 = arith.maximumf %21, %22 : vector<128x64xf32>
    %24 = vector.shape_cast %23 : vector<128x64xf32> to vector<4x2x16x64xf32>
    %25 = vector.extract_strided_slice %24 {offsets = [0, 0, 0, 0], sizes = [4, 1, 16, 64], strides = [1, 1, 1, 1]} : vector<4x2x16x64xf32> to vector<4x1x16x64xf32>
    %26 = vector.shape_cast %25 : vector<4x1x16x64xf32> to vector<4x16x64xf32>
    %27 = vector.extract_strided_slice %24 {offsets = [0, 1, 0, 0], sizes = [4, 1, 16, 64], strides = [1, 1, 1, 1]} : vector<4x2x16x64xf32> to vector<4x1x16x64xf32>
    %28 = vector.shape_cast %27 : vector<4x1x16x64xf32> to vector<4x16x64xf32>
    %29 = arith.maximumf %26, %28 : vector<4x16x64xf32>
    %30 = vector.shape_cast %29 : vector<4x16x64xf32> to vector<4x8x2x64xf32>
    %31 = vector.extract_strided_slice %30 {offsets = [0, 0, 0, 0], sizes = [4, 8, 1, 64], strides = [1, 1, 1, 1]} : vector<4x8x2x64xf32> to vector<4x8x1x64xf32>
    %32 = vector.shape_cast %31 : vector<4x8x1x64xf32> to vector<4x8x64xf32>
    %33 = vector.extract_strided_slice %30 {offsets = [0, 0, 1, 0], sizes = [4, 8, 1, 64], strides = [1, 1, 1, 1]} : vector<4x8x2x64xf32> to vector<4x8x1x64xf32>
    %34 = vector.shape_cast %33 : vector<4x8x1x64xf32> to vector<4x8x64xf32>
    %35 = arith.maximumf %32, %34 : vector<4x8x64xf32>
    %36 = arith.truncf %35 : vector<4x8x64xf32> to vector<4x8x64xbf16>
    %c0_8 = arith.constant 0 : index
    %c0_9 = arith.constant 0 : index
    %c0_10 = arith.constant 0 : index
    %c0_11 = arith.constant 0 : index
    %37 = vector.load %arg5[%c0_8, %c0_9, %c0_10, %c0_11] : memref<1x4x8x64xbf16, #tpu.memory_space<vmem>>, vector<1x4x8x64xbf16>
    %38 = vector.shape_cast %37 : vector<1x4x8x64xbf16> to vector<4x8x64xbf16>
    %39 = vector.shape_cast %36 : vector<4x8x64xbf16> to vector<1x4x8x64xbf16>
    tpu.vector_store %arg5[%c0_8, %c0_9, %c0_10, %c0_11], %39 {strides = array<i32>} : memref<1x4x8x64xbf16, #tpu.memory_space<vmem>>, vector<1x4x8x64xbf16>,
    return
  }
  func.func @transform_0(%arg0: i32, %arg1: i32) -> (i32, i32, i32, i32) {
    %c0_i32 = arith.constant 0 : i32
    %c0_i32_0 = arith.constant 0 : i32
    %c0_i32_1 = arith.constant 0 : i32
    %c0_i32_2 = arith.constant 0 : i32
    return %arg0, %c0_i32, %c0_i32_0, %c0_i32_1 : i32, i32, i32, i32
  }
  func.func @transform_1(%arg0: i32, %arg1: i32) -> (i32, i32) {
    %c0_i32 = arith.constant 0 : i32
    %c0_i32_0 = arith.constant 0 : i32
    %c0_i32_1 = arith.constant 0 : i32
    return %c0_i32, %c0_i32_0 : i32, i32
  }
  func.func @transform_2(%arg0: i32, %arg1: i32) -> (i32, i32) {
    %c0_i32 = arith.constant 0 : i32
    %c0_i32_0 = arith.constant 0 : i32
    %c0_i32_1 = arith.constant 0 : i32
    return %c0_i32, %c0_i32_0 : i32, i32
  }
  func.func @transform_3(%arg0: i32, %arg1: i32) -> (i32, i32, i32, i32) {
    %c0_i32 = arith.constant 0 : i32
    %c0_i32_0 = arith.constant 0 : i32
    %c0_i32_1 = arith.constant 0 : i32
    return %arg0, %arg1, %c0_i32, %c0_i32_0 : i32, i32, i32, i32
  }
}

module attributes {stable_mosaic.version = 11 : i64} {
  func.func @_conv2_decoder_kernel(%arg0: i32, %arg1: i32, %arg2: memref<1x10x10x64xbf16, #tpu.memory_space<vmem>>, %arg3: memref<576x128xbf16, #tpu.memory_space<vmem>>, %arg4: memref<1x128xf32, #tpu.memory_space<vmem>>, %arg5: memref<128x256xbf16, #tpu.memory_space<vmem>>, %arg6: memref<1x256xf32, #tpu.memory_space<vmem>>, %arg7: memref<1x64xf32, #tpu.memory_space<vmem>>, %arg8: memref<1x1xf32, #tpu.memory_space<vmem>>, %arg9: memref<1x4x8x8xf32, #tpu.memory_space<vmem>>) attributes {dimension_semantics = [#tpu.dimension_semantics<parallel>, #tpu.dimension_semantics<parallel>], iteration_bounds = array<i64: 2, 1>, scalar_prefetch = 0 : i64, scratch_operands = 0 : i64, tpu.core_type = #tpu.core_type<tc>, window_params = [{transform_indices = @transform_0, window_bounds = array<i64: 1, 10, 10, 64>}, {pipeline_mode = #tpu.pipeline_mode<synchronous>, transform_indices = @transform_1, window_bounds = array<i64: 576, 128>}, {pipeline_mode = #tpu.pipeline_mode<synchronous>, transform_indices = @transform_2, window_bounds = array<i64: 1, 128>}, {pipeline_mode = #tpu.pipeline_mode<synchronous>, transform_indices = @transform_3, window_bounds = array<i64: 128, 256>}, {pipeline_mode = #tpu.pipeline_mode<synchronous>, transform_indices = @transform_4, window_bounds = array<i64: 1, 256>}, {pipeline_mode = #tpu.pipeline_mode<synchronous>, transform_indices = @transform_5, window_bounds = array<i64: 1, 64>}, {pipeline_mode = #tpu.pipeline_mode<synchronous>, transform_indices = @transform_6, window_bounds = array<i64: 1, 1>}, {transform_indices = @transform_7, window_bounds = array<i64: 1, 4, 8, 8>}]} {
    %c8_i32 = arith.constant 8 : i32
    %0 = arith.muli %arg1, %c8_i32 : i32
    %1 = tpu.assume_multiple %0, 8 : i32
    %c0 = arith.constant 0 : index
    %2 = arith.index_cast %1 : i32 to index
    %c0_0 = arith.constant 0 : index
    %c0_1 = arith.constant 0 : index
    %3 = vector.load %arg2[%c0, %2, %c0_0, %c0_1] : memref<1x10x10x64xbf16, #tpu.memory_space<vmem>>, vector<1x10x10x64xbf16>
    %4 = vector.shape_cast %3 : vector<1x10x10x64xbf16> to vector<10x10x64xbf16>
    %5 = vector.extract_strided_slice %4 {offsets = [0, 0, 0], sizes = [8, 8, 64], strides = [1, 1, 1]} : vector<10x10x64xbf16> to vector<8x8x64xbf16>
    %6 = vector.extract_strided_slice %4 {offsets = [0, 1, 0], sizes = [8, 8, 64], strides = [1, 1, 1]} : vector<10x10x64xbf16> to vector<8x8x64xbf16>
    %7 = vector.extract_strided_slice %4 {offsets = [0, 2, 0], sizes = [8, 8, 64], strides = [1, 1, 1]} : vector<10x10x64xbf16> to vector<8x8x64xbf16>
    %8 = vector.extract_strided_slice %4 {offsets = [1, 0, 0], sizes = [8, 8, 64], strides = [1, 1, 1]} : vector<10x10x64xbf16> to vector<8x8x64xbf16>
    %9 = vector.extract_strided_slice %4 {offsets = [1, 1, 0], sizes = [8, 8, 64], strides = [1, 1, 1]} : vector<10x10x64xbf16> to vector<8x8x64xbf16>
    %10 = vector.extract_strided_slice %4 {offsets = [1, 2, 0], sizes = [8, 8, 64], strides = [1, 1, 1]} : vector<10x10x64xbf16> to vector<8x8x64xbf16>
    %11 = vector.extract_strided_slice %4 {offsets = [2, 0, 0], sizes = [8, 8, 64], strides = [1, 1, 1]} : vector<10x10x64xbf16> to vector<8x8x64xbf16>
    %12 = vector.extract_strided_slice %4 {offsets = [2, 1, 0], sizes = [8, 8, 64], strides = [1, 1, 1]} : vector<10x10x64xbf16> to vector<8x8x64xbf16>
    %13 = vector.extract_strided_slice %4 {offsets = [2, 2, 0], sizes = [8, 8, 64], strides = [1, 1, 1]} : vector<10x10x64xbf16> to vector<8x8x64xbf16>
    %14 = tpu.concatenate %5, %6, %7, %8, %9, %10, %11, %12, %13 in 2 : vector<8x8x64xbf16>, vector<8x8x64xbf16>, vector<8x8x64xbf16>, vector<8x8x64xbf16>, vector<8x8x64xbf16>, vector<8x8x64xbf16>, vector<8x8x64xbf16>, vector<8x8x64xbf16>, vector<8x8x64xbf16> -> vector<8x8x576xbf16>
    %15 = vector.shape_cast %14 : vector<8x8x576xbf16> to vector<64x576xbf16>
    %c0_2 = arith.constant 0 : index
    %c0_3 = arith.constant 0 : index
    %16 = vector.load %arg3[%c0_2, %c0_3] : memref<576x128xbf16, #tpu.memory_space<vmem>>, vector<576x128xbf16>
    %cst = arith.constant dense<0.000000e+00> : vector<64x128xf32>
    %17 = tpu.matmul %15, %16, %cst {dimension_numbers = #tpu.dot_dimension_numbers<[1], [0], [0], [1], [0, 0, 1, 1], [], []>} : vector<64x576xbf16>, vector<576x128xbf16>, vector<64x128xf32> -> vector<64x128xf32>
    %c0_4 = arith.constant 0 : index
    %c0_5 = arith.constant 0 : index
    %18 = vector.load %arg4[%c0_4, %c0_5] : memref<1x128xf32, #tpu.memory_space<vmem>>, vector<1x128xf32>
    %19 = vector.broadcast %18 : vector<1x128xf32> to vector<64x128xf32>
    %20 = arith.addf %17, %19 : vector<64x128xf32>
    %cst_6 = arith.constant 0.000000e+00 : f32
    %21 = vector.broadcast %cst_6 : f32 to vector<64x128xf32>
    %22 = arith.maximumf %20, %21 : vector<64x128xf32>
    %23 = arith.truncf %22 : vector<64x128xf32> to vector<64x128xbf16>
    %c0_7 = arith.constant 0 : index
    %c0_8 = arith.constant 0 : index
    %24 = vector.load %arg5[%c0_7, %c0_8] : memref<128x256xbf16, #tpu.memory_space<vmem>>, vector<128x256xbf16>
    %cst_9 = arith.constant dense<0.000000e+00> : vector<64x256xf32>
    %25 = tpu.matmul %23, %24, %cst_9 {dimension_numbers = #tpu.dot_dimension_numbers<[1], [0], [0], [1], [0, 0, 1, 1], [], []>} : vector<64x128xbf16>, vector<128x256xbf16>, vector<64x256xf32> -> vector<64x256xf32>
    %c0_10 = arith.constant 0 : index
    %c0_11 = arith.constant 0 : index
    %26 = vector.load %arg6[%c0_10, %c0_11] : memref<1x256xf32, #tpu.memory_space<vmem>>, vector<1x256xf32>
    %27 = vector.broadcast %26 : vector<1x256xf32> to vector<64x256xf32>
    %28 = arith.addf %25, %27 : vector<64x256xf32>
    %cst_12 = arith.constant 0.000000e+00 : f32
    %29 = vector.broadcast %cst_12 : f32 to vector<64x256xf32>
    %30 = arith.maximumf %28, %29 : vector<64x256xf32>
    %31 = vector.shape_cast %30 : vector<64x256xf32> to vector<8x8x256xf32>
    %c0_13 = arith.constant 0 : index
    %c0_14 = arith.constant 0 : index
    %32 = vector.load %arg7[%c0_13, %c0_14] : memref<1x64xf32, #tpu.memory_space<vmem>>, vector<1x64xf32>
    %33 = vector.shape_cast %32 : vector<1x64xf32> to vector<1x1x64xf32>
    %c0_15 = arith.constant 0 : index
    %c0_16 = arith.constant 0 : index
    %34 = vector.load %arg8[%c0_15, %c0_16] : memref<1x1xf32, #tpu.memory_space<vmem>>, vector<1x1xf32>
    %35 = vector.extract %34[0, 0] : f32 from vector<1x1xf32>
    %36 = vector.extract_strided_slice %31 {offsets = [0, 0, 0], sizes = [8, 8, 64], strides = [1, 1, 1]} : vector<8x8x256xf32> to vector<8x8x64xf32>
    %37 = vector.broadcast %33 : vector<1x1x64xf32> to vector<8x8x64xf32>
    %38 = arith.mulf %36, %37 : vector<8x8x64xf32>
    %cst_17 = arith.constant dense<0.000000e+00> : vector<8x8xf32>
    %39 = vector.multi_reduction <add>, %38, %cst_17 [2] : vector<8x8x64xf32> to vector<8x8xf32>
    %40 = vector.broadcast %35 : f32 to vector<8x8xf32>
    %41 = arith.addf %39, %40 : vector<8x8xf32>
    %c0_18 = arith.constant 0 : index
    %c0_19 = arith.constant 0 : index
    %c0_20 = arith.constant 0 : index
    %c0_21 = arith.constant 0 : index
    %42 = vector.load %arg9[%c0_18, %c0_19, %c0_20, %c0_21] : memref<1x4x8x8xf32, #tpu.memory_space<vmem>>, vector<1x1x8x8xf32>
    %43 = vector.shape_cast %42 : vector<1x1x8x8xf32> to vector<8x8xf32>
    %44 = vector.shape_cast %41 : vector<8x8xf32> to vector<1x1x8x8xf32>
    tpu.vector_store %arg9[%c0_18, %c0_19, %c0_20, %c0_21], %44 {strides = array<i32>} : memref<1x4x8x8xf32, #tpu.memory_space<vmem>>, vector<1x1x8x8xf32>,
    %45 = vector.extract_strided_slice %31 {offsets = [0, 0, 64], sizes = [8, 8, 64], strides = [1, 1, 1]} : vector<8x8x256xf32> to vector<8x8x64xf32>
    %46 = vector.broadcast %33 : vector<1x1x64xf32> to vector<8x8x64xf32>
    %47 = arith.mulf %45, %46 : vector<8x8x64xf32>
    %cst_22 = arith.constant dense<0.000000e+00> : vector<8x8xf32>
    %48 = vector.multi_reduction <add>, %47, %cst_22 [2] : vector<8x8x64xf32> to vector<8x8xf32>
    %49 = vector.broadcast %35 : f32 to vector<8x8xf32>
    %50 = arith.addf %48, %49 : vector<8x8xf32>
    %c0_23 = arith.constant 0 : index
    %c1 = arith.constant 1 : index
    %c0_24 = arith.constant 0 : index
    %c0_25 = arith.constant 0 : index
    %51 = vector.load %arg9[%c0_23, %c1, %c0_24, %c0_25] : memref<1x4x8x8xf32, #tpu.memory_space<vmem>>, vector<1x1x8x8xf32>
    %52 = vector.shape_cast %51 : vector<1x1x8x8xf32> to vector<8x8xf32>
    %53 = vector.shape_cast %50 : vector<8x8xf32> to vector<1x1x8x8xf32>
    tpu.vector_store %arg9[%c0_23, %c1, %c0_24, %c0_25], %53 {strides = array<i32>} : memref<1x4x8x8xf32, #tpu.memory_space<vmem>>, vector<1x1x8x8xf32>,
    %54 = vector.extract_strided_slice %31 {offsets = [0, 0, 128], sizes = [8, 8, 64], strides = [1, 1, 1]} : vector<8x8x256xf32> to vector<8x8x64xf32>
    %55 = vector.broadcast %33 : vector<1x1x64xf32> to vector<8x8x64xf32>
    %56 = arith.mulf %54, %55 : vector<8x8x64xf32>
    %cst_26 = arith.constant dense<0.000000e+00> : vector<8x8xf32>
    %57 = vector.multi_reduction <add>, %56, %cst_26 [2] : vector<8x8x64xf32> to vector<8x8xf32>
    %58 = vector.broadcast %35 : f32 to vector<8x8xf32>
    %59 = arith.addf %57, %58 : vector<8x8xf32>
    %c0_27 = arith.constant 0 : index
    %c2 = arith.constant 2 : index
    %c0_28 = arith.constant 0 : index
    %c0_29 = arith.constant 0 : index
    %60 = vector.load %arg9[%c0_27, %c2, %c0_28, %c0_29] : memref<1x4x8x8xf32, #tpu.memory_space<vmem>>, vector<1x1x8x8xf32>
    %61 = vector.shape_cast %60 : vector<1x1x8x8xf32> to vector<8x8xf32>
    %62 = vector.shape_cast %59 : vector<8x8xf32> to vector<1x1x8x8xf32>
    tpu.vector_store %arg9[%c0_27, %c2, %c0_28, %c0_29], %62 {strides = array<i32>} : memref<1x4x8x8xf32, #tpu.memory_space<vmem>>, vector<1x1x8x8xf32>,
    %63 = vector.extract_strided_slice %31 {offsets = [0, 0, 192], sizes = [8, 8, 64], strides = [1, 1, 1]} : vector<8x8x256xf32> to vector<8x8x64xf32>
    %64 = vector.broadcast %33 : vector<1x1x64xf32> to vector<8x8x64xf32>
    %65 = arith.mulf %63, %64 : vector<8x8x64xf32>
    %cst_30 = arith.constant dense<0.000000e+00> : vector<8x8xf32>
    %66 = vector.multi_reduction <add>, %65, %cst_30 [2] : vector<8x8x64xf32> to vector<8x8xf32>
    %67 = vector.broadcast %35 : f32 to vector<8x8xf32>
    %68 = arith.addf %66, %67 : vector<8x8xf32>
    %c0_31 = arith.constant 0 : index
    %c3 = arith.constant 3 : index
    %c0_32 = arith.constant 0 : index
    %c0_33 = arith.constant 0 : index
    %69 = vector.load %arg9[%c0_31, %c3, %c0_32, %c0_33] : memref<1x4x8x8xf32, #tpu.memory_space<vmem>>, vector<1x1x8x8xf32>
    %70 = vector.shape_cast %69 : vector<1x1x8x8xf32> to vector<8x8xf32>
    %71 = vector.shape_cast %68 : vector<8x8xf32> to vector<1x1x8x8xf32>
    tpu.vector_store %arg9[%c0_31, %c3, %c0_32, %c0_33], %71 {strides = array<i32>} : memref<1x4x8x8xf32, #tpu.memory_space<vmem>>, vector<1x1x8x8xf32>,
    return
  }
  func.func @transform_0(%arg0: i32, %arg1: i32) -> (i32, i32, i32, i32) {
    %c0_i32 = arith.constant 0 : i32
    %c0_i32_0 = arith.constant 0 : i32
    %c0_i32_1 = arith.constant 0 : i32
    %c0_i32_2 = arith.constant 0 : i32
    return %arg0, %c0_i32, %c0_i32_0, %c0_i32_1 : i32, i32, i32, i32
  }
  func.func @transform_1(%arg0: i32, %arg1: i32) -> (i32, i32) {
    %c0_i32 = arith.constant 0 : i32
    %c0_i32_0 = arith.constant 0 : i32
    %c0_i32_1 = arith.constant 0 : i32
    return %c0_i32, %c0_i32_0 : i32, i32
  }
  func.func @transform_2(%arg0: i32, %arg1: i32) -> (i32, i32) {
    %c0_i32 = arith.constant 0 : i32
    %c0_i32_0 = arith.constant 0 : i32
    %c0_i32_1 = arith.constant 0 : i32
    return %c0_i32, %c0_i32_0 : i32, i32
  }
  func.func @transform_3(%arg0: i32, %arg1: i32) -> (i32, i32) {
    %c0_i32 = arith.constant 0 : i32
    %c0_i32_0 = arith.constant 0 : i32
    %c0_i32_1 = arith.constant 0 : i32
    return %c0_i32, %c0_i32_0 : i32, i32
  }
  func.func @transform_4(%arg0: i32, %arg1: i32) -> (i32, i32) {
    %c0_i32 = arith.constant 0 : i32
    %c0_i32_0 = arith.constant 0 : i32
    %c0_i32_1 = arith.constant 0 : i32
    return %c0_i32, %c0_i32_0 : i32, i32
  }
  func.func @transform_5(%arg0: i32, %arg1: i32) -> (i32, i32) {
    %c0_i32 = arith.constant 0 : i32
    %c0_i32_0 = arith.constant 0 : i32
    %c0_i32_1 = arith.constant 0 : i32
    return %c0_i32, %c0_i32_0 : i32, i32
  }
  func.func @transform_6(%arg0: i32, %arg1: i32) -> (i32, i32) {
    %c0_i32 = arith.constant 0 : i32
    %c0_i32_0 = arith.constant 0 : i32
    %c0_i32_1 = arith.constant 0 : i32
    return %c0_i32, %c0_i32_0 : i32, i32
  }
  func.func @transform_7(%arg0: i32, %arg1: i32) -> (i32, i32, i32, i32) {
    %c0_i32 = arith.constant 0 : i32
    %c0_i32_0 = arith.constant 0 : i32
    %c0_i32_1 = arith.constant 0 : i32
    return %arg0, %c0_i32, %arg1, %c0_i32_0 : i32, i32, i32, i32
  }
}

</mosaic_0001>

<llo_original>
// kernel: tile.9
$region0: #{tile.9}
  %s0 = inlined_call_operand.vmem [shape: f32[4,64], index: 0, kind: input, shape index: {}]
  %s1 = inlined_call_operand.vmem [shape: f32[1,256], index: 1, kind: output, shape index: {}]
  $region1: #{tile.9} parent=0
    #allocation0 [shape = 'u8[8192]{0}', space=vmem, size = 0x2000, scoped, tag = 'scoped mem for output reshape']
    #allocation1 [shape = 'u8[4096]{0}', space=vmem, size = 0x1000, scoped, tag = 'scoped mem for input reshape']
    %s3 = sshll.u32 1, 4
    %s4 = ssub.s32 %s3, 1
    %v5 = vld [vmem:[%s0] sm:%s4]
    %6 = vst [vmem:[#allocation1] sm:%s4] %v5
    %s7 = smov 3
    %v8 = vld [vmem:[#allocation1] ss:$2 sm:%s7]
    %vm9 = vcmask 523264
    %10 = vst.msk [vmem:[#allocation0] ss:$8 sm:$0x3] %vm9, %v8
    %s11 = scalar_lea.vmem [#allocation1], 1
    %s12 = smov 3
    %v13 = vld [vmem:[%s11] ss:$2 sm:%s12]
    %14 = vrot.lane.b32.xlu0 %v13, 64
    %v15 = vpop.permute.xlu0 %14
    %vm16 = vcmask 1048064
    %17 = vst.msk [vmem:[#allocation0] ss:$8 sm:$0x3] %vm16, %v15
    %s19 = sshll.u32 1, 1
    %s20 = ssub.s32 %s19, 1
    %v22 = vld [vmem:[#allocation0] sm:%s20]
    %s23 = sshll.u32 1, 1
    %s24 = ssub.s32 %s23, 1
    %25 = vst [vmem:[%s1] sm:%s24] %v22
    %s26 = scalar_lea.vmem [#allocation0], 8
    %v27 = vld [vmem:[%s26] sm:%s20]
    %s28 = sshll.u32 1, 1
    %s29 = ssub.s32 %s28, 1
    %s30 = scalar_lea.vmem %s1, 1
    %31 = vst [vmem:[%s30] sm:%s29] %v27

// kernel: tile.8
$region0: #{tile.8}
  #allocation0 [shape = 's32[1]{0}', space=sflag, size = 0x4, scoped, tag = 'scoped memory for tile.8']
  %s0 = inlined_call_operand.vmem [shape: f32[64], index: 0, kind: input, shape index: {}]
  %s1 = inlined_call_operand.vmem [shape: f32[4,64], index: 1, kind: output, shape index: {}]
  // Predicated region
  $region2: #{tile.8} parent=0 // pred_check
    _
  $region3: #{tile.8} parent=0 // pred_check_branch
    %3 = sbr.rel (0) target = $region5
  $region4: #{tile.8} parent=0 // pred_region
    _
  $region5: #{tile.8} parent=0 // pred_fallthru
    _
  %v4 = vld [vmem:[%s0] ss:$0 sm:$0xff]
  %5 = vst [vmem:[%s1] sm:$0xf] %v4

// kernel: simple_unet_forward.2
$region0: #{simple_unet_forward.2}
  #allocation0 [shape = 'u32[]', space=smem, size = 0x4, offset = 0x4, fixed_abs, tag = 'smem constant byte address 0x4 - core index']
  #allocation1 [shape = 'u32[144,128]{1,0:T(1,128)}', space=vmem, size = 0x12000, scoped, tag = 'internal scratch']
  %s0 = inlined_call_operand.vmem [shape: bf16[2,18,18,3], index: 0, kind: input, shape index: {}]
  %s1 = inlined_call_operand.vmem [shape: bf16[32,64], index: 1, kind: input, shape index: {}]
  %s2 = inlined_call_operand.vmem [shape: f32[1,64], index: 2, kind: input, shape index: {}]
  %s3 = inlined_call_operand.vmem [shape: bf16[2,8,8,64], index: 3, kind: output, shape index: {}]
  %s4 = sld [smem:[#allocation0]]
  $region45: #{simple_unet_forward.2} parent=0
    _
  %s6 = ssub.s32 1, %s4
  %s7 = scalar_select 0, %s6, %s4
  loop: start=0, step=1, limit=6
  $region2: #{simple_unet_forward.2} parent=0 // loop_pre_header
    _
  $region3: #{simple_unet_forward.2} parent=0 // loop_header
    %s9 = sphi 0, %s13
    %p10 = scmp.ge.s32.totalorder %s9, 6
    %s16 = sphi 0, %s28
    %s17 = sphi 0, %s24
    %s18 = sphi 0, %s16
    %s19 = sphi 0, %s17
    %s20 = sphi 0, %s18
    %s21 = sphi 0, %s19
    %s31 = sphi 0, %s33
    %s34 = sphi 0, %s31
    %s35 = sphi 0, %s34
    %s51 = sphi 0, %s35
    %s55 = sphi 0, %s55
    %s57 = sphi 0, %s55
    %s58 = sphi 0, %s57
    %s72 = sphi 0, %s58
    %s76 = sphi 0, %s76
    %s78 = sphi 0, %s76
    %s79 = sphi 0, %s78
    %s93 = sphi 0, %s79
    %s101 = sphi 0, %s103
    %s104 = sphi 0, %s101
    %s105 = sphi 0, %s104
    %s121 = sphi 0, %s105
  $region4: #{simple_unet_forward.2} parent=0 // loop_header_branch
    %12 = sbr.rel (%p10) target = $region8
  $region5: #{simple_unet_forward.2} parent=0 // loop_body
    %s14 = ssub.s32 %s9, 1
    %s15 = ssub.s32 %s9, 2
    %s22 = sadd.s32 1, %s17
    %p23 = scmp.ge.s32.totalorder %s22, 2
    %s24 = scalar_select %p23, 0, %s22
    %s25 = sadd.s32 1, %s16
    %s26 = scalar_select %p23, %s25, %s16
    %p27 = scmp.ge.s32.totalorder %s26, 2
    %s28 = scalar_select %p27, 0, %s26
    %s29 = ssub.s32 %s16, %s28
    %p30 = scmp.eq.s32.totalorder %s29, 0
    %s32 = sadd.s32 %s31, 1
    %s33 = scalar_select %p30, %s31, %s32
    %p36 = pneg %p30
    %p37 = scmp.eq.s32.totalorder %s9, 3
    %p38 = por %p36, %p37
    %p39 = scmp.ne.s32.totalorder %s31, %s34
    %p40 = scmp.eq.s32.totalorder %s9, 0
    %p41 = por %p39, %p40
    %p42 = scmp.ne.s32.totalorder %s31, %s34
    %p43 = scmp.eq.s32.totalorder %s14, 3
    %p44 = por %p42, %p43
    %p45 = scmp.ne.s32.totalorder %s34, %s35
    %p46 = scmp.eq.s32.totalorder %s14, 0
    %p47 = por %p45, %p46
    %p48 = scmp.ne.s32.totalorder %s34, %s35
    %p49 = scmp.eq.s32.totalorder %s15, 3
    %p50 = por %p48, %p49
    %p52 = scmp.ne.s32.totalorder %s35, %s51
    %p53 = scmp.eq.s32.totalorder %s15, 0
    %p54 = por %p52, %p53
    %s56 = sadd.s32 %s55, 1
    %p59 = scmp.eq.s32.totalorder %s9, 3
    %p60 = scmp.ne.s32.totalorder %s55, %s57
    %p61 = scmp.eq.s32.totalorder %s9, 0
    %p62 = por %p60, %p61
    %p63 = scmp.ne.s32.totalorder %s55, %s57
    %p64 = scmp.eq.s32.totalorder %s14, 3
    %p65 = por %p63, %p64
    %p66 = scmp.ne.s32.totalorder %s57, %s58
    %p67 = scmp.eq.s32.totalorder %s14, 0
    %p68 = por %p66, %p67
    %p69 = scmp.ne.s32.totalorder %s57, %s58
    %p70 = scmp.eq.s32.totalorder %s15, 3
    %p71 = por %p69, %p70
    %p73 = scmp.ne.s32.totalorder %s58, %s72
    %p74 = scmp.eq.s32.totalorder %s15, 0
    %p75 = por %p73, %p74
    %s77 = sadd.s32 %s76, 1
    %p80 = scmp.eq.s32.totalorder %s9, 3
    %p81 = scmp.ne.s32.totalorder %s76, %s78
    %p82 = scmp.eq.s32.totalorder %s9, 0
    %p83 = por %p81, %p82
    %p84 = scmp.ne.s32.totalorder %s76, %s78
    %p85 = scmp.eq.s32.totalorder %s14, 3
    %p86 = por %p84, %p85
    %p87 = scmp.ne.s32.totalorder %s78, %s79
    %p88 = scmp.eq.s32.totalorder %s14, 0
    %p89 = por %p87, %p88
    %p90 = scmp.ne.s32.totalorder %s78, %s79
    %p91 = scmp.eq.s32.totalorder %s15, 3
    %p92 = por %p90, %p91
    %p94 = scmp.ne.s32.totalorder %s79, %s93
    %p95 = scmp.eq.s32.totalorder %s15, 0
    %p96 = por %p94, %p95
    %s97 = ssub.s32 %s16, %s28
    %s98 = ssub.s32 %s17, %s24
    %s99 = sor.u32 %s97, %s98
    %p100 = scmp.eq.s32.totalorder %s99, 0
    %s102 = sadd.s32 %s101, 1
    %s103 = scalar_select %p100, %s101, %s102
    %p106 = pneg %p100
    %p107 = scmp.eq.s32.totalorder %s9, 3
    %p108 = por %p106, %p107
    %p109 = scmp.ne.s32.totalorder %s101, %s104
    %p110 = scmp.eq.s32.totalorder %s9, 0
    %p111 = por %p109, %p110
    %p112 = scmp.ne.s32.totalorder %s101, %s104
    %p113 = scmp.eq.s32.totalorder %s14, 3
    %p114 = por %p112, %p113
    %p115 = scmp.ne.s32.totalorder %s104, %s105
    %p116 = scmp.eq.s32.totalorder %s14, 0
    %p117 = por %p115, %p116
    %p118 = scmp.ne.s32.totalorder %s104, %s105
    %p119 = scmp.eq.s32.totalorder %s15, 3
    %p120 = por %p118, %p119
    %p122 = scmp.ne.s32.totalorder %s105, %s121
    %p123 = scmp.eq.s32.totalorder %s15, 0
    %p124 = por %p122, %p123
    %p125 = scmp.le.s32.totalorder 1, %s9
    %p126 = scmp.lt.s32.totalorder %s9, 5
    %p127 = pnand %p125, %p126
    %p128 = pneg %p127
    // Predicated region
    $region9: #{simple_unet_forward.2} parent=5 // pred_check
      _
    $region10: #{simple_unet_forward.2} parent=5 // pred_check_branch
      %130 = sbr.rel (%p127) target = $region12
    $region11: #{simple_unet_forward.2} parent=5 // pred_region
      %s131 = ssub.s32 %s9, 1
      // Predicated region
      $region13: #{simple_unet_forward.2} parent=11 // pred_check
        %p132 = pneg %p68
      $region14: #{simple_unet_forward.2} parent=11 // pred_check_branch
        %134 = sbr.rel (%p132) target = $region16
      $region15: #{simple_unet_forward.2} parent=11 // pred_region
        _
      $region16: #{simple_unet_forward.2} parent=11 // pred_fallthru
        _
      // Predicated region
      $region17: #{simple_unet_forward.2} parent=11 // pred_check
        %p135 = pneg %p89
      $region18: #{simple_unet_forward.2} parent=11 // pred_check_branch
        %137 = sbr.rel (%p135) target = $region20
      $region19: #{simple_unet_forward.2} parent=11 // pred_region
        _
      $region20: #{simple_unet_forward.2} parent=11 // pred_fallthru
        _
    $region12: #{simple_unet_forward.2} parent=5 // pred_fallthru
      _
    %p138 = scmp.lt.s32.totalorder %s9, 4
    // Predicated region
    $region21: #{simple_unet_forward.2} parent=5 // pred_check
      %p139 = pneg %p138
    $region22: #{simple_unet_forward.2} parent=5 // pred_check_branch
      %141 = sbr.rel (%p139) target = $region24
    $region23: #{simple_unet_forward.2} parent=5 // pred_region
      // Predicated region
      $region25: #{simple_unet_forward.2} parent=23 // pred_check
        %p142 = pneg %p41
      $region26: #{simple_unet_forward.2} parent=23 // pred_check_branch
        %144 = sbr.rel (%p142) target = $region28
      $region27: #{simple_unet_forward.2} parent=23 // pred_region
        %p145 = scmp.lt.s32.totalorder %s16, 1
        %s146 = scalar_select %p145, %s16, 1
        %s147 = smul.addr %s146, 54
        %s148 = smul.addr %s147, 4
        %s149 = scalar_lea.vmem %s0, %s148
      $region28: #{simple_unet_forward.2} parent=23 // pred_fallthru
        _
    $region24: #{simple_unet_forward.2} parent=5 // pred_fallthru
      _
    %p150 = scmp.le.s32.totalorder 1, %s9
    %p151 = scmp.lt.s32.totalorder %s9, 5
    %p152 = pnand %p150, %p151
    %p153 = pneg %p152
    // Predicated region
    $region29: #{simple_unet_forward.2} parent=5 // pred_check
      _
    $region30: #{simple_unet_forward.2} parent=5 // pred_check_branch
      %155 = sbr.rel (%p152) target = $region32
    $region31: #{simple_unet_forward.2} parent=5 // pred_region
      %s156 = ssub.s32 %s9, 1
      %p157 = scmp.lt.s32.totalorder %s18, 1
      %s158 = scalar_select %p157, %s18, 1
      %s159 = smul.addr %s158, 54
      %s160 = smul.addr %s159, 4
      %s161 = scalar_lea.vmem %s0, %s160
      %p162 = pneg %p47
      %p163 = pneg %p44
      %p164 = pneg %p68
      %p165 = pneg %p65
      %p166 = pneg %p89
      %p167 = pneg %p86
      %p168 = pneg %p117
      %p169 = pneg %p114
      %s170 = smul.u32 4, %s19
      %p171 = scmp.lt.s32.totalorder %s18, 1
      %s172 = scalar_select %p171, %s18, 1
      %p173 = scmp.lt.s32.totalorder %s170, 7
      %s174 = scalar_select %p173, %s170, 7
      %s175 = smul.addr %s172, 8
      %s176 = sadd.s32 %s174, %s175
      %s177 = smul.addr %s176, 4
      %s178 = scalar_lea.vmem %s3, %s177
      %p179 = scmp.lt.s32.totalorder %s18, 1
      %s180 = scalar_select %p179, %s18, 1
      %s181 = smul.addr %s180, 54
      %s182 = smul.addr %s181, 4
      %s183 = scalar_lea.vmem %s0, %s182
      %s184 = smul.u32 4, %s19
      %p185 = scmp.lt.s32.totalorder %s18, 1
      %s186 = scalar_select %p185, %s18, 1
      %p187 = scmp.lt.s32.totalorder %s184, 7
      %s188 = scalar_select %p187, %s184, 7
      %s189 = smul.addr %s186, 8
      %s190 = sadd.s32 %s188, %s189
      %s191 = smul.addr %s190, 4
      %s192 = scalar_lea.vmem %s3, %s191
      %s193 = smul.u32 4, %s19
      %s195 = smul.u32 %s19, 8
      %s196 = smul.u32 %s195, 3
      %s197 = smul.addr %s196, 4
      %s198 = scalar_lea.vmem %s183, %s197
      %v199 = vld [vmem:[%s198] sm:$0xf]
      %v200 = vld [vmem:[%s198 + $0x4] sm:$0xf]
      %v201 = vld [vmem:[%s198 + $0x8] sm:$0x1]
      %v202 = vld [vmem:[%s198 + $0xc] sm:$0xf]
      %v203 = vld [vmem:[%s198 + $0x10] sm:$0xf]
      %v204 = vld [vmem:[%s198 + $0x14] sm:$0x1]
      %v205 = vld [vmem:[%s198 + $0x18] sm:$0xf]
      %v206 = vld [vmem:[%s198 + $0x1c] sm:$0xf]
      %v207 = vld [vmem:[%s198 + $0x20] sm:$0x1]
      %v208 = vld [vmem:[%s198 + $0x24] sm:$0xf]
      %v209 = vld [vmem:[%s198 + $0x28] sm:$0xf]
      %v210 = vld [vmem:[%s198 + $0x2c] sm:$0x1]
      %v211 = vld [vmem:[%s198 + $0x30] sm:$0xf]
      %v212 = vld [vmem:[%s198 + $0x34] sm:$0xf]
      %v213 = vld [vmem:[%s198 + $0x38] sm:$0x1]
      %v214 = vld [vmem:[%s198 + $0x3c] sm:$0xf]
      %v215 = vld [vmem:[%s198 + $0x40] sm:$0xf]
      %v216 = vld [vmem:[%s198 + $0x44] sm:$0x1]
      %v217 = vld [vmem:[%s198 + $0x48] sm:$0xf]
      %v218 = vld [vmem:[%s198 + $0x4c] sm:$0xf]
      %v219 = vld [vmem:[%s198 + $0x50] sm:$0x1]
      %v220 = vld [vmem:[%s198 + $0x54] sm:$0xf]
      %v221 = vld [vmem:[%s198 + $0x58] sm:$0xf]
      %v222 = vld [vmem:[%s198 + $0x5c] sm:$0x1]
      %v223 = vld [vmem:[%s198 + $0x60] sm:$0xf]
      %v224 = vld [vmem:[%s198 + $0x64] sm:$0xf]
      %v225 = vld [vmem:[%s198 + $0x68] sm:$0x1]
      %v226 = vld [vmem:[%s198 + $0x6c] sm:$0xf]
      %v227 = vld [vmem:[%s198 + $0x70] sm:$0xf]
      %v228 = vld [vmem:[%s198 + $0x74] sm:$0x1]
      %v245 = vunpack.c.l.b16 %v199
      %v246 = vunpack.c.l.b16 %v200
      %v247 = vunpack.c.l.b16 %v202
      %v248 = vunpack.c.l.b16 %v203
      %v249 = vunpack.c.l.b16 %v205
      %v250 = vunpack.c.l.b16 %v206
      %v251 = vunpack.c.l.b16 %v208
      %v252 = vunpack.c.l.b16 %v209
      %v253 = vunpack.c.l.b16 %v211
      %v254 = vunpack.c.l.b16 %v212
      %v255 = vunpack.c.l.b16 %v214
      %v256 = vunpack.c.l.b16 %v215
      %v257 = vunpack.c.l.b16 %v217
      %v258 = vunpack.c.l.b16 %v218
      %v259 = vunpack.c.l.b16 %v220
      %v260 = vunpack.c.l.b16 %v221
      %v261 = vpack.c.b16 %v246, %v245
      %v262 = vpack.c.b16 %v248, %v247
      %v263 = vpack.c.b16 %v250, %v249
      %v264 = vpack.c.b16 %v252, %v251
      %v265 = vpack.c.b16 %v254, %v253
      %v266 = vpack.c.b16 %v256, %v255
      %v267 = vpack.c.b16 %v258, %v257
      %v268 = vpack.c.b16 %v260, %v259
      %v277 = vunpack.c.l.b16 %v201
      %v278 = vunpack.c.l.b16 %v204
      %v279 = vunpack.c.l.b16 %v207
      %v280 = vunpack.c.l.b16 %v210
      %v281 = vunpack.c.l.b16 %v213
      %v282 = vunpack.c.l.b16 %v216
      %v283 = vunpack.c.l.b16 %v219
      %v284 = vunpack.c.l.b16 %v222
      %v285 = vpack.c.b16 %v277, %v277
      %v286 = vpack.c.b16 %v278, %v278
      %v287 = vpack.c.b16 %v279, %v279
      %v288 = vpack.c.b16 %v280, %v280
      %v289 = vpack.c.b16 %v281, %v281
      %v290 = vpack.c.b16 %v282, %v282
      %v291 = vpack.c.b16 %v283, %v283
      %v292 = vpack.c.b16 %v284, %v284
      %vm293 = vsmask.f32 7424
      %v295 = vshrl.u32 %v261, 16
      %v297 = vshll.u32 %v261, 16
      %v299 = vrot.slane %v297, 1
      %v300 = vor.u32 %v295, %v299
      %v302 = vshll.u32 %v285, 16
      %v304 = vrot.slane %v302, 1
      %v305 = vsel %vm293, %v300, %v304
      %v307 = vshrl.u32 %v262, 16
      %v309 = vshll.u32 %v262, 16
      %v311 = vrot.slane %v309, 1
      %v312 = vor.u32 %v307, %v311
      %v314 = vshll.u32 %v286, 16
      %v316 = vrot.slane %v314, 1
      %v317 = vsel %vm293, %v312, %v316
      %v319 = vshrl.u32 %v263, 16
      %v321 = vshll.u32 %v263, 16
      %v323 = vrot.slane %v321, 1
      %v324 = vor.u32 %v319, %v323
      %v326 = vshll.u32 %v287, 16
      %v328 = vrot.slane %v326, 1
      %v329 = vsel %vm293, %v324, %v328
      %v331 = vshrl.u32 %v264, 16
      %v333 = vshll.u32 %v264, 16
      %v335 = vrot.slane %v333, 1
      %v336 = vor.u32 %v331, %v335
      %v338 = vshll.u32 %v288, 16
      %v340 = vrot.slane %v338, 1
      %v341 = vsel %vm293, %v336, %v340
      %v343 = vshrl.u32 %v265, 16
      %v345 = vshll.u32 %v265, 16
      %v347 = vrot.slane %v345, 1
      %v348 = vor.u32 %v343, %v347
      %v350 = vshll.u32 %v289, 16
      %v352 = vrot.slane %v350, 1
      %v353 = vsel %vm293, %v348, %v352
      %v355 = vshrl.u32 %v266, 16
      %v357 = vshll.u32 %v266, 16
      %v359 = vrot.slane %v357, 1
      %v360 = vor.u32 %v355, %v359
      %v362 = vshll.u32 %v290, 16
      %v364 = vrot.slane %v362, 1
      %v365 = vsel %vm293, %v360, %v364
      %v367 = vshrl.u32 %v267, 16
      %v369 = vshll.u32 %v267, 16
      %v371 = vrot.slane %v369, 1
      %v372 = vor.u32 %v367, %v371
      %v374 = vshll.u32 %v291, 16
      %v376 = vrot.slane %v374, 1
      %v377 = vsel %vm293, %v372, %v376
      %v379 = vshrl.u32 %v268, 16
      %v381 = vshll.u32 %v268, 16
      %v383 = vrot.slane %v381, 1
      %v384 = vor.u32 %v379, %v383
      %v386 = vshll.u32 %v292, 16
      %v388 = vrot.slane %v386, 1
      %v389 = vsel %vm293, %v384, %v388
      %390 = vrot.lane.b32.xlu0 %v305, 3
      %v391 = vpop.permute.xlu0 %390
      %392 = vrot.lane.b32.xlu0 %v317, 3
      %v393 = vpop.permute.xlu0 %392
      %394 = vrot.lane.b32.xlu0 %v329, 3
      %v395 = vpop.permute.xlu0 %394
      %396 = vrot.lane.b32.xlu0 %v341, 3
      %v397 = vpop.permute.xlu0 %396
      %398 = vrot.lane.b32.xlu0 %v353, 3
      %v399 = vpop.permute.xlu0 %398
      %400 = vrot.lane.b32.xlu0 %v365, 3
      %v401 = vpop.permute.xlu0 %400
      %402 = vrot.lane.b32.xlu0 %v377, 3
      %v403 = vpop.permute.xlu0 %402
      %404 = vrot.lane.b32.xlu0 %v389, 3
      %v405 = vpop.permute.xlu0 %404
      %vm406 = vcmask 1046528
      %v407 = vrot.slane %v261, 1
      %v408 = vrot.slane %v285, 1
      %v409 = vsel %vm406, %v407, %v408
      %v410 = vrot.slane %v262, 1
      %v411 = vrot.slane %v286, 1
      %v412 = vsel %vm406, %v410, %v411
      %v413 = vrot.slane %v263, 1
      %v414 = vrot.slane %v287, 1
      %v415 = vsel %vm406, %v413, %v414
      %v416 = vrot.slane %v264, 1
      %v417 = vrot.slane %v288, 1
      %v418 = vsel %vm406, %v416, %v417
      %v419 = vrot.slane %v265, 1
      %v420 = vrot.slane %v289, 1
      %v421 = vsel %vm406, %v419, %v420
      %v422 = vrot.slane %v266, 1
      %v423 = vrot.slane %v290, 1
      %v424 = vsel %vm406, %v422, %v423
      %v425 = vrot.slane %v267, 1
      %v426 = vrot.slane %v291, 1
      %v427 = vsel %vm406, %v425, %v426
      %v428 = vrot.slane %v268, 1
      %v429 = vrot.slane %v292, 1
      %v430 = vsel %vm406, %v428, %v429
      %431 = vrot.lane.b32.xlu0 %v409, 6
      %v432 = vpop.permute.xlu0 %431
      %433 = vrot.lane.b32.xlu0 %v412, 6
      %v434 = vpop.permute.xlu0 %433
      %435 = vrot.lane.b32.xlu0 %v415, 6
      %v436 = vpop.permute.xlu0 %435
      %437 = vrot.lane.b32.xlu0 %v418, 6
      %v438 = vpop.permute.xlu0 %437
      %439 = vrot.lane.b32.xlu0 %v421, 6
      %v440 = vpop.permute.xlu0 %439
      %441 = vrot.lane.b32.xlu0 %v424, 6
      %v442 = vpop.permute.xlu0 %441
      %443 = vrot.lane.b32.xlu0 %v427, 6
      %v444 = vpop.permute.xlu0 %443
      %445 = vrot.lane.b32.xlu0 %v430, 6
      %v446 = vpop.permute.xlu0 %445
      %v449 = vunpack.c.l.b16 %v223
      %v450 = vunpack.c.l.b16 %v224
      %v451 = vpack.c.b16 %v450, %v449
      %452 = vrot.lane.b32.xlu0 %v262, 9
      %v453 = vpop.permute.xlu0 %452
      %454 = vrot.lane.b32.xlu0 %v263, 9
      %v455 = vpop.permute.xlu0 %454
      %456 = vrot.lane.b32.xlu0 %v264, 9
      %v457 = vpop.permute.xlu0 %456
      %458 = vrot.lane.b32.xlu0 %v265, 9
      %v459 = vpop.permute.xlu0 %458
      %460 = vrot.lane.b32.xlu0 %v266, 9
      %v461 = vpop.permute.xlu0 %460
      %462 = vrot.lane.b32.xlu0 %v267, 9
      %v463 = vpop.permute.xlu0 %462
      %464 = vrot.lane.b32.xlu0 %v268, 9
      %v465 = vpop.permute.xlu0 %464
      %466 = vrot.lane.b32.xlu0 %v451, 9
      %v467 = vpop.permute.xlu0 %466
      %v469 = vunpack.c.l.b16 %v225
      %v470 = vpack.c.b16 %v469, %v469
      %v472 = vshrl.u32 %v451, 16
      %v474 = vshll.u32 %v451, 16
      %v476 = vrot.slane %v474, 1
      %v477 = vor.u32 %v472, %v476
      %v479 = vshll.u32 %v470, 16
      %v481 = vrot.slane %v479, 1
      %v482 = vsel %vm293, %v477, %v481
      %483 = vrot.lane.b32.xlu0 %v317, 12
      %v484 = vpop.permute.xlu0 %483
      %485 = vrot.lane.b32.xlu0 %v329, 12
      %v486 = vpop.permute.xlu0 %485
      %487 = vrot.lane.b32.xlu0 %v341, 12
      %v488 = vpop.permute.xlu0 %487
      %489 = vrot.lane.b32.xlu0 %v353, 12
      %v490 = vpop.permute.xlu0 %489
      %491 = vrot.lane.b32.xlu0 %v365, 12
      %v492 = vpop.permute.xlu0 %491
      %493 = vrot.lane.b32.xlu0 %v377, 12
      %v494 = vpop.permute.xlu0 %493
      %495 = vrot.lane.b32.xlu0 %v389, 12
      %v496 = vpop.permute.xlu0 %495
      %497 = vrot.lane.b32.xlu0 %v482, 12
      %v498 = vpop.permute.xlu0 %497
      %v499 = vrot.slane %v451, 1
      %v500 = vrot.slane %v470, 1
      %v501 = vsel %vm406, %v499, %v500
      %502 = vrot.lane.b32.xlu0 %v412, 15
      %v503 = vpop.permute.xlu0 %502
      %504 = vrot.lane.b32.xlu0 %v415, 15
      %v505 = vpop.permute.xlu0 %504
      %506 = vrot.lane.b32.xlu0 %v418, 15
      %v507 = vpop.permute.xlu0 %506
      %508 = vrot.lane.b32.xlu0 %v421, 15
      %v509 = vpop.permute.xlu0 %508
      %510 = vrot.lane.b32.xlu0 %v424, 15
      %v511 = vpop.permute.xlu0 %510
      %512 = vrot.lane.b32.xlu0 %v427, 15
      %v513 = vpop.permute.xlu0 %512
      %514 = vrot.lane.b32.xlu0 %v430, 15
      %v515 = vpop.permute.xlu0 %514
      %516 = vrot.lane.b32.xlu0 %v501, 15
      %v517 = vpop.permute.xlu0 %516
      %v520 = vunpack.c.l.b16 %v226
      %v521 = vunpack.c.l.b16 %v227
      %v522 = vpack.c.b16 %v521, %v520
      %523 = vrot.lane.b32.xlu0 %v263, 18
      %v524 = vpop.permute.xlu0 %523
      %525 = vrot.lane.b32.xlu0 %v264, 18
      %v526 = vpop.permute.xlu0 %525
      %527 = vrot.lane.b32.xlu0 %v265, 18
      %v528 = vpop.permute.xlu0 %527
      %529 = vrot.lane.b32.xlu0 %v266, 18
      %v530 = vpop.permute.xlu0 %529
      %531 = vrot.lane.b32.xlu0 %v267, 18
      %v532 = vpop.permute.xlu0 %531
      %533 = vrot.lane.b32.xlu0 %v268, 18
      %v534 = vpop.permute.xlu0 %533
      %535 = vrot.lane.b32.xlu0 %v451, 18
      %v536 = vpop.permute.xlu0 %535
      %537 = vrot.lane.b32.xlu0 %v522, 18
      %v538 = vpop.permute.xlu0 %537
      %v540 = vunpack.c.l.b16 %v228
      %v541 = vpack.c.b16 %v540, %v540
      %v543 = vshrl.u32 %v522, 16
      %v545 = vshll.u32 %v522, 16
      %v547 = vrot.slane %v545, 1
      %v548 = vor.u32 %v543, %v547
      %v550 = vshll.u32 %v541, 16
      %v552 = vrot.slane %v550, 1
      %v553 = vsel %vm293, %v548, %v552
      %554 = vrot.lane.b32.xlu0 %v329, 21
      %v555 = vpop.permute.xlu0 %554
      %556 = vrot.lane.b32.xlu0 %v341, 21
      %v557 = vpop.permute.xlu0 %556
      %558 = vrot.lane.b32.xlu0 %v353, 21
      %v559 = vpop.permute.xlu0 %558
      %560 = vrot.lane.b32.xlu0 %v365, 21
      %v561 = vpop.permute.xlu0 %560
      %562 = vrot.lane.b32.xlu0 %v377, 21
      %v563 = vpop.permute.xlu0 %562
      %564 = vrot.lane.b32.xlu0 %v389, 21
      %v565 = vpop.permute.xlu0 %564
      %566 = vrot.lane.b32.xlu0 %v482, 21
      %v567 = vpop.permute.xlu0 %566
      %568 = vrot.lane.b32.xlu0 %v553, 21
      %v569 = vpop.permute.xlu0 %568
      %v570 = vrot.slane %v522, 1
      %v571 = vrot.slane %v541, 1
      %v572 = vsel %vm406, %v570, %v571
      %573 = vrot.lane.b32.xlu0 %v415, 24
      %v574 = vpop.permute.xlu0 %573
      %575 = vrot.lane.b32.xlu0 %v418, 24
      %v576 = vpop.permute.xlu0 %575
      %577 = vrot.lane.b32.xlu0 %v421, 24
      %v578 = vpop.permute.xlu0 %577
      %579 = vrot.lane.b32.xlu0 %v424, 24
      %v580 = vpop.permute.xlu0 %579
      %581 = vrot.lane.b32.xlu0 %v427, 24
      %v582 = vpop.permute.xlu0 %581
      %583 = vrot.lane.b32.xlu0 %v430, 24
      %v584 = vpop.permute.xlu0 %583
      %585 = vrot.lane.b32.xlu0 %v501, 24
      %v586 = vpop.permute.xlu0 %585
      %587 = vrot.lane.b32.xlu0 %v572, 24
      %v588 = vpop.permute.xlu0 %587
      %vm589 = vcmask 23552
      %v591 = vsel %vm589, %v261, %v391
      %v593 = vsel %vm589, %v262, %v393
      %v595 = vsel %vm589, %v263, %v395
      %v597 = vsel %vm589, %v264, %v397
      %v599 = vsel %vm589, %v265, %v399
      %v601 = vsel %vm589, %v266, %v401
      %v603 = vsel %vm589, %v267, %v403
      %v605 = vsel %vm589, %v268, %v405
      %vm606 = vcmask 48128
      %v608 = vsel %vm606, %v591, %v432
      %v610 = vsel %vm606, %v593, %v434
      %v612 = vsel %vm606, %v595, %v436
      %v614 = vsel %vm606, %v597, %v438
      %v616 = vsel %vm606, %v599, %v440
      %v618 = vsel %vm606, %v601, %v442
      %v620 = vsel %vm606, %v603, %v444
      %v622 = vsel %vm606, %v605, %v446
      %vm623 = vcmask 72704
      %v625 = vsel %vm623, %v608, %v453
      %v627 = vsel %vm623, %v610, %v455
      %v629 = vsel %vm623, %v612, %v457
      %v631 = vsel %vm623, %v614, %v459
      %v633 = vsel %vm623, %v616, %v461
      %v635 = vsel %vm623, %v618, %v463
      %v637 = vsel %vm623, %v620, %v465
      %v639 = vsel %vm623, %v622, %v467
      %vm640 = vcmask 97280
      %v642 = vsel %vm640, %v625, %v484
      %v644 = vsel %vm640, %v627, %v486
      %v646 = vsel %vm640, %v629, %v488
      %v648 = vsel %vm640, %v631, %v490
      %v650 = vsel %vm640, %v633, %v492
      %v652 = vsel %vm640, %v635, %v494
      %v654 = vsel %vm640, %v637, %v496
      %v656 = vsel %vm640, %v639, %v498
      %vm657 = vcmask 121856
      %v659 = vsel %vm657, %v642, %v503
      %v661 = vsel %vm657, %v644, %v505
      %v663 = vsel %vm657, %v646, %v507
      %v665 = vsel %vm657, %v648, %v509
      %v667 = vsel %vm657, %v650, %v511
      %v669 = vsel %vm657, %v652, %v513
      %v671 = vsel %vm657, %v654, %v515
      %v673 = vsel %vm657, %v656, %v517
      %vm674 = vcmask 146432
      %v676 = vsel %vm674, %v659, %v524
      %v678 = vsel %vm674, %v661, %v526
      %v680 = vsel %vm674, %v663, %v528
      %v682 = vsel %vm674, %v665, %v530
      %v684 = vsel %vm674, %v667, %v532
      %v686 = vsel %vm674, %v669, %v534
      %v688 = vsel %vm674, %v671, %v536
      %v690 = vsel %vm674, %v673, %v538
      %vm691 = vcmask 171008
      %v693 = vsel %vm691, %v676, %v555
      %v695 = vsel %vm691, %v678, %v557
      %v697 = vsel %vm691, %v680, %v559
      %v699 = vsel %vm691, %v682, %v561
      %v701 = vsel %vm691, %v684, %v563
      %v703 = vsel %vm691, %v686, %v565
      %v705 = vsel %vm691, %v688, %v567
      %v707 = vsel %vm691, %v690, %v569
      %vm708 = vcmask 195584
      %v710 = vsel %vm708, %v693, %v574
      %v712 = vsel %vm708, %v695, %v576
      %v714 = vsel %vm708, %v697, %v578
      %v716 = vsel %vm708, %v699, %v580
      %v718 = vsel %vm708, %v701, %v582
      %v720 = vsel %vm708, %v703, %v584
      %v722 = vsel %vm708, %v705, %v586
      %v724 = vsel %vm708, %v707, %v588
      %vm725 = vcmask 220160
      %v727 = vsel %vm725, %v710, 0
      %v728 = vsel %vm725, %v712, 0
      %v729 = vsel %vm725, %v714, 0
      %v730 = vsel %vm725, %v716, 0
      %v731 = vsel %vm725, %v718, 0
      %v732 = vsel %vm725, %v720, 0
      %v733 = vsel %vm725, %v722, 0
      %v734 = vsel %vm725, %v724, 0
      %v735 = vld [vmem:[%s1] sm:$0xf]
      %v736 = vld [vmem:[%s1 + $0x4] sm:$0xf]
      %v737 = vld [vmem:[%s1 + $0x8] sm:$0xf]
      %v738 = vld [vmem:[%s1 + $0xc] sm:$0xf]
      %v739 = vld [vmem:[%s2] sm:$0x1]
      %v741 = vlaneseq
      %v742 = vshrl.u32 %v741, 7
      %v743 = vsub.s32 0, %v742
      %v744 = vrot.slane %v739, %v743
      %v750 = vunpack.c.l.b16 %v735
      %v751 = vunpack.c.l.b16 %v736
      %v752 = vunpack.c.l.b16 %v737
      %v753 = vunpack.c.l.b16 %v738
      %v754 = vpack.c.b16 %v751, %v750
      %v755 = vpack.c.b16 %v753, %v752
      %vm758 = vcmask 261120
      %v759 = vsel %vm758, %v727, 0
      %v761 = vsel %vm758, %v728, 0
      %v763 = vsel %vm758, %v729, 0
      %v765 = vsel %vm758, %v730, 0
      %v767 = vsel %vm758, %v731, 0
      %v769 = vsel %vm758, %v732, 0
      %v771 = vsel %vm758, %v733, 0
      %v773 = vsel %vm758, %v734, 0
      %775 = vmatprep.subr.bf16.mxu0 0
      %776 = vmatpush1.bf16.msra.mxu0 0
      %777 = vmatprep.subr.bf16.mxu0 0
      %778 = vmatpush1.bf16.msra.mxu0 0
      %779 = vmatprep.subr.bf16.mxu0 0
      %780 = vmatpush1.bf16.msra.mxu0 0
      %781 = vmatprep.subr.bf16.mxu0 0
      %782 = vmatpush1.bf16.msra.mxu0 0
      %783 = vmatprep.subr.bf16.mxu0 0
      %784 = vmatpush1.bf16.msra.mxu0 0
      %785 = vmatprep.subr.bf16.mxu0 0
      %786 = vmatpush1.bf16.msra.mxu0 0
      %787 = vmatprep.subr.bf16.mxu0 0
      %788 = vmatpush1.bf16.msra.mxu0 %v755
      %789 = vmatprep.subr.bf16.mxu0 0
      %790 = vmatpush1.bf16.msra.mxu0 %v754
      %791 = vmatprep.subr.bf16.mxu0 0
      %792 = vmatpush2.bf16.msra.mxu0 0
      %793 = vmatprep.subr.bf16.mxu0 0
      %794 = vmatpush2.bf16.msra.mxu0 0
      %795 = vmatprep.subr.bf16.mxu0 0
      %796 = vmatpush2.bf16.msra.mxu0 0
      %797 = vmatprep.subr.bf16.mxu0 0
      %798 = vmatpush2.bf16.msra.mxu0 0
      %799 = vmatprep.subr.bf16.mxu0 0
      %800 = vmatpush2.bf16.msra.mxu0 0
      %801 = vmatprep.subr.bf16.mxu0 0
      %802 = vmatpush2.bf16.msra.mxu0 0
      %803 = vmatprep.subr.bf16.mxu0 0
      %804 = vmatpush2.bf16.msra.mxu0 0
      %805 = vmatprep.subr.bf16.mxu0 0
      %806 = vmatpush2.bf16.msra.mxu0 0
      %807 = vmatprep.mubr.bf16.mxu0 0
      %808 = vmatmul.mubr.bf16.gmra.mxu0 %v759
      %v809 = vpop.f32.mrf.mxu0
      %v810 = vadd.f32 %v744, %v809
      %v811 = vpop.f32.mrf.mxu0
      %v812 = vpop.f32.mrf.mxu0
      %v813 = vadd.f32 %v744, %v812
      %v814 = vpop.f32.mrf.mxu0
      %815 = vmatprep.mubr.bf16.mxu0 0
      %816 = vmatmul.mubr.bf16.gmra.mxu0 %v761
      %v817 = vpop.f32.mrf.mxu0
      %v818 = vadd.f32 %v744, %v817
      %v819 = vpop.f32.mrf.mxu0
      %v820 = vpop.f32.mrf.mxu0
      %v821 = vadd.f32 %v744, %v820
      %v822 = vpop.f32.mrf.mxu0
      %823 = vmatprep.mubr.bf16.mxu0 0
      %824 = vmatmul.mubr.bf16.gmra.mxu0 %v763
      %v825 = vpop.f32.mrf.mxu0
      %v826 = vadd.f32 %v744, %v825
      %v827 = vpop.f32.mrf.mxu0
      %v828 = vpop.f32.mrf.mxu0
      %v829 = vadd.f32 %v744, %v828
      %v830 = vpop.f32.mrf.mxu0
      %831 = vmatprep.mubr.bf16.mxu0 0
      %832 = vmatmul.mubr.bf16.gmra.mxu0 %v765
      %v833 = vpop.f32.mrf.mxu0
      %v834 = vadd.f32 %v744, %v833
      %v835 = vpop.f32.mrf.mxu0
      %v836 = vpop.f32.mrf.mxu0
      %v837 = vadd.f32 %v744, %v836
      %v838 = vpop.f32.mrf.mxu0
      %839 = vmatprep.mubr.bf16.mxu0 0
      %840 = vmatmul.mubr.bf16.gmra.mxu0 %v767
      %v841 = vpop.f32.mrf.mxu0
      %v842 = vadd.f32 %v744, %v841
      %v843 = vpop.f32.mrf.mxu0
      %v844 = vpop.f32.mrf.mxu0
      %v845 = vadd.f32 %v744, %v844
      %v846 = vpop.f32.mrf.mxu0
      %847 = vmatprep.mubr.bf16.mxu0 0
      %848 = vmatmul.mubr.bf16.gmra.mxu0 %v769
      %v849 = vpop.f32.mrf.mxu0
      %v850 = vadd.f32 %v744, %v849
      %v851 = vpop.f32.mrf.mxu0
      %v852 = vpop.f32.mrf.mxu0
      %v853 = vadd.f32 %v744, %v852
      %v854 = vpop.f32.mrf.mxu0
      %855 = vmatprep.mubr.bf16.mxu0 0
      %856 = vmatmul.mubr.bf16.gmra.mxu0 %v771
      %v857 = vpop.f32.mrf.mxu0
      %v858 = vadd.f32 %v744, %v857
      %v859 = vpop.f32.mrf.mxu0
      %v860 = vpop.f32.mrf.mxu0
      %v861 = vadd.f32 %v744, %v860
      %v862 = vpop.f32.mrf.mxu0
      %863 = vmatprep.mubr.bf16.mxu0 0
      %864 = vmatmul.mubr.bf16.gmra.mxu0 %v773
      %v865 = vpop.f32.mrf.mxu0
      %v866 = vadd.f32 %v744, %v865
      %v867 = vpop.f32.mrf.mxu0
      %v868 = vpop.f32.mrf.mxu0
      %v869 = vadd.f32 %v744, %v868
      %v870 = vpop.f32.mrf.mxu0
      %871 = vdwg.mxu0
      %v872 = vmax.f32 %v810, 0.0
      %v873 = vmax.f32 %v813, 0.0
      %v874 = vmax.f32 %v818, 0.0
      %v875 = vmax.f32 %v821, 0.0
      %v876 = vmax.f32 %v826, 0.0
      %v877 = vmax.f32 %v829, 0.0
      %v878 = vmax.f32 %v834, 0.0
      %v879 = vmax.f32 %v837, 0.0
      %v880 = vmax.f32 %v842, 0.0
      %v881 = vmax.f32 %v845, 0.0
      %v882 = vmax.f32 %v850, 0.0
      %v883 = vmax.f32 %v853, 0.0
      %v884 = vmax.f32 %v858, 0.0
      %v885 = vmax.f32 %v861, 0.0
      %v886 = vmax.f32 %v866, 0.0
      %v887 = vmax.f32 %v869, 0.0
      %v888 = vmax.f32 %v872, %v874
      %v889 = vmax.f32 %v873, %v875
      %v890 = vmax.f32 %v876, %v878
      %v891 = vmax.f32 %v877, %v879
      %v892 = vmax.f32 %v880, %v882
      %v893 = vmax.f32 %v881, %v883
      %v894 = vmax.f32 %v884, %v886
      %v895 = vmax.f32 %v885, %v887
      %v904 = vcombine.high %v888, %v888
      %v906 = vunpack.c.l.s4 1983009808
      %v907 = vunpack.c.0.s8 %v906
      %v908 = vlaneseq
      %v909 = vshrl.u32 %v908, 7
      %v910 = vsub.s32 %v907, %v909
      %v911 = vrot.slane %v888, %v910
      %v913 = vunpack.c.l.s4 1983009808
      %v914 = vunpack.c.0.s8 %v913
      %v915 = vlaneseq
      %v916 = vshrl.u32 %v915, 7
      %v917 = vsub.s32 %v914, %v916
      %v918 = vrot.slane %v904, %v917
      %v919 = vcombine.high %v911, %v911
      %v920 = vcombine.high %v918, %v918
      %v921 = vcombine.high %v889, %v889
      %v923 = vunpack.c.l.s4 1983009808
      %v924 = vunpack.c.0.s8 %v923
      %v925 = vlaneseq
      %v926 = vshrl.u32 %v925, 7
      %v927 = vsub.s32 %v924, %v926
      %v928 = vrot.slane %v889, %v927
      %v930 = vunpack.c.l.s4 1983009808
      %v931 = vunpack.c.0.s8 %v930
      %v932 = vlaneseq
      %v933 = vshrl.u32 %v932, 7
      %v934 = vsub.s32 %v931, %v933
      %v935 = vrot.slane %v921, %v934
      %v936 = vcombine.high %v928, %v928
      %v937 = vcombine.high %v935, %v935
      %v938 = vcombine.high %v890, %v890
      %v940 = vunpack.c.l.s4 1983009808
      %v941 = vunpack.c.0.s8 %v940
      %v942 = vlaneseq
      %v943 = vshrl.u32 %v942, 7
      %v944 = vsub.s32 %v941, %v943
      %v945 = vrot.slane %v890, %v944
      %v947 = vunpack.c.l.s4 1983009808
      %v948 = vunpack.c.0.s8 %v947
      %v949 = vlaneseq
      %v950 = vshrl.u32 %v949, 7
      %v951 = vsub.s32 %v948, %v950
      %v952 = vrot.slane %v938, %v951
      %v953 = vcombine.high %v945, %v945
      %v954 = vcombine.high %v952, %v952
      %v955 = vcombine.high %v891, %v891
      %v957 = vunpack.c.l.s4 1983009808
      %v958 = vunpack.c.0.s8 %v957
      %v959 = vlaneseq
      %v960 = vshrl.u32 %v959, 7
      %v961 = vsub.s32 %v958, %v960
      %v962 = vrot.slane %v891, %v961
      %v964 = vunpack.c.l.s4 1983009808
      %v965 = vunpack.c.0.s8 %v964
      %v966 = vlaneseq
      %v967 = vshrl.u32 %v966, 7
      %v968 = vsub.s32 %v965, %v967
      %v969 = vrot.slane %v955, %v968
      %v970 = vcombine.high %v962, %v962
      %v971 = vcombine.high %v969, %v969
      %v972 = vcombine.high %v892, %v892
      %v974 = vunpack.c.l.s4 1983009808
      %v975 = vunpack.c.0.s8 %v974
      %v976 = vlaneseq
      %v977 = vshrl.u32 %v976, 7
      %v978 = vsub.s32 %v975, %v977
      %v979 = vrot.slane %v892, %v978
      %v981 = vunpack.c.l.s4 1983009808
      %v982 = vunpack.c.0.s8 %v981
      %v983 = vlaneseq
      %v984 = vshrl.u32 %v983, 7
      %v985 = vsub.s32 %v982, %v984
      %v986 = vrot.slane %v972, %v985
      %v987 = vcombine.high %v979, %v979
      %v988 = vcombine.high %v986, %v986
      %v989 = vcombine.high %v893, %v893
      %v991 = vunpack.c.l.s4 1983009808
      %v992 = vunpack.c.0.s8 %v991
      %v993 = vlaneseq
      %v994 = vshrl.u32 %v993, 7
      %v995 = vsub.s32 %v992, %v994
      %v996 = vrot.slane %v893, %v995
      %v998 = vunpack.c.l.s4 1983009808
      %v999 = vunpack.c.0.s8 %v998
      %v1000 = vlaneseq
      %v1001 = vshrl.u32 %v1000, 7
      %v1002 = vsub.s32 %v999, %v1001
      %v1003 = vrot.slane %v989, %v1002
      %v1004 = vcombine.high %v996, %v996
      %v1005 = vcombine.high %v1003, %v1003
      %v1006 = vcombine.high %v894, %v894
      %v1008 = vunpack.c.l.s4 1983009808
      %v1009 = vunpack.c.0.s8 %v1008
      %v1010 = vlaneseq
      %v1011 = vshrl.u32 %v1010, 7
      %v1012 = vsub.s32 %v1009, %v1011
      %v1013 = vrot.slane %v894, %v1012
      %v1015 = vunpack.c.l.s4 1983009808
      %v1016 = vunpack.c.0.s8 %v1015
      %v1017 = vlaneseq
      %v1018 = vshrl.u32 %v1017, 7
      %v1019 = vsub.s32 %v1016, %v1018
      %v1020 = vrot.slane %v1006, %v1019
      %v1021 = vcombine.high %v1013, %v1013
      %v1022 = vcombine.high %v1020, %v1020
      %v1023 = vcombine.high %v895, %v895
      %v1025 = vunpack.c.l.s4 1983009808
      %v1026 = vunpack.c.0.s8 %v1025
      %v1027 = vlaneseq
      %v1028 = vshrl.u32 %v1027, 7
      %v1029 = vsub.s32 %v1026, %v1028
      %v1030 = vrot.slane %v895, %v1029
      %v1032 = vunpack.c.l.s4 1983009808
      %v1033 = vunpack.c.0.s8 %v1032
      %v1034 = vlaneseq
      %v1035 = vshrl.u32 %v1034, 7
      %v1036 = vsub.s32 %v1033, %v1035
      %v1037 = vrot.slane %v1023, %v1036
      %v1038 = vcombine.high %v1030, %v1030
      %v1039 = vcombine.high %v1037, %v1037
      %v1072 = vrot.slane %v911, 7
      %v1073 = vrot.slane %v1072, 2
      %v1074 = vrot.slane %v919, 7
      %v1075 = vrot.slane %v1074, 2
      %v1076 = vrot.slane %v918, 7
      %v1077 = vrot.slane %v1076, 2
      %v1078 = vrot.slane %v920, 7
      %v1079 = vrot.slane %v1078, 2
      %v1080 = vrot.slane %v928, 7
      %v1081 = vrot.slane %v1080, 2
      %v1082 = vrot.slane %v936, 7
      %v1083 = vrot.slane %v1082, 2
      %v1084 = vrot.slane %v935, 7
      %v1085 = vrot.slane %v1084, 2
      %v1086 = vrot.slane %v937, 7
      %v1087 = vrot.slane %v1086, 2
      %v1088 = vrot.slane %v945, 7
      %v1089 = vrot.slane %v1088, 2
      %v1090 = vrot.slane %v953, 7
      %v1091 = vrot.slane %v1090, 2
      %v1092 = vrot.slane %v952, 7
      %v1093 = vrot.slane %v1092, 2
      %v1094 = vrot.slane %v954, 7
      %v1095 = vrot.slane %v1094, 2
      %v1096 = vrot.slane %v962, 7
      %v1097 = vrot.slane %v1096, 2
      %v1098 = vrot.slane %v970, 7
      %v1099 = vrot.slane %v1098, 2
      %v1100 = vrot.slane %v969, 7
      %v1101 = vrot.slane %v1100, 2
      %v1102 = vrot.slane %v971, 7
      %v1103 = vrot.slane %v1102, 2
      %v1104 = vrot.slane %v979, 7
      %v1105 = vrot.slane %v1104, 2
      %v1106 = vrot.slane %v987, 7
      %v1107 = vrot.slane %v1106, 2
      %v1108 = vrot.slane %v986, 7
      %v1109 = vrot.slane %v1108, 2
      %v1110 = vrot.slane %v988, 7
      %v1111 = vrot.slane %v1110, 2
      %v1112 = vrot.slane %v996, 7
      %v1113 = vrot.slane %v1112, 2
      %v1114 = vrot.slane %v1004, 7
      %v1115 = vrot.slane %v1114, 2
      %v1116 = vrot.slane %v1003, 7
      %v1117 = vrot.slane %v1116, 2
      %v1118 = vrot.slane %v1005, 7
      %v1119 = vrot.slane %v1118, 2
      %v1120 = vrot.slane %v1013, 7
      %v1121 = vrot.slane %v1120, 2
      %v1122 = vrot.slane %v1021, 7
      %v1123 = vrot.slane %v1122, 2
      %v1124 = vrot.slane %v1020, 7
      %v1125 = vrot.slane %v1124, 2
      %v1126 = vrot.slane %v1022, 7
      %v1127 = vrot.slane %v1126, 2
      %v1128 = vrot.slane %v1030, 7
      %v1129 = vrot.slane %v1128, 2
      %v1130 = vrot.slane %v1038, 7
      %v1131 = vrot.slane %v1130, 2
      %v1132 = vrot.slane %v1037, 7
      %v1133 = vrot.slane %v1132, 2
      %v1134 = vrot.slane %v1039, 7
      %v1135 = vrot.slane %v1134, 2
      %v1168 = vmax.f32 %v911, %v1073
      %v1169 = vmax.f32 %v919, %v1075
      %v1170 = vmax.f32 %v918, %v1077
      %v1171 = vmax.f32 %v920, %v1079
      %v1172 = vmax.f32 %v928, %v1081
      %v1173 = vmax.f32 %v936, %v1083
      %v1174 = vmax.f32 %v935, %v1085
      %v1175 = vmax.f32 %v937, %v1087
      %v1176 = vmax.f32 %v945, %v1089
      %v1177 = vmax.f32 %v953, %v1091
      %v1178 = vmax.f32 %v952, %v1093
      %v1179 = vmax.f32 %v954, %v1095
      %v1180 = vmax.f32 %v962, %v1097
      %v1181 = vmax.f32 %v970, %v1099
      %v1182 = vmax.f32 %v969, %v1101
      %v1183 = vmax.f32 %v971, %v1103
      %v1184 = vmax.f32 %v979, %v1105
      %v1185 = vmax.f32 %v987, %v1107
      %v1186 = vmax.f32 %v986, %v1109
      %v1187 = vmax.f32 %v988, %v1111
      %v1188 = vmax.f32 %v996, %v1113
      %v1189 = vmax.f32 %v1004, %v1115
      %v1190 = vmax.f32 %v1003, %v1117
      %v1191 = vmax.f32 %v1005, %v1119
      %v1192 = vmax.f32 %v1013, %v1121
      %v1193 = vmax.f32 %v1021, %v1123
      %v1194 = vmax.f32 %v1020, %v1125
      %v1195 = vmax.f32 %v1022, %v1127
      %v1196 = vmax.f32 %v1030, %v1129
      %v1197 = vmax.f32 %v1038, %v1131
      %v1198 = vmax.f32 %v1037, %v1133
      %v1199 = vmax.f32 %v1039, %v1135
      %v1200 = vpack.c.bf16 %v1168, %v1168
      %v1201 = vpack.c.bf16 %v1169, %v1169
      %v1202 = vpack.c.bf16 %v1170, %v1170
      %v1203 = vpack.c.bf16 %v1171, %v1171
      %v1204 = vpack.c.bf16 %v1172, %v1172
      %v1205 = vpack.c.bf16 %v1173, %v1173
      %v1206 = vpack.c.bf16 %v1174, %v1174
      %v1207 = vpack.c.bf16 %v1175, %v1175
      %v1208 = vpack.c.bf16 %v1176, %v1176
      %v1209 = vpack.c.bf16 %v1177, %v1177
      %v1210 = vpack.c.bf16 %v1178, %v1178
      %v1211 = vpack.c.bf16 %v1179, %v1179
      %v1212 = vpack.c.bf16 %v1180, %v1180
      %v1213 = vpack.c.bf16 %v1181, %v1181
      %v1214 = vpack.c.bf16 %v1182, %v1182
      %v1215 = vpack.c.bf16 %v1183, %v1183
      %v1216 = vpack.c.bf16 %v1184, %v1184
      %v1217 = vpack.c.bf16 %v1185, %v1185
      %v1218 = vpack.c.bf16 %v1186, %v1186
      %v1219 = vpack.c.bf16 %v1187, %v1187
      %v1220 = vpack.c.bf16 %v1188, %v1188
      %v1221 = vpack.c.bf16 %v1189, %v1189
      %v1222 = vpack.c.bf16 %v1190, %v1190
      %v1223 = vpack.c.bf16 %v1191, %v1191
      %v1224 = vpack.c.bf16 %v1192, %v1192
      %v1225 = vpack.c.bf16 %v1193, %v1193
      %v1226 = vpack.c.bf16 %v1194, %v1194
      %v1227 = vpack.c.bf16 %v1195, %v1195
      %v1228 = vpack.c.bf16 %v1196, %v1196
      %v1229 = vpack.c.bf16 %v1197, %v1197
      %v1230 = vpack.c.bf16 %v1198, %v1198
      %v1231 = vpack.c.bf16 %v1199, %v1199
      %v1264 = vunpack.c.l.b16 %v1200
      %v1265 = vunpack.c.l.b16 %v1201
      %v1266 = vunpack.c.l.b16 %v1202
      %v1267 = vunpack.c.l.b16 %v1203
      %v1268 = vunpack.c.l.b16 %v1204
      %v1269 = vunpack.c.l.b16 %v1205
      %v1270 = vunpack.c.l.b16 %v1206
      %v1271 = vunpack.c.l.b16 %v1207
      %v1272 = vunpack.c.l.b16 %v1208
      %v1273 = vunpack.c.l.b16 %v1209
      %v1274 = vunpack.c.l.b16 %v1210
      %v1275 = vunpack.c.l.b16 %v1211
      %v1276 = vunpack.c.l.b16 %v1212
      %v1277 = vunpack.c.l.b16 %v1213
      %v1278 = vunpack.c.l.b16 %v1214
      %v1279 = vunpack.c.l.b16 %v1215
      %v1280 = vunpack.c.l.b16 %v1216
      %v1281 = vunpack.c.l.b16 %v1217
      %v1282 = vunpack.c.l.b16 %v1218
      %v1283 = vunpack.c.l.b16 %v1219
      %v1284 = vunpack.c.l.b16 %v1220
      %v1285 = vunpack.c.l.b16 %v1221
      %v1286 = vunpack.c.l.b16 %v1222
      %v1287 = vunpack.c.l.b16 %v1223
      %v1288 = vunpack.c.l.b16 %v1224
      %v1289 = vunpack.c.l.b16 %v1225
      %v1290 = vunpack.c.l.b16 %v1226
      %v1291 = vunpack.c.l.b16 %v1227
      %v1292 = vunpack.c.l.b16 %v1228
      %v1293 = vunpack.c.l.b16 %v1229
      %v1294 = vunpack.c.l.b16 %v1230
      %v1295 = vunpack.c.l.b16 %v1231
      %v1296 = vpack.c.b16 %v1264, %v1264
      %v1297 = vpack.c.b16 %v1265, %v1265
      %v1298 = vpack.c.b16 %v1266, %v1266
      %v1299 = vpack.c.b16 %v1267, %v1267
      %v1300 = vpack.c.b16 %v1268, %v1268
      %v1301 = vpack.c.b16 %v1269, %v1269
      %v1302 = vpack.c.b16 %v1270, %v1270
      %v1303 = vpack.c.b16 %v1271, %v1271
      %v1304 = vpack.c.b16 %v1272, %v1272
      %v1305 = vpack.c.b16 %v1273, %v1273
      %v1306 = vpack.c.b16 %v1274, %v1274
      %v1307 = vpack.c.b16 %v1275, %v1275
      %v1308 = vpack.c.b16 %v1276, %v1276
      %v1309 = vpack.c.b16 %v1277, %v1277
      %v1310 = vpack.c.b16 %v1278, %v1278
      %v1311 = vpack.c.b16 %v1279, %v1279
      %v1312 = vpack.c.b16 %v1280, %v1280
      %v1313 = vpack.c.b16 %v1281, %v1281
      %v1314 = vpack.c.b16 %v1282, %v1282
      %v1315 = vpack.c.b16 %v1283, %v1283
      %v1316 = vpack.c.b16 %v1284, %v1284
      %v1317 = vpack.c.b16 %v1285, %v1285
      %v1318 = vpack.c.b16 %v1286, %v1286
      %v1319 = vpack.c.b16 %v1287, %v1287
      %v1320 = vpack.c.b16 %v1288, %v1288
      %v1321 = vpack.c.b16 %v1289, %v1289
      %v1322 = vpack.c.b16 %v1290, %v1290
      %v1323 = vpack.c.b16 %v1291, %v1291
      %v1324 = vpack.c.b16 %v1292, %v1292
      %v1325 = vpack.c.b16 %v1293, %v1293
      %v1326 = vpack.c.b16 %v1294, %v1294
      %v1327 = vpack.c.b16 %v1295, %v1295
      %v1328 = vunpack.c.l.b16 %v1296
      %v1329 = vunpack.c.l.b16 %v1297
      %v1330 = vunpack.c.l.b16 %v1298
      %v1331 = vunpack.c.l.b16 %v1299
      %v1332 = vunpack.c.l.b16 %v1300
      %v1333 = vunpack.c.l.b16 %v1301
      %v1334 = vunpack.c.l.b16 %v1302
      %v1335 = vunpack.c.l.b16 %v1303
      %v1336 = vunpack.c.l.b16 %v1304
      %v1337 = vunpack.c.l.b16 %v1305
      %v1338 = vunpack.c.l.b16 %v1306
      %v1339 = vunpack.c.l.b16 %v1307
      %v1340 = vunpack.c.l.b16 %v1308
      %v1341 = vunpack.c.l.b16 %v1309
      %v1342 = vunpack.c.l.b16 %v1310
      %v1343 = vunpack.c.l.b16 %v1311
      %v1344 = vunpack.c.l.b16 %v1312
      %v1345 = vunpack.c.l.b16 %v1313
      %v1346 = vunpack.c.l.b16 %v1314
      %v1347 = vunpack.c.l.b16 %v1315
      %v1348 = vunpack.c.l.b16 %v1316
      %v1349 = vunpack.c.l.b16 %v1317
      %v1350 = vunpack.c.l.b16 %v1318
      %v1351 = vunpack.c.l.b16 %v1319
      %v1352 = vunpack.c.l.b16 %v1320
      %v1353 = vunpack.c.l.b16 %v1321
      %v1354 = vunpack.c.l.b16 %v1322
      %v1355 = vunpack.c.l.b16 %v1323
      %v1356 = vunpack.c.l.b16 %v1324
      %v1357 = vunpack.c.l.b16 %v1325
      %v1358 = vunpack.c.l.b16 %v1326
      %v1359 = vunpack.c.l.b16 %v1327
      %v1360 = vrot.slane %v1329, 7
      %vm1361 = vcmask 1041409
      %v1362 = vsel %vm1361, %v1360, %v1328
      %v1363 = vrot.slane %v1330, 6
      %vm1364 = vcmask 1042434
      %v1365 = vsel %vm1364, %v1363, %v1362
      %v1366 = vrot.slane %v1331, 5
      %vm1367 = vcmask 1043459
      %v1368 = vsel %vm1367, %v1366, %v1365
      %v1369 = vrot.slane %v1332, 4
      %vm1370 = vcmask 1044484
      %v1371 = vsel %vm1370, %v1369, %v1368
      %v1372 = vrot.slane %v1333, 3
      %vm1373 = vcmask 1045509
      %v1374 = vsel %vm1373, %v1372, %v1371
      %v1375 = vrot.slane %v1334, 2
      %vm1376 = vcmask 1046534
      %v1377 = vsel %vm1376, %v1375, %v1374
      %v1378 = vrot.slane %v1335, 1
      %vm1379 = vcmask 1047559
      %v1380 = vsel %vm1379, %v1378, %v1377
      %v1381 = vrot.slane %v1337, 7
      %v1382 = vsel %vm1361, %v1381, %v1336
      %v1383 = vrot.slane %v1338, 6
      %v1384 = vsel %vm1364, %v1383, %v1382
      %v1385 = vrot.slane %v1339, 5
      %v1386 = vsel %vm1367, %v1385, %v1384
      %v1387 = vrot.slane %v1340, 4
      %v1388 = vsel %vm1370, %v1387, %v1386
      %v1389 = vrot.slane %v1341, 3
      %v1390 = vsel %vm1373, %v1389, %v1388
      %v1391 = vrot.slane %v1342, 2
      %v1392 = vsel %vm1376, %v1391, %v1390
      %v1393 = vrot.slane %v1343, 1
      %v1394 = vsel %vm1379, %v1393, %v1392
      %v1395 = vrot.slane %v1345, 7
      %v1396 = vsel %vm1361, %v1395, %v1344
      %v1397 = vrot.slane %v1346, 6
      %v1398 = vsel %vm1364, %v1397, %v1396
      %v1399 = vrot.slane %v1347, 5
      %v1400 = vsel %vm1367, %v1399, %v1398
      %v1401 = vrot.slane %v1348, 4
      %v1402 = vsel %vm1370, %v1401, %v1400
      %v1403 = vrot.slane %v1349, 3
      %v1404 = vsel %vm1373, %v1403, %v1402
      %v1405 = vrot.slane %v1350, 2
      %v1406 = vsel %vm1376, %v1405, %v1404
      %v1407 = vrot.slane %v1351, 1
      %v1408 = vsel %vm1379, %v1407, %v1406
      %v1409 = vrot.slane %v1353, 7
      %v1410 = vsel %vm1361, %v1409, %v1352
      %v1411 = vrot.slane %v1354, 6
      %v1412 = vsel %vm1364, %v1411, %v1410
      %v1413 = vrot.slane %v1355, 5
      %v1414 = vsel %vm1367, %v1413, %v1412
      %v1415 = vrot.slane %v1356, 4
      %v1416 = vsel %vm1370, %v1415, %v1414
      %v1417 = vrot.slane %v1357, 3
      %v1418 = vsel %vm1373, %v1417, %v1416
      %v1419 = vrot.slane %v1358, 2
      %v1420 = vsel %vm1376, %v1419, %v1418
      %v1421 = vrot.slane %v1359, 1
      %v1422 = vsel %vm1379, %v1421, %v1420
      %v1423 = vpack.c.b16 %v1380, %v1380
      %v1424 = vpack.c.b16 %v1394, %v1394
      %v1425 = vpack.c.b16 %v1408, %v1408
      %v1426 = vpack.c.b16 %v1422, %v1422
      %vm1431 = vcmask 519168
      %1432 = vst.msk [vmem:[%s192] sm:$0xf] %vm1431, %v1423
      %1433 = vst.msk [vmem:[%s192 + $0x4] sm:$0xf] %vm1431, %v1424
      %1434 = vst.msk [vmem:[%s192 + $0x8] sm:$0xf] %vm1431, %v1425
      %1435 = vst.msk [vmem:[%s192 + $0xc] sm:$0xf] %vm1431, %v1426
      %s1436 = smul.u32 4, %s19
      %p1437 = scmp.lt.s32.totalorder %s18, 1
      %s1438 = scalar_select %p1437, %s18, 1
      %p1439 = scmp.lt.s32.totalorder %s1436, 7
      %s1440 = scalar_select %p1439, %s1436, 7
      %s1441 = smul.addr %s1438, 8
      %s1442 = sadd.s32 %s1440, %s1441
      %s1443 = smul.addr %s1442, 4
      %s1444 = scalar_lea.vmem %s3, %s1443
      // Predicated region
      $region33: #{simple_unet_forward.2} parent=31 // pred_check
        %p1445 = pneg %p114
      $region34: #{simple_unet_forward.2} parent=31 // pred_check_branch
        %1447 = sbr.rel (%p1445) target = $region36
      $region35: #{simple_unet_forward.2} parent=31 // pred_region
        %s1448 = smul.u32 4, %s19
      $region36: #{simple_unet_forward.2} parent=31 // pred_fallthru
        _
    $region32: #{simple_unet_forward.2} parent=5 // pred_fallthru
      _
    %p1449 = scmp.le.s32.totalorder 2, %s9
    // Predicated region
    $region37: #{simple_unet_forward.2} parent=5 // pred_check
      %p1450 = pneg %p1449
    $region38: #{simple_unet_forward.2} parent=5 // pred_check_branch
      %1452 = sbr.rel (%p1450) target = $region40
    $region39: #{simple_unet_forward.2} parent=5 // pred_region
      %s1453 = ssub.s32 %s9, 2
      // Predicated region
      $region41: #{simple_unet_forward.2} parent=39 // pred_check
        %p1454 = pneg %p120
      $region42: #{simple_unet_forward.2} parent=39 // pred_check_branch
        %1456 = sbr.rel (%p1454) target = $region44
      $region43: #{simple_unet_forward.2} parent=39 // pred_region
        %s1457 = smul.u32 4, %s21
        %p1458 = scmp.lt.s32.totalorder %s20, 1
        %s1459 = scalar_select %p1458, %s20, 1
        %p1460 = scmp.lt.s32.totalorder %s1457, 7
        %s1461 = scalar_select %p1460, %s1457, 7
        %s1462 = smul.addr %s1459, 8
        %s1463 = sadd.s32 %s1461, %s1462
        %s1464 = smul.addr %s1463, 4
        %s1465 = scalar_lea.vmem %s3, %s1464
      $region44: #{simple_unet_forward.2} parent=39 // pred_fallthru
        _
    $region40: #{simple_unet_forward.2} parent=5 // pred_fallthru
      _
  $region6: #{simple_unet_forward.2} parent=0 // loop_footer
    %s13 = sadd.s32 1, %s9
  $region7: #{simple_unet_forward.2} parent=0 // loop_footer_branch
    %8 = sbr.rel target = $region3
  $region8: #{simple_unet_forward.2} parent=0 // loop_exit
    _

// kernel: simple_unet_forward.3
$region0: #{simple_unet_forward.3}
  #allocation0 [shape = 'u32[]', space=smem, size = 0x4, offset = 0x4, fixed_abs, tag = 'smem constant byte address 0x4 - core index']
  #allocation1 [shape = 'u32[144,128]{1,0:T(1,128)}', space=vmem, size = 0x12000, scoped, tag = 'internal scratch']
  #allocation2 [shape = 'f32[1,1]{1,0:T(1,128)S(1)}', space=vmem, size = 0x200, scoped, tag = 'scoped memory for simple_unet_forward.3']
  %s0 = inlined_call_operand.vmem [shape: bf16[2,10,10,64], index: 0, kind: input, shape index: {}]
  %s1 = inlined_call_operand.vmem [shape: bf16[576,128], index: 1, kind: input, shape index: {}]
  %s2 = inlined_call_operand.vmem [shape: f32[1,128], index: 2, kind: input, shape index: {}]
  %s3 = inlined_call_operand.vmem [shape: bf16[128,256], index: 3, kind: input, shape index: {}]
  %s4 = inlined_call_operand.vmem [shape: f32[1,256], index: 4, kind: input, shape index: {}]
  %s5 = inlined_call_operand.vmem [shape: f32[1,64], index: 5, kind: input, shape index: {}]
  %s6 = inlined_call_operand.<no memory space> [shape: f32[1,1], index: 6, kind: input, shape index: {}]
  %s7 = inlined_call_operand.vmem [shape: f32[2,4,8,8], index: 7, kind: output, shape index: {}]
  %s8 = sld [smem:[#allocation0]]
  $region61: #{simple_unet_forward.3} parent=0
    _
  %s10 = ssub.s32 1, %s8
  %s11 = scalar_select 0, %s10, %s8
  %v12 = vstv %s6
  %13 = vst [vmem:[#allocation2] sm:$0x1] %v12
  loop: start=0, step=1, limit=4
  $region2: #{simple_unet_forward.3} parent=0 // loop_pre_header
    _
  $region3: #{simple_unet_forward.3} parent=0 // loop_header
    %s15 = sphi 0, %s19
    %p16 = scmp.ge.s32.totalorder %s15, 4
    %s22 = sphi 0, %s34
    %s23 = sphi 0, %s30
    %s24 = sphi 0, %s22
    %s25 = sphi 0, %s23
    %s26 = sphi 0, %s24
    %s27 = sphi 0, %s25
    %s37 = sphi 0, %s39
    %s40 = sphi 0, %s37
    %s41 = sphi 0, %s40
    %s57 = sphi 0, %s41
    %s61 = sphi 0, %s61
    %s63 = sphi 0, %s61
    %s64 = sphi 0, %s63
    %s78 = sphi 0, %s64
    %s82 = sphi 0, %s82
    %s84 = sphi 0, %s82
    %s85 = sphi 0, %s84
    %s99 = sphi 0, %s85
    %s103 = sphi 0, %s103
    %s105 = sphi 0, %s103
    %s106 = sphi 0, %s105
    %s120 = sphi 0, %s106
    %s124 = sphi 0, %s124
    %s126 = sphi 0, %s124
    %s127 = sphi 0, %s126
    %s141 = sphi 0, %s127
    %s145 = sphi 0, %s145
    %s147 = sphi 0, %s145
    %s148 = sphi 0, %s147
    %s162 = sphi 0, %s148
    %s166 = sphi 0, %s166
    %s168 = sphi 0, %s166
    %s169 = sphi 0, %s168
    %s183 = sphi 0, %s169
    %s191 = sphi 0, %s193
    %s194 = sphi 0, %s191
    %s195 = sphi 0, %s194
    %s211 = sphi 0, %s195
  $region4: #{simple_unet_forward.3} parent=0 // loop_header_branch
    %18 = sbr.rel (%p16) target = $region8
  $region5: #{simple_unet_forward.3} parent=0 // loop_body
    %s20 = ssub.s32 %s15, 1
    %s21 = ssub.s32 %s15, 2
    %s28 = sadd.s32 1, %s23
    %p29 = scmp.ge.s32.totalorder %s28, 1
    %s30 = scalar_select %p29, 0, %s28
    %s31 = sadd.s32 1, %s22
    %s32 = scalar_select %p29, %s31, %s22
    %p33 = scmp.ge.s32.totalorder %s32, 2
    %s34 = scalar_select %p33, 0, %s32
    %s35 = ssub.s32 %s22, %s34
    %p36 = scmp.eq.s32.totalorder %s35, 0
    %s38 = sadd.s32 %s37, 1
    %s39 = scalar_select %p36, %s37, %s38
    %p42 = pneg %p36
    %p43 = scmp.eq.s32.totalorder %s15, 1
    %p44 = por %p42, %p43
    %p45 = scmp.ne.s32.totalorder %s37, %s40
    %p46 = scmp.eq.s32.totalorder %s15, 0
    %p47 = por %p45, %p46
    %p48 = scmp.ne.s32.totalorder %s37, %s40
    %p49 = scmp.eq.s32.totalorder %s20, 1
    %p50 = por %p48, %p49
    %p51 = scmp.ne.s32.totalorder %s40, %s41
    %p52 = scmp.eq.s32.totalorder %s20, 0
    %p53 = por %p51, %p52
    %p54 = scmp.ne.s32.totalorder %s40, %s41
    %p55 = scmp.eq.s32.totalorder %s21, 1
    %p56 = por %p54, %p55
    %p58 = scmp.ne.s32.totalorder %s41, %s57
    %p59 = scmp.eq.s32.totalorder %s21, 0
    %p60 = por %p58, %p59
    %s62 = sadd.s32 %s61, 1
    %p65 = scmp.eq.s32.totalorder %s15, 1
    %p66 = scmp.ne.s32.totalorder %s61, %s63
    %p67 = scmp.eq.s32.totalorder %s15, 0
    %p68 = por %p66, %p67
    %p69 = scmp.ne.s32.totalorder %s61, %s63
    %p70 = scmp.eq.s32.totalorder %s20, 1
    %p71 = por %p69, %p70
    %p72 = scmp.ne.s32.totalorder %s63, %s64
    %p73 = scmp.eq.s32.totalorder %s20, 0
    %p74 = por %p72, %p73
    %p75 = scmp.ne.s32.totalorder %s63, %s64
    %p76 = scmp.eq.s32.totalorder %s21, 1
    %p77 = por %p75, %p76
    %p79 = scmp.ne.s32.totalorder %s64, %s78
    %p80 = scmp.eq.s32.totalorder %s21, 0
    %p81 = por %p79, %p80
    %s83 = sadd.s32 %s82, 1
    %p86 = scmp.eq.s32.totalorder %s15, 1
    %p87 = scmp.ne.s32.totalorder %s82, %s84
    %p88 = scmp.eq.s32.totalorder %s15, 0
    %p89 = por %p87, %p88
    %p90 = scmp.ne.s32.totalorder %s82, %s84
    %p91 = scmp.eq.s32.totalorder %s20, 1
    %p92 = por %p90, %p91
    %p93 = scmp.ne.s32.totalorder %s84, %s85
    %p94 = scmp.eq.s32.totalorder %s20, 0
    %p95 = por %p93, %p94
    %p96 = scmp.ne.s32.totalorder %s84, %s85
    %p97 = scmp.eq.s32.totalorder %s21, 1
    %p98 = por %p96, %p97
    %p100 = scmp.ne.s32.totalorder %s85, %s99
    %p101 = scmp.eq.s32.totalorder %s21, 0
    %p102 = por %p100, %p101
    %s104 = sadd.s32 %s103, 1
    %p107 = scmp.eq.s32.totalorder %s15, 1
    %p108 = scmp.ne.s32.totalorder %s103, %s105
    %p109 = scmp.eq.s32.totalorder %s15, 0
    %p110 = por %p108, %p109
    %p111 = scmp.ne.s32.totalorder %s103, %s105
    %p112 = scmp.eq.s32.totalorder %s20, 1
    %p113 = por %p111, %p112
    %p114 = scmp.ne.s32.totalorder %s105, %s106
    %p115 = scmp.eq.s32.totalorder %s20, 0
    %p116 = por %p114, %p115
    %p117 = scmp.ne.s32.totalorder %s105, %s106
    %p118 = scmp.eq.s32.totalorder %s21, 1
    %p119 = por %p117, %p118
    %p121 = scmp.ne.s32.totalorder %s106, %s120
    %p122 = scmp.eq.s32.totalorder %s21, 0
    %p123 = por %p121, %p122
    %s125 = sadd.s32 %s124, 1
    %p128 = scmp.eq.s32.totalorder %s15, 1
    %p129 = scmp.ne.s32.totalorder %s124, %s126
    %p130 = scmp.eq.s32.totalorder %s15, 0
    %p131 = por %p129, %p130
    %p132 = scmp.ne.s32.totalorder %s124, %s126
    %p133 = scmp.eq.s32.totalorder %s20, 1
    %p134 = por %p132, %p133
    %p135 = scmp.ne.s32.totalorder %s126, %s127
    %p136 = scmp.eq.s32.totalorder %s20, 0
    %p137 = por %p135, %p136
    %p138 = scmp.ne.s32.totalorder %s126, %s127
    %p139 = scmp.eq.s32.totalorder %s21, 1
    %p140 = por %p138, %p139
    %p142 = scmp.ne.s32.totalorder %s127, %s141
    %p143 = scmp.eq.s32.totalorder %s21, 0
    %p144 = por %p142, %p143
    %s146 = sadd.s32 %s145, 1
    %p149 = scmp.eq.s32.totalorder %s15, 1
    %p150 = scmp.ne.s32.totalorder %s145, %s147
    %p151 = scmp.eq.s32.totalorder %s15, 0
    %p152 = por %p150, %p151
    %p153 = scmp.ne.s32.totalorder %s145, %s147
    %p154 = scmp.eq.s32.totalorder %s20, 1
    %p155 = por %p153, %p154
    %p156 = scmp.ne.s32.totalorder %s147, %s148
    %p157 = scmp.eq.s32.totalorder %s20, 0
    %p158 = por %p156, %p157
    %p159 = scmp.ne.s32.totalorder %s147, %s148
    %p160 = scmp.eq.s32.totalorder %s21, 1
    %p161 = por %p159, %p160
    %p163 = scmp.ne.s32.totalorder %s148, %s162
    %p164 = scmp.eq.s32.totalorder %s21, 0
    %p165 = por %p163, %p164
    %s167 = sadd.s32 %s166, 1
    %p170 = scmp.eq.s32.totalorder %s15, 1
    %p171 = scmp.ne.s32.totalorder %s166, %s168
    %p172 = scmp.eq.s32.totalorder %s15, 0
    %p173 = por %p171, %p172
    %p174 = scmp.ne.s32.totalorder %s166, %s168
    %p175 = scmp.eq.s32.totalorder %s20, 1
    %p176 = por %p174, %p175
    %p177 = scmp.ne.s32.totalorder %s168, %s169
    %p178 = scmp.eq.s32.totalorder %s20, 0
    %p179 = por %p177, %p178
    %p180 = scmp.ne.s32.totalorder %s168, %s169
    %p181 = scmp.eq.s32.totalorder %s21, 1
    %p182 = por %p180, %p181
    %p184 = scmp.ne.s32.totalorder %s169, %s183
    %p185 = scmp.eq.s32.totalorder %s21, 0
    %p186 = por %p184, %p185
    %s187 = ssub.s32 %s22, %s34
    %s188 = ssub.s32 %s23, %s30
    %s189 = sor.u32 %s187, %s188
    %p190 = scmp.eq.s32.totalorder %s189, 0
    %s192 = sadd.s32 %s191, 1
    %s193 = scalar_select %p190, %s191, %s192
    %p196 = pneg %p190
    %p197 = scmp.eq.s32.totalorder %s15, 1
    %p198 = por %p196, %p197
    %p199 = scmp.ne.s32.totalorder %s191, %s194
    %p200 = scmp.eq.s32.totalorder %s15, 0
    %p201 = por %p199, %p200
    %p202 = scmp.ne.s32.totalorder %s191, %s194
    %p203 = scmp.eq.s32.totalorder %s20, 1
    %p204 = por %p202, %p203
    %p205 = scmp.ne.s32.totalorder %s194, %s195
    %p206 = scmp.eq.s32.totalorder %s20, 0
    %p207 = por %p205, %p206
    %p208 = scmp.ne.s32.totalorder %s194, %s195
    %p209 = scmp.eq.s32.totalorder %s21, 1
    %p210 = por %p208, %p209
    %p212 = scmp.ne.s32.totalorder %s195, %s211
    %p213 = scmp.eq.s32.totalorder %s21, 0
    %p214 = por %p212, %p213
    %p215 = scmp.le.s32.totalorder 1, %s15
    %p216 = scmp.lt.s32.totalorder %s15, 3
    %p217 = pnand %p215, %p216
    %p218 = pneg %p217
    // Predicated region
    $region9: #{simple_unet_forward.3} parent=5 // pred_check
      _
    $region10: #{simple_unet_forward.3} parent=5 // pred_check_branch
      %220 = sbr.rel (%p217) target = $region12
    $region11: #{simple_unet_forward.3} parent=5 // pred_region
      %s221 = ssub.s32 %s15, 1
      // Predicated region
      $region13: #{simple_unet_forward.3} parent=11 // pred_check
        %p222 = pneg %p74
      $region14: #{simple_unet_forward.3} parent=11 // pred_check_branch
        %224 = sbr.rel (%p222) target = $region16
      $region15: #{simple_unet_forward.3} parent=11 // pred_region
        _
      $region16: #{simple_unet_forward.3} parent=11 // pred_fallthru
        _
      // Predicated region
      $region17: #{simple_unet_forward.3} parent=11 // pred_check
        %p225 = pneg %p95
      $region18: #{simple_unet_forward.3} parent=11 // pred_check_branch
        %227 = sbr.rel (%p225) target = $region20
      $region19: #{simple_unet_forward.3} parent=11 // pred_region
        _
      $region20: #{simple_unet_forward.3} parent=11 // pred_fallthru
        _
      // Predicated region
      $region21: #{simple_unet_forward.3} parent=11 // pred_check
        %p228 = pneg %p116
      $region22: #{simple_unet_forward.3} parent=11 // pred_check_branch
        %230 = sbr.rel (%p228) target = $region24
      $region23: #{simple_unet_forward.3} parent=11 // pred_region
        _
      $region24: #{simple_unet_forward.3} parent=11 // pred_fallthru
        _
      // Predicated region
      $region25: #{simple_unet_forward.3} parent=11 // pred_check
        %p231 = pneg %p137
      $region26: #{simple_unet_forward.3} parent=11 // pred_check_branch
        %233 = sbr.rel (%p231) target = $region28
      $region27: #{simple_unet_forward.3} parent=11 // pred_region
        _
      $region28: #{simple_unet_forward.3} parent=11 // pred_fallthru
        _
      // Predicated region
      $region29: #{simple_unet_forward.3} parent=11 // pred_check
        %p234 = pneg %p158
      $region30: #{simple_unet_forward.3} parent=11 // pred_check_branch
        %236 = sbr.rel (%p234) target = $region32
      $region31: #{simple_unet_forward.3} parent=11 // pred_region
        _
      $region32: #{simple_unet_forward.3} parent=11 // pred_fallthru
        _
      // Predicated region
      $region33: #{simple_unet_forward.3} parent=11 // pred_check
        %p237 = pneg %p179
      $region34: #{simple_unet_forward.3} parent=11 // pred_check_branch
        %239 = sbr.rel (%p237) target = $region36
      $region35: #{simple_unet_forward.3} parent=11 // pred_region
        _
      $region36: #{simple_unet_forward.3} parent=11 // pred_fallthru
        _
    $region12: #{simple_unet_forward.3} parent=5 // pred_fallthru
      _
    %p240 = scmp.lt.s32.totalorder %s15, 2
    // Predicated region
    $region37: #{simple_unet_forward.3} parent=5 // pred_check
      %p241 = pneg %p240
    $region38: #{simple_unet_forward.3} parent=5 // pred_check_branch
      %243 = sbr.rel (%p241) target = $region40
    $region39: #{simple_unet_forward.3} parent=5 // pred_region
      // Predicated region
      $region41: #{simple_unet_forward.3} parent=39 // pred_check
        %p244 = pneg %p47
      $region42: #{simple_unet_forward.3} parent=39 // pred_check_branch
        %246 = sbr.rel (%p244) target = $region44
      $region43: #{simple_unet_forward.3} parent=39 // pred_region
        %p247 = scmp.lt.s32.totalorder %s22, 1
        %s248 = scalar_select %p247, %s22, 1
        %s249 = smul.addr %s248, 20
        %s250 = smul.addr %s249, 4
        %s251 = scalar_lea.vmem %s0, %s250
      $region44: #{simple_unet_forward.3} parent=39 // pred_fallthru
        _
    $region40: #{simple_unet_forward.3} parent=5 // pred_fallthru
      _
    %p252 = scmp.le.s32.totalorder 1, %s15
    %p253 = scmp.lt.s32.totalorder %s15, 3
    %p254 = pnand %p252, %p253
    %p255 = pneg %p254
    // Predicated region
    $region45: #{simple_unet_forward.3} parent=5 // pred_check
      _
    $region46: #{simple_unet_forward.3} parent=5 // pred_check_branch
      %257 = sbr.rel (%p254) target = $region48
    $region47: #{simple_unet_forward.3} parent=5 // pred_region
      %s258 = ssub.s32 %s15, 1
      %p259 = scmp.lt.s32.totalorder %s24, 1
      %s260 = scalar_select %p259, %s24, 1
      %s261 = smul.addr %s260, 20
      %s262 = smul.addr %s261, 4
      %s263 = scalar_lea.vmem %s0, %s262
      %p264 = pneg %p53
      %p265 = pneg %p50
      %p266 = pneg %p74
      %p267 = pneg %p71
      %p268 = pneg %p95
      %p269 = pneg %p92
      %p270 = pneg %p116
      %p271 = pneg %p113
      %p272 = pneg %p137
      %p273 = pneg %p134
      %p274 = pneg %p158
      %p275 = pneg %p155
      %p276 = pneg %p179
      %p277 = pneg %p176
      %p278 = pneg %p207
      %p279 = pneg %p204
      %p280 = scmp.lt.s32.totalorder %s24, 1
      %s281 = scalar_select %p280, %s24, 1
      %p282 = scmp.lt.s32.totalorder %s25, 0
      %s283 = scalar_select %p282, %s25, 0
      %s284 = smul.addr %s281, 4
      %s285 = sadd.s32 %s283, %s284
      %s286 = smul.addr %s285, 8
      %s287 = scalar_lea.vmem %s7, %s286
      %p288 = scmp.lt.s32.totalorder %s24, 1
      %s289 = scalar_select %p288, %s24, 1
      %s290 = smul.addr %s289, 20
      %s291 = smul.addr %s290, 4
      %s292 = scalar_lea.vmem %s0, %s291
      %p293 = scmp.lt.s32.totalorder %s24, 1
      %s294 = scalar_select %p293, %s24, 1
      %p295 = scmp.lt.s32.totalorder %s25, 0
      %s296 = scalar_select %p295, %s25, 0
      %s297 = smul.addr %s294, 4
      %s298 = sadd.s32 %s296, %s297
      %s299 = smul.addr %s298, 8
      %s300 = scalar_lea.vmem %s7, %s299
      %s302 = smul.u32 %s25, 8
      %s303 = smul.u32 %s302, 2
      %s304 = smul.addr %s303, 4
      %s305 = scalar_lea.vmem %s292, %s304
      %v306 = vld [vmem:[%s305] sm:$0xf]
      %v307 = vld [vmem:[%s305 + $0x4] sm:$0x1]
      %v308 = vld [vmem:[%s305 + $0x8] sm:$0xf]
      %v309 = vld [vmem:[%s305 + $0xc] sm:$0x1]
      %v310 = vld [vmem:[%s305 + $0x10] sm:$0xf]
      %v311 = vld [vmem:[%s305 + $0x14] sm:$0x1]
      %v312 = vld [vmem:[%s305 + $0x18] sm:$0xf]
      %v313 = vld [vmem:[%s305 + $0x1c] sm:$0x1]
      %v314 = vld [vmem:[%s305 + $0x20] sm:$0xf]
      %v315 = vld [vmem:[%s305 + $0x24] sm:$0x1]
      %v316 = vld [vmem:[%s305 + $0x28] sm:$0xf]
      %v317 = vld [vmem:[%s305 + $0x2c] sm:$0x1]
      %v318 = vld [vmem:[%s305 + $0x30] sm:$0xf]
      %v319 = vld [vmem:[%s305 + $0x34] sm:$0x1]
      %v320 = vld [vmem:[%s305 + $0x38] sm:$0xf]
      %v321 = vld [vmem:[%s305 + $0x3c] sm:$0x1]
      %v322 = vld [vmem:[%s305 + $0x40] sm:$0xf]
      %v323 = vld [vmem:[%s305 + $0x44] sm:$0x1]
      %v324 = vld [vmem:[%s305 + $0x48] sm:$0xf]
      %v325 = vld [vmem:[%s305 + $0x4c] sm:$0x1]
      %v342 = vunpack.c.l.b16 %v306
      %v343 = vunpack.c.l.b16 %v307
      %v344 = vunpack.c.l.b16 %v308
      %v345 = vunpack.c.l.b16 %v309
      %v346 = vunpack.c.l.b16 %v310
      %v347 = vunpack.c.l.b16 %v311
      %v348 = vunpack.c.l.b16 %v312
      %v349 = vunpack.c.l.b16 %v313
      %v350 = vunpack.c.l.b16 %v314
      %v351 = vunpack.c.l.b16 %v315
      %v352 = vunpack.c.l.b16 %v316
      %v353 = vunpack.c.l.b16 %v317
      %v354 = vunpack.c.l.b16 %v318
      %v355 = vunpack.c.l.b16 %v319
      %v356 = vunpack.c.l.b16 %v320
      %v357 = vunpack.c.l.b16 %v321
      %v358 = vpack.c.b16 %v343, %v342
      %v359 = vpack.c.b16 %v345, %v344
      %v360 = vpack.c.b16 %v347, %v346
      %v361 = vpack.c.b16 %v349, %v348
      %v362 = vpack.c.b16 %v351, %v350
      %v363 = vpack.c.b16 %v353, %v352
      %v364 = vpack.c.b16 %v355, %v354
      %v365 = vpack.c.b16 %v357, %v356
      %v367 = vshrl.u32 %v358, 16
      %v369 = vshll.u32 %v358, 16
      %v371 = vrot.slane %v369, 1
      %v372 = vor.u32 %v367, %v371
      %v374 = vshrl.u32 %v359, 16
      %v376 = vshll.u32 %v359, 16
      %v378 = vrot.slane %v376, 1
      %v379 = vor.u32 %v374, %v378
      %v381 = vshrl.u32 %v360, 16
      %v383 = vshll.u32 %v360, 16
      %v385 = vrot.slane %v383, 1
      %v386 = vor.u32 %v381, %v385
      %v388 = vshrl.u32 %v361, 16
      %v390 = vshll.u32 %v361, 16
      %v392 = vrot.slane %v390, 1
      %v393 = vor.u32 %v388, %v392
      %v395 = vshrl.u32 %v362, 16
      %v397 = vshll.u32 %v362, 16
      %v399 = vrot.slane %v397, 1
      %v400 = vor.u32 %v395, %v399
      %v402 = vshrl.u32 %v363, 16
      %v404 = vshll.u32 %v363, 16
      %v406 = vrot.slane %v404, 1
      %v407 = vor.u32 %v402, %v406
      %v409 = vshrl.u32 %v364, 16
      %v411 = vshll.u32 %v364, 16
      %v413 = vrot.slane %v411, 1
      %v414 = vor.u32 %v409, %v413
      %v416 = vshrl.u32 %v365, 16
      %v418 = vshll.u32 %v365, 16
      %v420 = vrot.slane %v418, 1
      %v421 = vor.u32 %v416, %v420
      %422 = vrot.lane.b32.xlu0 %v372, 64
      %v423 = vpop.permute.xlu0 %422
      %424 = vrot.lane.b32.xlu0 %v379, 64
      %v425 = vpop.permute.xlu0 %424
      %426 = vrot.lane.b32.xlu0 %v386, 64
      %v427 = vpop.permute.xlu0 %426
      %428 = vrot.lane.b32.xlu0 %v393, 64
      %v429 = vpop.permute.xlu0 %428
      %430 = vrot.lane.b32.xlu0 %v400, 64
      %v431 = vpop.permute.xlu0 %430
      %432 = vrot.lane.b32.xlu0 %v407, 64
      %v433 = vpop.permute.xlu0 %432
      %434 = vrot.lane.b32.xlu0 %v414, 64
      %v435 = vpop.permute.xlu0 %434
      %436 = vrot.lane.b32.xlu0 %v421, 64
      %v437 = vpop.permute.xlu0 %436
      %v438 = vrot.slane %v358, 1
      %v439 = vrot.slane %v359, 1
      %v440 = vrot.slane %v360, 1
      %v441 = vrot.slane %v361, 1
      %v442 = vrot.slane %v362, 1
      %v443 = vrot.slane %v363, 1
      %v444 = vrot.slane %v364, 1
      %v445 = vrot.slane %v365, 1
      %v447 = vunpack.c.l.b16 %v322
      %v448 = vpack.c.b16 %v344, %v344
      %v449 = vpack.c.b16 %v346, %v346
      %v450 = vpack.c.b16 %v348, %v348
      %v451 = vpack.c.b16 %v350, %v350
      %v452 = vpack.c.b16 %v352, %v352
      %v453 = vpack.c.b16 %v354, %v354
      %v454 = vpack.c.b16 %v356, %v356
      %v455 = vpack.c.b16 %v447, %v447
      %456 = vrot.lane.b32.xlu0 %v448, 64
      %v457 = vpop.permute.xlu0 %456
      %458 = vrot.lane.b32.xlu0 %v449, 64
      %v459 = vpop.permute.xlu0 %458
      %460 = vrot.lane.b32.xlu0 %v450, 64
      %v461 = vpop.permute.xlu0 %460
      %462 = vrot.lane.b32.xlu0 %v451, 64
      %v463 = vpop.permute.xlu0 %462
      %464 = vrot.lane.b32.xlu0 %v452, 64
      %v465 = vpop.permute.xlu0 %464
      %466 = vrot.lane.b32.xlu0 %v453, 64
      %v467 = vpop.permute.xlu0 %466
      %468 = vrot.lane.b32.xlu0 %v454, 64
      %v469 = vpop.permute.xlu0 %468
      %470 = vrot.lane.b32.xlu0 %v455, 64
      %v471 = vpop.permute.xlu0 %470
      %v473 = vunpack.c.l.b16 %v323
      %v474 = vpack.c.b16 %v473, %v447
      %v476 = vshrl.u32 %v474, 16
      %v478 = vshll.u32 %v474, 16
      %v480 = vrot.slane %v478, 1
      %v481 = vor.u32 %v476, %v480
      %v482 = vrot.slane %v474, 1
      %483 = vrot.lane.b32.xlu0 %v439, 64
      %v484 = vpop.permute.xlu0 %483
      %485 = vrot.lane.b32.xlu0 %v440, 64
      %v486 = vpop.permute.xlu0 %485
      %487 = vrot.lane.b32.xlu0 %v441, 64
      %v488 = vpop.permute.xlu0 %487
      %489 = vrot.lane.b32.xlu0 %v442, 64
      %v490 = vpop.permute.xlu0 %489
      %491 = vrot.lane.b32.xlu0 %v443, 64
      %v492 = vpop.permute.xlu0 %491
      %493 = vrot.lane.b32.xlu0 %v444, 64
      %v494 = vpop.permute.xlu0 %493
      %495 = vrot.lane.b32.xlu0 %v445, 64
      %v496 = vpop.permute.xlu0 %495
      %497 = vrot.lane.b32.xlu0 %v482, 64
      %v498 = vpop.permute.xlu0 %497
      %v501 = vunpack.c.l.b16 %v324
      %v502 = vunpack.c.l.b16 %v325
      %v503 = vpack.c.b16 %v502, %v501
      %v505 = vshrl.u32 %v503, 16
      %v507 = vshll.u32 %v503, 16
      %v509 = vrot.slane %v507, 1
      %v510 = vor.u32 %v505, %v509
      %511 = vrot.lane.b32.xlu0 %v481, 64
      %v512 = vpop.permute.xlu0 %511
      %513 = vrot.lane.b32.xlu0 %v510, 64
      %v514 = vpop.permute.xlu0 %513
      %v515 = vrot.slane %v503, 1
      %vm516 = vcmask 523264
      %v519 = vsel %vm516, %v306, %v423
      %v522 = vsel %vm516, %v308, %v425
      %v525 = vsel %vm516, %v310, %v427
      %v528 = vsel %vm516, %v312, %v429
      %v531 = vsel %vm516, %v314, %v431
      %v534 = vsel %vm516, %v316, %v433
      %v537 = vsel %vm516, %v318, %v435
      %v540 = vsel %vm516, %v320, %v437
      %v543 = vsel %vm516, %v438, %v457
      %v546 = vsel %vm516, %v439, %v459
      %v549 = vsel %vm516, %v440, %v461
      %v552 = vsel %vm516, %v441, %v463
      %v555 = vsel %vm516, %v442, %v465
      %v558 = vsel %vm516, %v443, %v467
      %v561 = vsel %vm516, %v444, %v469
      %v564 = vsel %vm516, %v445, %v471
      %v567 = vsel %vm516, %v379, %v484
      %v570 = vsel %vm516, %v386, %v486
      %v573 = vsel %vm516, %v393, %v488
      %v576 = vsel %vm516, %v400, %v490
      %v579 = vsel %vm516, %v407, %v492
      %v582 = vsel %vm516, %v414, %v494
      %v585 = vsel %vm516, %v421, %v496
      %v588 = vsel %vm516, %v481, %v498
      %v591 = vsel %vm516, %v322, %v512
      %v594 = vsel %vm516, %v324, %v514
      %v621 = vunpack.c.l.b16 %v519
      %v622 = vunpack.c.l.b16 %v543
      %v623 = vunpack.c.l.b16 %v567
      %v624 = vunpack.c.l.b16 %v525
      %v625 = vunpack.c.l.b16 %v440
      %v626 = vunpack.c.l.b16 %v522
      %v627 = vunpack.c.l.b16 %v546
      %v628 = vunpack.c.l.b16 %v570
      %v629 = vunpack.c.l.b16 %v528
      %v630 = vunpack.c.l.b16 %v441
      %v631 = vunpack.c.l.b16 %v549
      %v632 = vunpack.c.l.b16 %v573
      %v633 = vunpack.c.l.b16 %v531
      %v634 = vunpack.c.l.b16 %v442
      %v635 = vunpack.c.l.b16 %v552
      %v636 = vunpack.c.l.b16 %v576
      %v637 = vunpack.c.l.b16 %v534
      %v638 = vunpack.c.l.b16 %v443
      %v639 = vunpack.c.l.b16 %v555
      %v640 = vunpack.c.l.b16 %v579
      %v641 = vunpack.c.l.b16 %v537
      %v642 = vunpack.c.l.b16 %v444
      %v643 = vunpack.c.l.b16 %v558
      %v644 = vunpack.c.l.b16 %v582
      %v645 = vunpack.c.l.b16 %v540
      %v646 = vunpack.c.l.b16 %v445
      %v647 = vunpack.c.l.b16 %v561
      %v648 = vunpack.c.l.b16 %v585
      %v649 = vunpack.c.l.b16 %v591
      %v650 = vunpack.c.l.b16 %v482
      %v651 = vunpack.c.l.b16 %v564
      %v652 = vunpack.c.l.b16 %v588
      %v653 = vunpack.c.l.b16 %v594
      %v654 = vunpack.c.l.b16 %v515
      %v655 = vld [vmem:[%s1] sm:$0xf]
      %v656 = vld [vmem:[%s1 + $0x4] sm:$0xf]
      %v657 = vld [vmem:[%s1 + $0x8] sm:$0xf]
      %v658 = vld [vmem:[%s1 + $0xc] sm:$0xf]
      %v659 = vld [vmem:[%s1 + $0x10] sm:$0xf]
      %v660 = vld [vmem:[%s1 + $0x14] sm:$0xf]
      %v661 = vld [vmem:[%s1 + $0x18] sm:$0xf]
      %v662 = vld [vmem:[%s1 + $0x1c] sm:$0xf]
      %v663 = vld [vmem:[%s1 + $0x20] sm:$0xf]
      %v664 = vld [vmem:[%s1 + $0x24] sm:$0xf]
      %v665 = vld [vmem:[%s1 + $0x28] sm:$0xf]
      %v666 = vld [vmem:[%s1 + $0x2c] sm:$0xf]
      %v667 = vld [vmem:[%s1 + $0x30] sm:$0xf]
      %v668 = vld [vmem:[%s1 + $0x34] sm:$0xf]
      %v669 = vld [vmem:[%s1 + $0x38] sm:$0xf]
      %v670 = vld [vmem:[%s1 + $0x3c] sm:$0xf]
      %v671 = vld [vmem:[%s1 + $0x40] sm:$0xf]
      %v672 = vld [vmem:[%s1 + $0x44] sm:$0xf]
      %v673 = vld [vmem:[%s1 + $0x48] sm:$0xf]
      %v674 = vld [vmem:[%s1 + $0x4c] sm:$0xf]
      %v675 = vld [vmem:[%s1 + $0x50] sm:$0xf]
      %v676 = vld [vmem:[%s1 + $0x54] sm:$0xf]
      %v677 = vld [vmem:[%s1 + $0x58] sm:$0xf]
      %v678 = vld [vmem:[%s1 + $0x5c] sm:$0xf]
      %v679 = vld [vmem:[%s1 + $0x60] sm:$0xf]
      %v680 = vld [vmem:[%s1 + $0x64] sm:$0xf]
      %v681 = vld [vmem:[%s1 + $0x68] sm:$0xf]
      %v682 = vld [vmem:[%s1 + $0x6c] sm:$0xf]
      %v683 = vld [vmem:[%s1 + $0x70] sm:$0xf]
      %v684 = vld [vmem:[%s1 + $0x74] sm:$0xf]
      %v685 = vld [vmem:[%s1 + $0x78] sm:$0xf]
      %v686 = vld [vmem:[%s1 + $0x7c] sm:$0xf]
      %v687 = vld [vmem:[%s1 + $0x80] sm:$0xf]
      %v688 = vld [vmem:[%s1 + $0x84] sm:$0xf]
      %v689 = vld [vmem:[%s1 + $0x88] sm:$0xf]
      %v690 = vld [vmem:[%s1 + $0x8c] sm:$0xf]
      %v691 = vld [vmem:[%s1 + $0x90] sm:$0xf]
      %v692 = vld [vmem:[%s1 + $0x94] sm:$0xf]
      %v693 = vld [vmem:[%s1 + $0x98] sm:$0xf]
      %v694 = vld [vmem:[%s1 + $0x9c] sm:$0xf]
      %v695 = vld [vmem:[%s1 + $0xa0] sm:$0xf]
      %v696 = vld [vmem:[%s1 + $0xa4] sm:$0xf]
      %v697 = vld [vmem:[%s1 + $0xa8] sm:$0xf]
      %v698 = vld [vmem:[%s1 + $0xac] sm:$0xf]
      %v699 = vld [vmem:[%s1 + $0xb0] sm:$0xf]
      %v700 = vld [vmem:[%s1 + $0xb4] sm:$0xf]
      %v701 = vld [vmem:[%s1 + $0xb8] sm:$0xf]
      %v702 = vld [vmem:[%s1 + $0xbc] sm:$0xf]
      %v703 = vld [vmem:[%s1 + $0xc0] sm:$0xf]
      %v704 = vld [vmem:[%s1 + $0xc4] sm:$0xf]
      %v705 = vld [vmem:[%s1 + $0xc8] sm:$0xf]
      %v706 = vld [vmem:[%s1 + $0xcc] sm:$0xf]
      %v707 = vld [vmem:[%s1 + $0xd0] sm:$0xf]
      %v708 = vld [vmem:[%s1 + $0xd4] sm:$0xf]
      %v709 = vld [vmem:[%s1 + $0xd8] sm:$0xf]
      %v710 = vld [vmem:[%s1 + $0xdc] sm:$0xf]
      %v711 = vld [vmem:[%s1 + $0xe0] sm:$0xf]
      %v712 = vld [vmem:[%s1 + $0xe4] sm:$0xf]
      %v713 = vld [vmem:[%s1 + $0xe8] sm:$0xf]
      %v714 = vld [vmem:[%s1 + $0xec] sm:$0xf]
      %v715 = vld [vmem:[%s1 + $0xf0] sm:$0xf]
      %v716 = vld [vmem:[%s1 + $0xf4] sm:$0xf]
      %v717 = vld [vmem:[%s1 + $0xf8] sm:$0xf]
      %v718 = vld [vmem:[%s1 + $0xfc] sm:$0xf]
      %v719 = vld [vmem:[%s1 + $0x100] sm:$0xf]
      %v720 = vld [vmem:[%s1 + $0x104] sm:$0xf]
      %v721 = vld [vmem:[%s1 + $0x108] sm:$0xf]
      %v722 = vld [vmem:[%s1 + $0x10c] sm:$0xf]
      %v723 = vld [vmem:[%s1 + $0x110] sm:$0xf]
      %v724 = vld [vmem:[%s1 + $0x114] sm:$0xf]
      %v725 = vld [vmem:[%s1 + $0x118] sm:$0xf]
      %v726 = vld [vmem:[%s1 + $0x11c] sm:$0xf]
      %v727 = vld [vmem:[%s2] sm:$0x1]
      %v729 = vlaneseq
      %v730 = vshrl.u32 %v729, 7
      %v731 = vsub.s32 0, %v730
      %v732 = vrot.slane %v727, %v731
      %v734 = vpack.c.b16 %v626, %v621
      %v735 = vpack.c.b16 %v627, %v622
      %v736 = vpack.c.b16 %v628, %v623
      %v737 = vpack.c.b16 %v629, %v624
      %v738 = vpack.c.b16 %v630, %v625
      %v739 = vpack.c.b16 %v635, %v631
      %v740 = vpack.c.b16 %v636, %v632
      %v741 = vpack.c.b16 %v637, %v633
      %v742 = vpack.c.b16 %v638, %v634
      %v743 = vpack.c.b16 %v643, %v639
      %v744 = vpack.c.b16 %v644, %v640
      %v745 = vpack.c.b16 %v645, %v641
      %v746 = vpack.c.b16 %v646, %v642
      %v747 = vpack.c.b16 %v651, %v647
      %v748 = vpack.c.b16 %v652, %v648
      %v749 = vpack.c.b16 %v653, %v649
      %v750 = vpack.c.b16 %v654, %v650
      %v836 = vunpack.c.l.b16 %v655
      %v837 = vunpack.c.l.b16 %v656
      %v838 = vunpack.c.l.b16 %v657
      %v839 = vunpack.c.l.b16 %v658
      %v840 = vunpack.c.l.b16 %v659
      %v841 = vunpack.c.l.b16 %v660
      %v842 = vunpack.c.l.b16 %v661
      %v843 = vunpack.c.l.b16 %v662
      %v844 = vunpack.c.l.b16 %v663
      %v845 = vunpack.c.l.b16 %v664
      %v846 = vunpack.c.l.b16 %v665
      %v847 = vunpack.c.l.b16 %v666
      %v848 = vunpack.c.l.b16 %v667
      %v849 = vunpack.c.l.b16 %v668
      %v850 = vunpack.c.l.b16 %v669
      %v851 = vunpack.c.l.b16 %v670
      %v852 = vunpack.c.l.b16 %v671
      %v853 = vunpack.c.l.b16 %v672
      %v854 = vunpack.c.l.b16 %v673
      %v855 = vunpack.c.l.b16 %v674
      %v856 = vunpack.c.l.b16 %v675
      %v857 = vunpack.c.l.b16 %v676
      %v858 = vunpack.c.l.b16 %v677
      %v859 = vunpack.c.l.b16 %v678
      %v860 = vunpack.c.l.b16 %v679
      %v861 = vunpack.c.l.b16 %v680
      %v862 = vunpack.c.l.b16 %v681
      %v863 = vunpack.c.l.b16 %v682
      %v864 = vunpack.c.l.b16 %v683
      %v865 = vunpack.c.l.b16 %v684
      %v866 = vunpack.c.l.b16 %v685
      %v867 = vunpack.c.l.b16 %v686
      %v868 = vunpack.c.l.b16 %v687
      %v869 = vunpack.c.l.b16 %v688
      %v870 = vunpack.c.l.b16 %v689
      %v871 = vunpack.c.l.b16 %v690
      %v872 = vunpack.c.l.b16 %v691
      %v873 = vunpack.c.l.b16 %v692
      %v874 = vunpack.c.l.b16 %v693
      %v875 = vunpack.c.l.b16 %v694
      %v876 = vunpack.c.l.b16 %v695
      %v877 = vunpack.c.l.b16 %v696
      %v878 = vunpack.c.l.b16 %v697
      %v879 = vunpack.c.l.b16 %v698
      %v880 = vunpack.c.l.b16 %v699
      %v881 = vunpack.c.l.b16 %v700
      %v882 = vunpack.c.l.b16 %v701
      %v883 = vunpack.c.l.b16 %v702
      %v884 = vunpack.c.l.b16 %v703
      %v885 = vunpack.c.l.b16 %v704
      %v886 = vunpack.c.l.b16 %v705
      %v887 = vunpack.c.l.b16 %v706
      %v888 = vunpack.c.l.b16 %v707
      %v889 = vunpack.c.l.b16 %v708
      %v890 = vunpack.c.l.b16 %v709
      %v891 = vunpack.c.l.b16 %v710
      %v892 = vunpack.c.l.b16 %v711
      %v893 = vunpack.c.l.b16 %v712
      %v894 = vunpack.c.l.b16 %v713
      %v895 = vunpack.c.l.b16 %v714
      %v896 = vunpack.c.l.b16 %v715
      %v897 = vunpack.c.l.b16 %v716
      %v898 = vunpack.c.l.b16 %v717
      %v899 = vunpack.c.l.b16 %v718
      %v900 = vunpack.c.l.b16 %v719
      %v901 = vunpack.c.l.b16 %v720
      %v902 = vunpack.c.l.b16 %v721
      %v903 = vunpack.c.l.b16 %v722
      %v904 = vunpack.c.l.b16 %v723
      %v905 = vunpack.c.l.b16 %v724
      %v906 = vunpack.c.l.b16 %v725
      %v907 = vunpack.c.l.b16 %v726
      %v908 = vpack.c.b16 %v837, %v836
      %v909 = vpack.c.b16 %v839, %v838
      %v910 = vpack.c.b16 %v841, %v840
      %v911 = vpack.c.b16 %v843, %v842
      %v912 = vpack.c.b16 %v845, %v844
      %v913 = vpack.c.b16 %v847, %v846
      %v914 = vpack.c.b16 %v849, %v848
      %v915 = vpack.c.b16 %v851, %v850
      %v916 = vpack.c.b16 %v853, %v852
      %v917 = vpack.c.b16 %v855, %v854
      %v918 = vpack.c.b16 %v857, %v856
      %v919 = vpack.c.b16 %v859, %v858
      %v920 = vpack.c.b16 %v861, %v860
      %v921 = vpack.c.b16 %v863, %v862
      %v922 = vpack.c.b16 %v865, %v864
      %v923 = vpack.c.b16 %v867, %v866
      %v924 = vpack.c.b16 %v869, %v868
      %v925 = vpack.c.b16 %v871, %v870
      %v926 = vpack.c.b16 %v873, %v872
      %v927 = vpack.c.b16 %v875, %v874
      %v928 = vpack.c.b16 %v877, %v876
      %v929 = vpack.c.b16 %v879, %v878
      %v930 = vpack.c.b16 %v881, %v880
      %v931 = vpack.c.b16 %v883, %v882
      %v932 = vpack.c.b16 %v885, %v884
      %v933 = vpack.c.b16 %v887, %v886
      %v934 = vpack.c.b16 %v889, %v888
      %v935 = vpack.c.b16 %v891, %v890
      %v936 = vpack.c.b16 %v893, %v892
      %v937 = vpack.c.b16 %v895, %v894
      %v938 = vpack.c.b16 %v897, %v896
      %v939 = vpack.c.b16 %v899, %v898
      %v940 = vpack.c.b16 %v901, %v900
      %v941 = vpack.c.b16 %v903, %v902
      %v942 = vpack.c.b16 %v905, %v904
      %v943 = vpack.c.b16 %v907, %v906
      %v981 = vsel %vm516, %v738, 0
      %v984 = vsel %vm516, %v742, 0
      %v987 = vsel %vm516, %v746, 0
      %v990 = vsel %vm516, %v750, 0
      %992 = vmatprep.subr.bf16.mxu0 0
      %993 = vmatpush1.bf16.msra.mxu0 %v915
      %994 = vmatprep.subr.bf16.mxu0 0
      %995 = vmatpush1.bf16.msra.mxu0 %v914
      %996 = vmatprep.subr.bf16.mxu0 0
      %997 = vmatpush1.bf16.msra.mxu0 %v913
      %998 = vmatprep.subr.bf16.mxu0 0
      %999 = vmatpush1.bf16.msra.mxu0 %v912
      %1000 = vmatprep.subr.bf16.mxu0 0
      %1001 = vmatpush1.bf16.msra.mxu0 %v911
      %1002 = vmatprep.subr.bf16.mxu0 0
      %1003 = vmatpush1.bf16.msra.mxu0 %v910
      %1004 = vmatprep.subr.bf16.mxu0 0
      %1005 = vmatpush1.bf16.msra.mxu0 %v909
      %1006 = vmatprep.subr.bf16.mxu0 0
      %1007 = vmatpush1.bf16.msra.mxu0 %v908
      %1008 = vmatprep.subr.bf16.mxu0 0
      %1009 = vmatpush2.bf16.msra.mxu0 %v923
      %1010 = vmatprep.subr.bf16.mxu0 0
      %1011 = vmatpush2.bf16.msra.mxu0 %v922
      %1012 = vmatprep.subr.bf16.mxu0 0
      %1013 = vmatpush2.bf16.msra.mxu0 %v921
      %1014 = vmatprep.subr.bf16.mxu0 0
      %1015 = vmatpush2.bf16.msra.mxu0 %v920
      %1016 = vmatprep.subr.bf16.mxu0 0
      %1017 = vmatpush2.bf16.msra.mxu0 %v919
      %1018 = vmatprep.subr.bf16.mxu0 0
      %1019 = vmatpush2.bf16.msra.mxu0 %v918
      %1020 = vmatprep.subr.bf16.mxu0 0
      %1021 = vmatpush2.bf16.msra.mxu0 %v917
      %1022 = vmatprep.subr.bf16.mxu0 0
      %1023 = vmatpush2.bf16.msra.mxu0 %v916
      %1024 = vmatprep.mubr.bf16.mxu0 %v735
      %1025 = vmatmul.mubr.bf16.gmra.mxu0 %v734
      %v1026 = vpop.f32.mrf.mxu0
      %v1027 = vadd.f32 %v732, %v1026
      %v1028 = vpop.f32.mrf.mxu0
      %v1029 = vpop.f32.mrf.mxu0
      %v1030 = vadd.f32 %v732, %v1029
      %v1031 = vpop.f32.mrf.mxu0
      %1032 = vmatprep.mubr.bf16.mxu0 %v739
      %1033 = vmatmul.mubr.bf16.gmra.mxu0 %v737
      %v1034 = vpop.f32.mrf.mxu0
      %v1035 = vadd.f32 %v732, %v1034
      %v1036 = vpop.f32.mrf.mxu0
      %v1037 = vpop.f32.mrf.mxu0
      %v1038 = vadd.f32 %v732, %v1037
      %v1039 = vpop.f32.mrf.mxu0
      %1040 = vmatprep.mubr.bf16.mxu0 %v743
      %1041 = vmatmul.mubr.bf16.gmra.mxu0 %v741
      %v1042 = vpop.f32.mrf.mxu0
      %v1043 = vadd.f32 %v732, %v1042
      %v1044 = vpop.f32.mrf.mxu0
      %v1045 = vpop.f32.mrf.mxu0
      %v1046 = vadd.f32 %v732, %v1045
      %v1047 = vpop.f32.mrf.mxu0
      %1048 = vmatprep.mubr.bf16.mxu0 %v747
      %1049 = vmatmul.mubr.bf16.gmra.mxu0 %v745
      %v1050 = vpop.f32.mrf.mxu0
      %v1051 = vadd.f32 %v732, %v1050
      %v1052 = vpop.f32.mrf.mxu0
      %v1053 = vpop.f32.mrf.mxu0
      %v1054 = vadd.f32 %v732, %v1053
      %v1055 = vpop.f32.mrf.mxu0
      %1056 = vdwg.mxu0
      %1057 = vmatprep.subr.bf16.mxu0 0
      %1058 = vmatpush1.bf16.msra.mxu0 %v931
      %1059 = vmatprep.subr.bf16.mxu0 0
      %1060 = vmatpush1.bf16.msra.mxu0 %v930
      %1061 = vmatprep.subr.bf16.mxu0 0
      %1062 = vmatpush1.bf16.msra.mxu0 %v929
      %1063 = vmatprep.subr.bf16.mxu0 0
      %1064 = vmatpush1.bf16.msra.mxu0 %v928
      %1065 = vmatprep.subr.bf16.mxu0 0
      %1066 = vmatpush1.bf16.msra.mxu0 %v927
      %1067 = vmatprep.subr.bf16.mxu0 0
      %1068 = vmatpush1.bf16.msra.mxu0 %v926
      %1069 = vmatprep.subr.bf16.mxu0 0
      %1070 = vmatpush1.bf16.msra.mxu0 %v925
      %1071 = vmatprep.subr.bf16.mxu0 0
      %1072 = vmatpush1.bf16.msra.mxu0 %v924
      %1073 = vmatprep.subr.bf16.mxu0 0
      %1074 = vmatpush2.bf16.msra.mxu0 %v939
      %1075 = vmatprep.subr.bf16.mxu0 0
      %1076 = vmatpush2.bf16.msra.mxu0 %v938
      %1077 = vmatprep.subr.bf16.mxu0 0
      %1078 = vmatpush2.bf16.msra.mxu0 %v937
      %1079 = vmatprep.subr.bf16.mxu0 0
      %1080 = vmatpush2.bf16.msra.mxu0 %v936
      %1081 = vmatprep.subr.bf16.mxu0 0
      %1082 = vmatpush2.bf16.msra.mxu0 %v935
      %1083 = vmatprep.subr.bf16.mxu0 0
      %1084 = vmatpush2.bf16.msra.mxu0 %v934
      %1085 = vmatprep.subr.bf16.mxu0 0
      %1086 = vmatpush2.bf16.msra.mxu0 %v933
      %1087 = vmatprep.subr.bf16.mxu0 0
      %1088 = vmatpush2.bf16.msra.mxu0 %v932
      %1089 = vmatprep.mubr.bf16.mxu0 %v737
      %1090 = vmatmul.mubr.bf16.gmra.mxu0 %v736
      %v1091 = vpop.f32.mrf.mxu0
      %v1092 = vadd.f32 %v1027, %v1091
      %v1093 = vpop.f32.mrf.mxu0
      %v1094 = vpop.f32.mrf.mxu0
      %v1095 = vadd.f32 %v1030, %v1094
      %v1096 = vpop.f32.mrf.mxu0
      %1097 = vmatprep.mubr.bf16.mxu0 %v741
      %1098 = vmatmul.mubr.bf16.gmra.mxu0 %v740
      %v1099 = vpop.f32.mrf.mxu0
      %v1100 = vadd.f32 %v1035, %v1099
      %v1101 = vpop.f32.mrf.mxu0
      %v1102 = vpop.f32.mrf.mxu0
      %v1103 = vadd.f32 %v1038, %v1102
      %v1104 = vpop.f32.mrf.mxu0
      %1105 = vmatprep.mubr.bf16.mxu0 %v745
      %1106 = vmatmul.mubr.bf16.gmra.mxu0 %v744
      %v1107 = vpop.f32.mrf.mxu0
      %v1108 = vadd.f32 %v1043, %v1107
      %v1109 = vpop.f32.mrf.mxu0
      %v1110 = vpop.f32.mrf.mxu0
      %v1111 = vadd.f32 %v1046, %v1110
      %v1112 = vpop.f32.mrf.mxu0
      %1113 = vmatprep.mubr.bf16.mxu0 %v749
      %1114 = vmatmul.mubr.bf16.gmra.mxu0 %v748
      %v1115 = vpop.f32.mrf.mxu0
      %v1116 = vadd.f32 %v1051, %v1115
      %v1117 = vpop.f32.mrf.mxu0
      %v1118 = vpop.f32.mrf.mxu0
      %v1119 = vadd.f32 %v1054, %v1118
      %v1120 = vpop.f32.mrf.mxu0
      %1121 = vdwg.mxu0
      %1122 = vmatprep.subr.bf16.mxu0 0
      %1123 = vmatpush1.bf16.msra.mxu0 0
      %1124 = vmatprep.subr.bf16.mxu0 0
      %1125 = vmatpush1.bf16.msra.mxu0 0
      %1126 = vmatprep.subr.bf16.mxu0 0
      %1127 = vmatpush1.bf16.msra.mxu0 0
      %1128 = vmatprep.subr.bf16.mxu0 0
      %1129 = vmatpush1.bf16.msra.mxu0 0
      %1130 = vmatprep.subr.bf16.mxu0 0
      %1131 = vmatpush1.bf16.msra.mxu0 %v943
      %1132 = vmatprep.subr.bf16.mxu0 0
      %1133 = vmatpush1.bf16.msra.mxu0 %v942
      %1134 = vmatprep.subr.bf16.mxu0 0
      %1135 = vmatpush1.bf16.msra.mxu0 %v941
      %1136 = vmatprep.subr.bf16.mxu0 0
      %1137 = vmatpush1.bf16.msra.mxu0 %v940
      %1138 = vmatprep.subr.bf16.mxu0 0
      %1139 = vmatpush2.bf16.msra.mxu0 0
      %1140 = vmatprep.subr.bf16.mxu0 0
      %1141 = vmatpush2.bf16.msra.mxu0 0
      %1142 = vmatprep.subr.bf16.mxu0 0
      %1143 = vmatpush2.bf16.msra.mxu0 0
      %1144 = vmatprep.subr.bf16.mxu0 0
      %1145 = vmatpush2.bf16.msra.mxu0 0
      %1146 = vmatprep.subr.bf16.mxu0 0
      %1147 = vmatpush2.bf16.msra.mxu0 0
      %1148 = vmatprep.subr.bf16.mxu0 0
      %1149 = vmatpush2.bf16.msra.mxu0 0
      %1150 = vmatprep.subr.bf16.mxu0 0
      %1151 = vmatpush2.bf16.msra.mxu0 0
      %1152 = vmatprep.subr.bf16.mxu0 0
      %1153 = vmatpush2.bf16.msra.mxu0 0
      %1154 = vmatprep.mubr.bf16.mxu0 0
      %1155 = vmatmul.mubr.bf16.gmra.mxu0 %v981
      %v1156 = vpop.f32.mrf.mxu0
      %v1157 = vadd.f32 %v1092, %v1156
      %v1158 = vpop.f32.mrf.mxu0
      %v1159 = vpop.f32.mrf.mxu0
      %v1160 = vadd.f32 %v1095, %v1159
      %v1161 = vpop.f32.mrf.mxu0
      %1162 = vmatprep.mubr.bf16.mxu0 0
      %1163 = vmatmul.mubr.bf16.gmra.mxu0 %v984
      %v1164 = vpop.f32.mrf.mxu0
      %v1165 = vadd.f32 %v1100, %v1164
      %v1166 = vpop.f32.mrf.mxu0
      %v1167 = vpop.f32.mrf.mxu0
      %v1168 = vadd.f32 %v1103, %v1167
      %v1169 = vpop.f32.mrf.mxu0
      %1170 = vmatprep.mubr.bf16.mxu0 0
      %1171 = vmatmul.mubr.bf16.gmra.mxu0 %v987
      %v1172 = vpop.f32.mrf.mxu0
      %v1173 = vadd.f32 %v1108, %v1172
      %v1174 = vpop.f32.mrf.mxu0
      %v1175 = vpop.f32.mrf.mxu0
      %v1176 = vadd.f32 %v1111, %v1175
      %v1177 = vpop.f32.mrf.mxu0
      %1178 = vmatprep.mubr.bf16.mxu0 0
      %1179 = vmatmul.mubr.bf16.gmra.mxu0 %v990
      %v1180 = vpop.f32.mrf.mxu0
      %v1181 = vadd.f32 %v1116, %v1180
      %v1182 = vpop.f32.mrf.mxu0
      %v1183 = vpop.f32.mrf.mxu0
      %v1184 = vadd.f32 %v1119, %v1183
      %v1185 = vpop.f32.mrf.mxu0
      %1186 = vdwg.mxu0
      %v1187 = vmax.f32 %v1157, 0.0
      %v1188 = vmax.f32 %v1160, 0.0
      %v1189 = vmax.f32 %v1165, 0.0
      %v1190 = vmax.f32 %v1168, 0.0
      %v1191 = vmax.f32 %v1173, 0.0
      %v1192 = vmax.f32 %v1176, 0.0
      %v1193 = vmax.f32 %v1181, 0.0
      %v1194 = vmax.f32 %v1184, 0.0
      %v1195 = vpack.c.bf16 %v1188, %v1187
      %v1196 = vpack.c.bf16 %v1190, %v1189
      %v1197 = vpack.c.bf16 %v1192, %v1191
      %v1198 = vpack.c.bf16 %v1194, %v1193
      %v1199 = vld [vmem:[%s3] sm:$0xff]
      %v1200 = vld [vmem:[%s3 + $0x8] sm:$0xff]
      %v1201 = vld [vmem:[%s3 + $0x10] sm:$0xff]
      %v1202 = vld [vmem:[%s3 + $0x18] sm:$0xff]
      %v1203 = vld [vmem:[%s3 + $0x20] sm:$0xff]
      %v1204 = vld [vmem:[%s3 + $0x28] sm:$0xff]
      %v1205 = vld [vmem:[%s3 + $0x30] sm:$0xff]
      %v1206 = vld [vmem:[%s3 + $0x38] sm:$0xff]
      %v1207 = vld [vmem:[%s3 + $0x40] sm:$0xff]
      %v1208 = vld [vmem:[%s3 + $0x48] sm:$0xff]
      %v1209 = vld [vmem:[%s3 + $0x50] sm:$0xff]
      %v1210 = vld [vmem:[%s3 + $0x58] sm:$0xff]
      %v1211 = vld [vmem:[%s3 + $0x60] sm:$0xff]
      %v1212 = vld [vmem:[%s3 + $0x68] sm:$0xff]
      %v1213 = vld [vmem:[%s3 + $0x70] sm:$0xff]
      %v1214 = vld [vmem:[%s3 + $0x78] sm:$0xff]
      %v1215 = vld [vmem:[%s4] sm:$0x3]
      %v1217 = vlaneseq
      %v1218 = vshrl.u32 %v1217, 7
      %v1219 = vsub.s32 0, %v1218
      %v1220 = vrot.slane %v1215, %v1219
      %v1221 = vlaneseq
      %v1222 = vshrl.u32 %v1221, 7
      %v1223 = vsub.s32 1, %v1222
      %v1224 = vrot.slane %v1215, %v1223
      %v1243 = vunpack.c.l.b16 %v1199
      %v1244 = vunpack.c.h.b16 %v1199
      %v1245 = vunpack.c.l.b16 %v1200
      %v1246 = vunpack.c.h.b16 %v1200
      %v1247 = vunpack.c.l.b16 %v1201
      %v1248 = vunpack.c.h.b16 %v1201
      %v1249 = vunpack.c.l.b16 %v1202
      %v1250 = vunpack.c.h.b16 %v1202
      %v1251 = vunpack.c.l.b16 %v1203
      %v1252 = vunpack.c.h.b16 %v1203
      %v1253 = vunpack.c.l.b16 %v1204
      %v1254 = vunpack.c.h.b16 %v1204
      %v1255 = vunpack.c.l.b16 %v1205
      %v1256 = vunpack.c.h.b16 %v1205
      %v1257 = vunpack.c.l.b16 %v1206
      %v1258 = vunpack.c.h.b16 %v1206
      %v1259 = vunpack.c.l.b16 %v1207
      %v1260 = vunpack.c.h.b16 %v1207
      %v1261 = vunpack.c.l.b16 %v1208
      %v1262 = vunpack.c.h.b16 %v1208
      %v1263 = vunpack.c.l.b16 %v1209
      %v1264 = vunpack.c.h.b16 %v1209
      %v1265 = vunpack.c.l.b16 %v1210
      %v1266 = vunpack.c.h.b16 %v1210
      %v1267 = vunpack.c.l.b16 %v1211
      %v1268 = vunpack.c.h.b16 %v1211
      %v1269 = vunpack.c.l.b16 %v1212
      %v1270 = vunpack.c.h.b16 %v1212
      %v1271 = vunpack.c.l.b16 %v1213
      %v1272 = vunpack.c.h.b16 %v1213
      %v1273 = vunpack.c.l.b16 %v1214
      %v1274 = vunpack.c.h.b16 %v1214
      %v1275 = vpack.c.b16 %v1245, %v1243
      %v1276 = vpack.c.b16 %v1246, %v1244
      %v1277 = vpack.c.b16 %v1249, %v1247
      %v1278 = vpack.c.b16 %v1250, %v1248
      %v1279 = vpack.c.b16 %v1253, %v1251
      %v1280 = vpack.c.b16 %v1254, %v1252
      %v1281 = vpack.c.b16 %v1257, %v1255
      %v1282 = vpack.c.b16 %v1258, %v1256
      %v1283 = vpack.c.b16 %v1261, %v1259
      %v1284 = vpack.c.b16 %v1262, %v1260
      %v1285 = vpack.c.b16 %v1265, %v1263
      %v1286 = vpack.c.b16 %v1266, %v1264
      %v1287 = vpack.c.b16 %v1269, %v1267
      %v1288 = vpack.c.b16 %v1270, %v1268
      %v1289 = vpack.c.b16 %v1273, %v1271
      %v1290 = vpack.c.b16 %v1274, %v1272
      %1307 = vmatprep.subr.bf16.mxu0 %v1290
      %1308 = vmatpush1.bf16.msra.mxu0 %v1289
      %1309 = vmatprep.subr.bf16.mxu0 %v1288
      %1310 = vmatpush1.bf16.msra.mxu0 %v1287
      %1311 = vmatprep.subr.bf16.mxu0 %v1286
      %1312 = vmatpush1.bf16.msra.mxu0 %v1285
      %1313 = vmatprep.subr.bf16.mxu0 %v1284
      %1314 = vmatpush1.bf16.msra.mxu0 %v1283
      %1315 = vmatprep.subr.bf16.mxu0 %v1282
      %1316 = vmatpush1.bf16.msra.mxu0 %v1281
      %1317 = vmatprep.subr.bf16.mxu0 %v1280
      %1318 = vmatpush1.bf16.msra.mxu0 %v1279
      %1319 = vmatprep.subr.bf16.mxu0 %v1278
      %1320 = vmatpush1.bf16.msra.mxu0 %v1277
      %1321 = vmatprep.subr.bf16.mxu0 %v1276
      %1322 = vmatpush1.bf16.msra.mxu0 %v1275
      %1323 = vmatprep.subr.bf16.mxu0 0
      %1324 = vmatpush2.bf16.msra.mxu0 0
      %1325 = vmatprep.subr.bf16.mxu0 0
      %1326 = vmatpush2.bf16.msra.mxu0 0
      %1327 = vmatprep.subr.bf16.mxu0 0
      %1328 = vmatpush2.bf16.msra.mxu0 0
      %1329 = vmatprep.subr.bf16.mxu0 0
      %1330 = vmatpush2.bf16.msra.mxu0 0
      %1331 = vmatprep.subr.bf16.mxu0 0
      %1332 = vmatpush2.bf16.msra.mxu0 0
      %1333 = vmatprep.subr.bf16.mxu0 0
      %1334 = vmatpush2.bf16.msra.mxu0 0
      %1335 = vmatprep.subr.bf16.mxu0 0
      %1336 = vmatpush2.bf16.msra.mxu0 0
      %1337 = vmatprep.subr.bf16.mxu0 0
      %1338 = vmatpush2.bf16.msra.mxu0 0
      %1339 = vmatprep.mubr.bf16.mxu0 0
      %1340 = vmatmul.mubr.bf16.gmra.mxu0 %v1195
      %v1341 = vpop.f32.mrf.mxu0
      %v1342 = vadd.f32 %v1220, %v1341
      %v1343 = vpop.f32.mrf.mxu0
      %v1344 = vadd.f32 %v1224, %v1343
      %v1345 = vpop.f32.mrf.mxu0
      %v1346 = vadd.f32 %v1220, %v1345
      %v1347 = vpop.f32.mrf.mxu0
      %v1348 = vadd.f32 %v1224, %v1347
      %1349 = vmatprep.mubr.bf16.mxu0 0
      %1350 = vmatmul.mubr.bf16.gmra.mxu0 %v1196
      %v1351 = vpop.f32.mrf.mxu0
      %v1352 = vadd.f32 %v1220, %v1351
      %v1353 = vpop.f32.mrf.mxu0
      %v1354 = vadd.f32 %v1224, %v1353
      %v1355 = vpop.f32.mrf.mxu0
      %v1356 = vadd.f32 %v1220, %v1355
      %v1357 = vpop.f32.mrf.mxu0
      %v1358 = vadd.f32 %v1224, %v1357
      %1359 = vmatprep.mubr.bf16.mxu0 0
      %1360 = vmatmul.mubr.bf16.gmra.mxu0 %v1197
      %v1361 = vpop.f32.mrf.mxu0
      %v1362 = vadd.f32 %v1220, %v1361
      %v1363 = vpop.f32.mrf.mxu0
      %v1364 = vadd.f32 %v1224, %v1363
      %v1365 = vpop.f32.mrf.mxu0
      %v1366 = vadd.f32 %v1220, %v1365
      %v1367 = vpop.f32.mrf.mxu0
      %v1368 = vadd.f32 %v1224, %v1367
      %1369 = vmatprep.mubr.bf16.mxu0 0
      %1370 = vmatmul.mubr.bf16.gmra.mxu0 %v1198
      %v1371 = vpop.f32.mrf.mxu0
      %v1372 = vadd.f32 %v1220, %v1371
      %v1373 = vpop.f32.mrf.mxu0
      %v1374 = vadd.f32 %v1224, %v1373
      %v1375 = vpop.f32.mrf.mxu0
      %v1376 = vadd.f32 %v1220, %v1375
      %v1377 = vpop.f32.mrf.mxu0
      %v1378 = vadd.f32 %v1224, %v1377
      %1379 = vdwg.mxu0
      %v1380 = vmax.f32 %v1342, 0.0
      %v1381 = vmax.f32 %v1344, 0.0
      %v1382 = vmax.f32 %v1346, 0.0
      %v1383 = vmax.f32 %v1348, 0.0
      %v1384 = vmax.f32 %v1352, 0.0
      %v1385 = vmax.f32 %v1354, 0.0
      %v1386 = vmax.f32 %v1356, 0.0
      %v1387 = vmax.f32 %v1358, 0.0
      %v1388 = vmax.f32 %v1362, 0.0
      %v1389 = vmax.f32 %v1364, 0.0
      %v1390 = vmax.f32 %v1366, 0.0
      %v1391 = vmax.f32 %v1368, 0.0
      %v1392 = vmax.f32 %v1372, 0.0
      %v1393 = vmax.f32 %v1374, 0.0
      %v1394 = vmax.f32 %v1376, 0.0
      %v1395 = vmax.f32 %v1378, 0.0
      %v1396 = vld [vmem:[%s5] sm:$0x1]
      %v1397 = vld [vmem:[#allocation2] sm:$0x1]
      %s1398 = vtos %v1397
      %v1400 = vlaneseq
      %v1401 = vshrl.u32 %v1400, 7
      %v1402 = vsub.s32 0, %v1401
      %v1403 = vrot.slane %v1396, %v1402
      %v1405 = vmul.f32 %v1380, %v1403
      %v1406 = vmul.f32 %v1382, %v1403
      %v1407 = vmul.f32 %v1384, %v1403
      %v1408 = vmul.f32 %v1386, %v1403
      %v1409 = vmul.f32 %v1388, %v1403
      %v1410 = vmul.f32 %v1390, %v1403
      %v1411 = vmul.f32 %v1392, %v1403
      %v1412 = vmul.f32 %v1394, %v1403
      %v1413 = vsel %vm516, %v1405, 0.0
      %1414 = vadd.xlane.f32.xlu0 %v1413
      %v1415 = vpop.xlane.xlu0 %1414
      %v1416 = vsel %vm516, %v1406, 0.0
      %1417 = vadd.xlane.f32.xlu0 %v1416
      %v1418 = vpop.xlane.xlu0 %1417
      %v1419 = vsel %vm516, %v1407, 0.0
      %1420 = vadd.xlane.f32.xlu0 %v1419
      %v1421 = vpop.xlane.xlu0 %1420
      %v1422 = vsel %vm516, %v1408, 0.0
      %1423 = vadd.xlane.f32.xlu0 %v1422
      %v1424 = vpop.xlane.xlu0 %1423
      %v1425 = vsel %vm516, %v1409, 0.0
      %1426 = vadd.xlane.f32.xlu0 %v1425
      %v1427 = vpop.xlane.xlu0 %1426
      %v1428 = vsel %vm516, %v1410, 0.0
      %1429 = vadd.xlane.f32.xlu0 %v1428
      %v1430 = vpop.xlane.xlu0 %1429
      %v1431 = vsel %vm516, %v1411, 0.0
      %1432 = vadd.xlane.f32.xlu0 %v1431
      %v1433 = vpop.xlane.xlu0 %1432
      %v1434 = vsel %vm516, %v1412, 0.0
      %1435 = vadd.xlane.f32.xlu0 %v1434
      %v1436 = vpop.xlane.xlu0 %1435
      %v1437 = vstv %s1398
      %v1438 = vadd.f32 %v1415, %v1437
      %v1439 = vadd.f32 %v1418, %v1437
      %v1440 = vadd.f32 %v1421, %v1437
      %v1441 = vadd.f32 %v1424, %v1437
      %v1442 = vadd.f32 %v1427, %v1437
      %v1443 = vadd.f32 %v1430, %v1437
      %v1444 = vadd.f32 %v1433, %v1437
      %v1445 = vadd.f32 %v1436, %v1437
      %v1454 = vlaneseq
      %v1455 = vand.u32 %v1454, 127
      %v1456 = vlaneseq
      %v1457 = vshrl.u32 %v1456, 7
      %v1458 = vsub.s32 %v1455, %v1457
      %v1459 = vrot.slane %v1438, %v1458
      %v1460 = vlaneseq
      %v1461 = vshrl.u32 %v1460, 7
      %v1462 = vsub.s32 %v1455, %v1461
      %v1463 = vrot.slane %v1439, %v1462
      %v1464 = vlaneseq
      %v1465 = vshrl.u32 %v1464, 7
      %v1466 = vsub.s32 %v1455, %v1465
      %v1467 = vrot.slane %v1440, %v1466
      %v1468 = vlaneseq
      %v1469 = vshrl.u32 %v1468, 7
      %v1470 = vsub.s32 %v1455, %v1469
      %v1471 = vrot.slane %v1441, %v1470
      %v1472 = vlaneseq
      %v1473 = vshrl.u32 %v1472, 7
      %v1474 = vsub.s32 %v1455, %v1473
      %v1475 = vrot.slane %v1442, %v1474
      %v1476 = vlaneseq
      %v1477 = vshrl.u32 %v1476, 7
      %v1478 = vsub.s32 %v1455, %v1477
      %v1479 = vrot.slane %v1443, %v1478
      %v1480 = vlaneseq
      %v1481 = vshrl.u32 %v1480, 7
      %v1482 = vsub.s32 %v1455, %v1481
      %v1483 = vrot.slane %v1444, %v1482
      %v1484 = vlaneseq
      %v1485 = vshrl.u32 %v1484, 7
      %v1486 = vsub.s32 %v1455, %v1485
      %v1487 = vrot.slane %v1445, %v1486
      %vm1488 = vcmask 1041409
      %v1489 = vsel %vm1488, %v1463, %v1459
      %vm1490 = vcmask 1042434
      %v1491 = vsel %vm1490, %v1467, %v1489
      %vm1492 = vcmask 1043459
      %v1493 = vsel %vm1492, %v1471, %v1491
      %vm1494 = vcmask 1044484
      %v1495 = vsel %vm1494, %v1475, %v1493
      %vm1496 = vcmask 1045509
      %v1497 = vsel %vm1496, %v1479, %v1495
      %vm1498 = vcmask 1046534
      %v1499 = vsel %vm1498, %v1483, %v1497
      %vm1500 = vcmask 1047559
      %v1501 = vsel %vm1500, %v1487, %v1499
      %vm1503 = vcmask 64512
      %1504 = vst.msk [vmem:[%s300] sm:$0xff] %vm1503, %v1501
      %1505 = vrot.lane.b32.xlu0 %v1403, 64
      %v1506 = vpop.permute.xlu0 %1505
      %v1508 = vmul.f32 %v1380, %v1506
      %v1509 = vmul.f32 %v1382, %v1506
      %v1510 = vmul.f32 %v1384, %v1506
      %v1511 = vmul.f32 %v1386, %v1506
      %v1512 = vmul.f32 %v1388, %v1506
      %v1513 = vmul.f32 %v1390, %v1506
      %v1514 = vmul.f32 %v1392, %v1506
      %v1515 = vmul.f32 %v1394, %v1506
      %1524 = vrot.lane.b32.xlu0 %v1508, 64
      %v1525 = vpop.permute.xlu0 %1524
      %1526 = vrot.lane.b32.xlu0 %v1509, 64
      %v1527 = vpop.permute.xlu0 %1526
      %1528 = vrot.lane.b32.xlu0 %v1510, 64
      %v1529 = vpop.permute.xlu0 %1528
      %1530 = vrot.lane.b32.xlu0 %v1511, 64
      %v1531 = vpop.permute.xlu0 %1530
      %1532 = vrot.lane.b32.xlu0 %v1512, 64
      %v1533 = vpop.permute.xlu0 %1532
      %1534 = vrot.lane.b32.xlu0 %v1513, 64
      %v1535 = vpop.permute.xlu0 %1534
      %1536 = vrot.lane.b32.xlu0 %v1514, 64
      %v1537 = vpop.permute.xlu0 %1536
      %1538 = vrot.lane.b32.xlu0 %v1515, 64
      %v1539 = vpop.permute.xlu0 %1538
      %v1548 = vsel %vm516, %v1525, 0.0
      %1549 = vadd.xlane.f32.xlu0 %v1548
      %v1550 = vpop.xlane.xlu0 %1549
      %v1551 = vsel %vm516, %v1527, 0.0
      %1552 = vadd.xlane.f32.xlu0 %v1551
      %v1553 = vpop.xlane.xlu0 %1552
      %v1554 = vsel %vm516, %v1529, 0.0
      %1555 = vadd.xlane.f32.xlu0 %v1554
      %v1556 = vpop.xlane.xlu0 %1555
      %v1557 = vsel %vm516, %v1531, 0.0
      %1558 = vadd.xlane.f32.xlu0 %v1557
      %v1559 = vpop.xlane.xlu0 %1558
      %v1560 = vsel %vm516, %v1533, 0.0
      %1561 = vadd.xlane.f32.xlu0 %v1560
      %v1562 = vpop.xlane.xlu0 %1561
      %v1563 = vsel %vm516, %v1535, 0.0
      %1564 = vadd.xlane.f32.xlu0 %v1563
      %v1565 = vpop.xlane.xlu0 %1564
      %v1566 = vsel %vm516, %v1537, 0.0
      %1567 = vadd.xlane.f32.xlu0 %v1566
      %v1568 = vpop.xlane.xlu0 %1567
      %v1569 = vsel %vm516, %v1539, 0.0
      %1570 = vadd.xlane.f32.xlu0 %v1569
      %v1571 = vpop.xlane.xlu0 %1570
      %v1572 = vadd.f32 %v1550, %v1437
      %v1573 = vadd.f32 %v1553, %v1437
      %v1574 = vadd.f32 %v1556, %v1437
      %v1575 = vadd.f32 %v1559, %v1437
      %v1576 = vadd.f32 %v1562, %v1437
      %v1577 = vadd.f32 %v1565, %v1437
      %v1578 = vadd.f32 %v1568, %v1437
      %v1579 = vadd.f32 %v1571, %v1437
      %v1588 = vlaneseq
      %v1589 = vshrl.u32 %v1588, 7
      %v1590 = vsub.s32 %v1455, %v1589
      %v1591 = vrot.slane %v1572, %v1590
      %v1592 = vlaneseq
      %v1593 = vshrl.u32 %v1592, 7
      %v1594 = vsub.s32 %v1455, %v1593
      %v1595 = vrot.slane %v1573, %v1594
      %v1596 = vlaneseq
      %v1597 = vshrl.u32 %v1596, 7
      %v1598 = vsub.s32 %v1455, %v1597
      %v1599 = vrot.slane %v1574, %v1598
      %v1600 = vlaneseq
      %v1601 = vshrl.u32 %v1600, 7
      %v1602 = vsub.s32 %v1455, %v1601
      %v1603 = vrot.slane %v1575, %v1602
      %v1604 = vlaneseq
      %v1605 = vshrl.u32 %v1604, 7
      %v1606 = vsub.s32 %v1455, %v1605
      %v1607 = vrot.slane %v1576, %v1606
      %v1608 = vlaneseq
      %v1609 = vshrl.u32 %v1608, 7
      %v1610 = vsub.s32 %v1455, %v1609
      %v1611 = vrot.slane %v1577, %v1610
      %v1612 = vlaneseq
      %v1613 = vshrl.u32 %v1612, 7
      %v1614 = vsub.s32 %v1455, %v1613
      %v1615 = vrot.slane %v1578, %v1614
      %v1616 = vlaneseq
      %v1617 = vshrl.u32 %v1616, 7
      %v1618 = vsub.s32 %v1455, %v1617
      %v1619 = vrot.slane %v1579, %v1618
      %v1620 = vsel %vm1488, %v1595, %v1591
      %v1621 = vsel %vm1490, %v1599, %v1620
      %v1622 = vsel %vm1492, %v1603, %v1621
      %v1623 = vsel %vm1494, %v1607, %v1622
      %v1624 = vsel %vm1496, %v1611, %v1623
      %v1625 = vsel %vm1498, %v1615, %v1624
      %v1626 = vsel %vm1500, %v1619, %v1625
      %s1628 = scalar_lea.vmem %s300, 8
      %1629 = vst.msk [vmem:[%s1628] sm:$0xff] %vm1503, %v1626
      %v1630 = vmul.f32 %v1381, %v1403
      %v1631 = vmul.f32 %v1383, %v1403
      %v1632 = vmul.f32 %v1385, %v1403
      %v1633 = vmul.f32 %v1387, %v1403
      %v1634 = vmul.f32 %v1389, %v1403
      %v1635 = vmul.f32 %v1391, %v1403
      %v1636 = vmul.f32 %v1393, %v1403
      %v1637 = vmul.f32 %v1395, %v1403
      %v1638 = vsel %vm516, %v1630, 0.0
      %1639 = vadd.xlane.f32.xlu0 %v1638
      %v1640 = vpop.xlane.xlu0 %1639
      %v1641 = vsel %vm516, %v1631, 0.0
      %1642 = vadd.xlane.f32.xlu0 %v1641
      %v1643 = vpop.xlane.xlu0 %1642
      %v1644 = vsel %vm516, %v1632, 0.0
      %1645 = vadd.xlane.f32.xlu0 %v1644
      %v1646 = vpop.xlane.xlu0 %1645
      %v1647 = vsel %vm516, %v1633, 0.0
      %1648 = vadd.xlane.f32.xlu0 %v1647
      %v1649 = vpop.xlane.xlu0 %1648
      %v1650 = vsel %vm516, %v1634, 0.0
      %1651 = vadd.xlane.f32.xlu0 %v1650
      %v1652 = vpop.xlane.xlu0 %1651
      %v1653 = vsel %vm516, %v1635, 0.0
      %1654 = vadd.xlane.f32.xlu0 %v1653
      %v1655 = vpop.xlane.xlu0 %1654
      %v1656 = vsel %vm516, %v1636, 0.0
      %1657 = vadd.xlane.f32.xlu0 %v1656
      %v1658 = vpop.xlane.xlu0 %1657
      %v1659 = vsel %vm516, %v1637, 0.0
      %1660 = vadd.xlane.f32.xlu0 %v1659
      %v1661 = vpop.xlane.xlu0 %1660
      %v1662 = vadd.f32 %v1640, %v1437
      %v1663 = vadd.f32 %v1643, %v1437
      %v1664 = vadd.f32 %v1646, %v1437
      %v1665 = vadd.f32 %v1649, %v1437
      %v1666 = vadd.f32 %v1652, %v1437
      %v1667 = vadd.f32 %v1655, %v1437
      %v1668 = vadd.f32 %v1658, %v1437
      %v1669 = vadd.f32 %v1661, %v1437
      %v1678 = vlaneseq
      %v1679 = vshrl.u32 %v1678, 7
      %v1680 = vsub.s32 %v1455, %v1679
      %v1681 = vrot.slane %v1662, %v1680
      %v1682 = vlaneseq
      %v1683 = vshrl.u32 %v1682, 7
      %v1684 = vsub.s32 %v1455, %v1683
      %v1685 = vrot.slane %v1663, %v1684
      %v1686 = vlaneseq
      %v1687 = vshrl.u32 %v1686, 7
      %v1688 = vsub.s32 %v1455, %v1687
      %v1689 = vrot.slane %v1664, %v1688
      %v1690 = vlaneseq
      %v1691 = vshrl.u32 %v1690, 7
      %v1692 = vsub.s32 %v1455, %v1691
      %v1693 = vrot.slane %v1665, %v1692
      %v1694 = vlaneseq
      %v1695 = vshrl.u32 %v1694, 7
      %v1696 = vsub.s32 %v1455, %v1695
      %v1697 = vrot.slane %v1666, %v1696
      %v1698 = vlaneseq
      %v1699 = vshrl.u32 %v1698, 7
      %v1700 = vsub.s32 %v1455, %v1699
      %v1701 = vrot.slane %v1667, %v1700
      %v1702 = vlaneseq
      %v1703 = vshrl.u32 %v1702, 7
      %v1704 = vsub.s32 %v1455, %v1703
      %v1705 = vrot.slane %v1668, %v1704
      %v1706 = vlaneseq
      %v1707 = vshrl.u32 %v1706, 7
      %v1708 = vsub.s32 %v1455, %v1707
      %v1709 = vrot.slane %v1669, %v1708
      %v1710 = vsel %vm1488, %v1685, %v1681
      %v1711 = vsel %vm1490, %v1689, %v1710
      %v1712 = vsel %vm1492, %v1693, %v1711
      %v1713 = vsel %vm1494, %v1697, %v1712
      %v1714 = vsel %vm1496, %v1701, %v1713
      %v1715 = vsel %vm1498, %v1705, %v1714
      %v1716 = vsel %vm1500, %v1709, %v1715
      %s1718 = scalar_lea.vmem %s300, 16
      %1719 = vst.msk [vmem:[%s1718] sm:$0xff] %vm1503, %v1716
      %v1720 = vmul.f32 %v1381, %v1506
      %v1721 = vmul.f32 %v1383, %v1506
      %v1722 = vmul.f32 %v1385, %v1506
      %v1723 = vmul.f32 %v1387, %v1506
      %v1724 = vmul.f32 %v1389, %v1506
      %v1725 = vmul.f32 %v1391, %v1506
      %v1726 = vmul.f32 %v1393, %v1506
      %v1727 = vmul.f32 %v1395, %v1506
      %1736 = vrot.lane.b32.xlu0 %v1720, 64
      %v1737 = vpop.permute.xlu0 %1736
      %1738 = vrot.lane.b32.xlu0 %v1721, 64
      %v1739 = vpop.permute.xlu0 %1738
      %1740 = vrot.lane.b32.xlu0 %v1722, 64
      %v1741 = vpop.permute.xlu0 %1740
      %1742 = vrot.lane.b32.xlu0 %v1723, 64
      %v1743 = vpop.permute.xlu0 %1742
      %1744 = vrot.lane.b32.xlu0 %v1724, 64
      %v1745 = vpop.permute.xlu0 %1744
      %1746 = vrot.lane.b32.xlu0 %v1725, 64
      %v1747 = vpop.permute.xlu0 %1746
      %1748 = vrot.lane.b32.xlu0 %v1726, 64
      %v1749 = vpop.permute.xlu0 %1748
      %1750 = vrot.lane.b32.xlu0 %v1727, 64
      %v1751 = vpop.permute.xlu0 %1750
      %v1760 = vsel %vm516, %v1737, 0.0
      %1761 = vadd.xlane.f32.xlu0 %v1760
      %v1762 = vpop.xlane.xlu0 %1761
      %v1763 = vsel %vm516, %v1739, 0.0
      %1764 = vadd.xlane.f32.xlu0 %v1763
      %v1765 = vpop.xlane.xlu0 %1764
      %v1766 = vsel %vm516, %v1741, 0.0
      %1767 = vadd.xlane.f32.xlu0 %v1766
      %v1768 = vpop.xlane.xlu0 %1767
      %v1769 = vsel %vm516, %v1743, 0.0
      %1770 = vadd.xlane.f32.xlu0 %v1769
      %v1771 = vpop.xlane.xlu0 %1770
      %v1772 = vsel %vm516, %v1745, 0.0
      %1773 = vadd.xlane.f32.xlu0 %v1772
      %v1774 = vpop.xlane.xlu0 %1773
      %v1775 = vsel %vm516, %v1747, 0.0
      %1776 = vadd.xlane.f32.xlu0 %v1775
      %v1777 = vpop.xlane.xlu0 %1776
      %v1778 = vsel %vm516, %v1749, 0.0
      %1779 = vadd.xlane.f32.xlu0 %v1778
      %v1780 = vpop.xlane.xlu0 %1779
      %v1781 = vsel %vm516, %v1751, 0.0
      %1782 = vadd.xlane.f32.xlu0 %v1781
      %v1783 = vpop.xlane.xlu0 %1782
      %v1784 = vadd.f32 %v1762, %v1437
      %v1785 = vadd.f32 %v1765, %v1437
      %v1786 = vadd.f32 %v1768, %v1437
      %v1787 = vadd.f32 %v1771, %v1437
      %v1788 = vadd.f32 %v1774, %v1437
      %v1789 = vadd.f32 %v1777, %v1437
      %v1790 = vadd.f32 %v1780, %v1437
      %v1791 = vadd.f32 %v1783, %v1437
      %v1800 = vlaneseq
      %v1801 = vshrl.u32 %v1800, 7
      %v1802 = vsub.s32 %v1455, %v1801
      %v1803 = vrot.slane %v1784, %v1802
      %v1804 = vlaneseq
      %v1805 = vshrl.u32 %v1804, 7
      %v1806 = vsub.s32 %v1455, %v1805
      %v1807 = vrot.slane %v1785, %v1806
      %v1808 = vlaneseq
      %v1809 = vshrl.u32 %v1808, 7
      %v1810 = vsub.s32 %v1455, %v1809
      %v1811 = vrot.slane %v1786, %v1810
      %v1812 = vlaneseq
      %v1813 = vshrl.u32 %v1812, 7
      %v1814 = vsub.s32 %v1455, %v1813
      %v1815 = vrot.slane %v1787, %v1814
      %v1816 = vlaneseq
      %v1817 = vshrl.u32 %v1816, 7
      %v1818 = vsub.s32 %v1455, %v1817
      %v1819 = vrot.slane %v1788, %v1818
      %v1820 = vlaneseq
      %v1821 = vshrl.u32 %v1820, 7
      %v1822 = vsub.s32 %v1455, %v1821
      %v1823 = vrot.slane %v1789, %v1822
      %v1824 = vlaneseq
      %v1825 = vshrl.u32 %v1824, 7
      %v1826 = vsub.s32 %v1455, %v1825
      %v1827 = vrot.slane %v1790, %v1826
      %v1828 = vlaneseq
      %v1829 = vshrl.u32 %v1828, 7
      %v1830 = vsub.s32 %v1455, %v1829
      %v1831 = vrot.slane %v1791, %v1830
      %v1832 = vsel %vm1488, %v1807, %v1803
      %v1833 = vsel %vm1490, %v1811, %v1832
      %v1834 = vsel %vm1492, %v1815, %v1833
      %v1835 = vsel %vm1494, %v1819, %v1834
      %v1836 = vsel %vm1496, %v1823, %v1835
      %v1837 = vsel %vm1498, %v1827, %v1836
      %v1838 = vsel %vm1500, %v1831, %v1837
      %s1840 = scalar_lea.vmem %s300, 24
      %1841 = vst.msk [vmem:[%s1840] sm:$0xff] %vm1503, %v1838
      %p1842 = scmp.lt.s32.totalorder %s24, 1
      %s1843 = scalar_select %p1842, %s24, 1
      %p1844 = scmp.lt.s32.totalorder %s25, 0
      %s1845 = scalar_select %p1844, %s25, 0
      %s1846 = smul.addr %s1843, 4
      %s1847 = sadd.s32 %s1845, %s1846
      %s1848 = smul.addr %s1847, 8
      %s1849 = scalar_lea.vmem %s7, %s1848
      // Predicated region
      $region49: #{simple_unet_forward.3} parent=47 // pred_check
        %p1850 = pneg %p204
      $region50: #{simple_unet_forward.3} parent=47 // pred_check_branch
        %1852 = sbr.rel (%p1850) target = $region52
      $region51: #{simple_unet_forward.3} parent=47 // pred_region
        _
      $region52: #{simple_unet_forward.3} parent=47 // pred_fallthru
        _
    $region48: #{simple_unet_forward.3} parent=5 // pred_fallthru
      _
    %p1853 = scmp.le.s32.totalorder 2, %s15
    // Predicated region
    $region53: #{simple_unet_forward.3} parent=5 // pred_check
      %p1854 = pneg %p1853
    $region54: #{simple_unet_forward.3} parent=5 // pred_check_branch
      %1856 = sbr.rel (%p1854) target = $region56
    $region55: #{simple_unet_forward.3} parent=5 // pred_region
      %s1857 = ssub.s32 %s15, 2
      // Predicated region
      $region57: #{simple_unet_forward.3} parent=55 // pred_check
        %p1858 = pneg %p210
      $region58: #{simple_unet_forward.3} parent=55 // pred_check_branch
        %1860 = sbr.rel (%p1858) target = $region60
      $region59: #{simple_unet_forward.3} parent=55 // pred_region
        %p1861 = scmp.lt.s32.totalorder %s26, 1
        %s1862 = scalar_select %p1861, %s26, 1
        %p1863 = scmp.lt.s32.totalorder %s27, 0
        %s1864 = scalar_select %p1863, %s27, 0
        %s1865 = smul.addr %s1862, 4
        %s1866 = sadd.s32 %s1864, %s1865
        %s1867 = smul.addr %s1866, 8
        %s1868 = scalar_lea.vmem %s7, %s1867
      $region60: #{simple_unet_forward.3} parent=55 // pred_fallthru
        _
    $region56: #{simple_unet_forward.3} parent=5 // pred_fallthru
      _
  $region6: #{simple_unet_forward.3} parent=0 // loop_footer
    %s19 = sadd.s32 1, %s15
  $region7: #{simple_unet_forward.3} parent=0 // loop_footer_branch
    %14 = sbr.rel target = $region3
  $region8: #{simple_unet_forward.3} parent=0 // loop_exit
    _

</llo_original>
